<compile_context>
chip_gen: v5e
topology: v5e:2x2
jax: 0.10.0
libtpu: 0.0.40
codegen_flags: <defaults>
</compile_context>

<pallas_src>
import jax
import jax.numpy as jnp
from jax import lax
from jax.experimental import pallas as pl
from jax.experimental.pallas import tpu as pltpu

# Module constants (from GPT/gpt.py)
BLOCK_SIZE = 256
N_EMBED = 384
NUM_HEADS = 6
HEAD_SIZE = N_EMBED // NUM_HEADS  # 64

_NEG_BIG = -1e30  # Python literal (NOT a jnp scalar) so the kernel captures no constants.


def _mha_fused_kernel(x_ref, wqkv_ref, wproj_ref, bproj_ref, o_ref):
    """Fused multi-head causal attention + output projection for Bb batch rows.

    x_ref     : (Bb, T, C)       VMEM, f32
    wqkv_ref  : (C, 3*H*hs)      VMEM, bf16  (Q|K|V stacked; 1/sqrt(hs) folded into Q)
    wproj_ref : (H*hs, C)        VMEM, bf16
    bproj_ref : (1, C)           VMEM, f32
    o_ref     : (Bb, T, C)       VMEM, f32
    """
    Bb, T, C = x_ref.shape
    hs = HEAD_SIZE
    H = NUM_HEADS
    Hhs = H * hs

    # QKV projection for all Bb*T rows at once (fills the MXU M dimension), then a single
    # f32 -> bf16 cast so every later slice is bf16.
    x = x_ref[...].reshape(Bb * T, C).astype(jnp.bfloat16)
    qkv = jnp.dot(x, wqkv_ref[...], preferred_element_type=jnp.float32)
    qkv = qkv.astype(jnp.bfloat16)                                   # (Bb*T, 3*H*hs)

    # Q-row tiling for causal block skipping.
    tq = 128 if (T > 128 and T % 128 == 0) else T
    nq = T // tq

    # Per-q-tile causal masks, built once (shared across batch rows and heads).
    masks = []
    for qi in range(nq):
        kv_len = (qi + 1) * tq
        row = lax.broadcasted_iota(jnp.int32, (tq, kv_len), 0) + qi * tq
        col = lax.broadcasted_iota(jnp.int32, (tq, kv_len), 1)
        masks.append(col <= row)

    dims = (((1,), (1,)), ((), ()))  # contract last dims: q @ k^T (transposed-RHS MXU matmul)

    row_chunks = []
    for b in range(Bb):
        base = b * T
        for qi in range(nq):
            kv_len = (qi + 1) * tq                      # skip KV blocks above the diagonal
            r0 = base + qi * tq
            causal = masks[qi]

            head_outs = []
            for h in range(H):
                q = qkv[r0:r0 + tq, h * hs:(h + 1) * hs]                       # (tq, hs)
                k = qkv[base:base + kv_len, Hhs + h * hs:Hhs + (h + 1) * hs]   # (kv, hs)
                v = qkv[base:base + kv_len, 2 * Hhs + h * hs:2 * Hhs + (h + 1) * hs]

                s = lax.dot_general(q, k, dims, preferred_element_type=jnp.float32)
                s = jnp.where(causal, s, _NEG_BIG)                 # (tq, kv) f32
                m = jnp.max(s, axis=-1, keepdims=True)             # f32 max-subtraction
                e = jnp.exp((s - m).astype(jnp.bfloat16))          # bf16 exp (EUP, v6e/v7x)
                denom = jnp.sum(e.astype(jnp.float32), axis=-1, keepdims=True)  # f32 sum

                pv = jnp.dot(e, v, preferred_element_type=jnp.float32)          # (tq, hs)
                # Normalize the small (tq, hs) result instead of the (tq, kv) prob matrix.
                head_outs.append(pv * pl.reciprocal(denom, approx=True))
            row_chunks.append(jnp.concatenate(head_outs, axis=-1))              # (tq, H*hs)

    cat = jnp.concatenate(row_chunks, axis=0).astype(jnp.bfloat16)              # (Bb*T, H*hs)
    y = jnp.dot(cat, wproj_ref[...], preferred_element_type=jnp.float32)        # (Bb*T, C)
    y = y + bproj_ref[...]
    o_ref[...] = y.reshape(Bb, T, C).astype(o_ref.dtype)                        # lane-dense


def _pick_rows_per_step(B):
    # Largest Bb (<=4) dividing B while keeping the grid length >= 2 (feed both v7x TCs).
    for cand in (4, 3, 2):
        if B % cand == 0 and B // cand >= 2:
            return cand
    return 1


def multi_head_attention(x, wq, wk, wv, w_proj, b_proj):
    """x: (B, T, C); wq/wk/wv: (H, C, hs); w_proj: (H*hs, C); b_proj: (1, C)."""
    B, T, C = x.shape
    H, _, hs = wq.shape
    assert T <= BLOCK_SIZE and C == N_EMBED and H == NUM_HEADS and hs == HEAD_SIZE

    # Host-side (one-time) weight packing:
    #  - fold the 1/sqrt(hs) attention scale into the Q weights,
    #  - stack [Q | K | V] into one (C, 3*H*hs) matrix so the QKV matmul is full width,
    #  - cast weights to bf16 (f32 accumulation happens inside the kernel).
    scale = jnp.float32(hs) ** jnp.float32(-0.5)
    w_qkv = jnp.concatenate(
        [
            jnp.transpose(wq * scale, (1, 0, 2)).reshape(C, H * hs),
            jnp.transpose(wk, (1, 0, 2)).reshape(C, H * hs),
            jnp.transpose(wv, (1, 0, 2)).reshape(C, H * hs),
        ],
        axis=-1,
    ).astype(jnp.bfloat16)
    w_proj_bf16 = w_proj.astype(jnp.bfloat16)
    b_proj_f32 = b_proj.astype(jnp.float32)

    Bb = _pick_rows_per_step(B)

    out = pl.pallas_call(
        _mha_fused_kernel,
        out_shape=jax.ShapeDtypeStruct((B, T, C), x.dtype),
        grid_spec=pltpu.PrefetchScalarGridSpec(
            num_scalar_prefetch=0,
            grid=(B // Bb,),
            in_specs=[
                pl.BlockSpec((Bb, T, C), lambda b: (b, 0, 0)),
                # Constant index_maps -> weights stay VMEM-resident across grid steps.
                pl.BlockSpec((C, 3 * H * hs), lambda b: (0, 0)),
                pl.BlockSpec((H * hs, C), lambda b: (0, 0)),
                pl.BlockSpec((1, C), lambda b: (0, 0)),
            ],
            out_specs=pl.BlockSpec((Bb, T, C), lambda b: (b, 0, 0)),
        ),
        compiler_params=pltpu.CompilerParams(
            dimension_semantics=("parallel",),
            vmem_limit_bytes=32 * 1024 * 1024,  # headroom for Bb>1 blocks (v5e default is 16 MiB)
        ),
    )(x, w_qkv, w_proj_bf16, b_proj_f32)

    return out


if __name__ == "__main__":
    key = jax.random.PRNGKey(0)
    k_x, k_q, k_k, k_v, k_w, k_b = jax.random.split(key, 6)

    B, T = 2, 128  # T <= block_size (256)
    H, hs, C = NUM_HEADS, HEAD_SIZE, N_EMBED

    x = jax.random.normal(k_x, (B, T, C), dtype=jnp.float32)

    # Deterministic synthetic parameters (nn.Linear-like scale: U(-1/sqrt(in), 1/sqrt(in)))
    lim_in = 1.0 / (C ** 0.5)
    wq = jax.random.uniform(k_q, (H, C, hs), jnp.float32, -lim_in, lim_in)
    wk = jax.random.uniform(k_k, (H, C, hs), jnp.float32, -lim_in, lim_in)
    wv = jax.random.uniform(k_v, (H, C, hs), jnp.float32, -lim_in, lim_in)

    lim_p = 1.0 / ((H * hs) ** 0.5)
    w_proj = jax.random.uniform(k_w, (H * hs, C), jnp.float32, -lim_p, lim_p)
    b_proj = jax.random.uniform(k_b, (1, C), jnp.float32, -lim_p, lim_p)

    out = multi_head_attention(x, wq, wk, wv, w_proj, b_proj)
    jax.block_until_ready(out)
    assert out.shape == (B, T, C)

    # Sanity check vs. pure-JAX f32 reference (bf16 MXU / bf16-exp path -> loosened tolerance).
    def ref(x):
        outs = []
        for h in range(H):
            q = x @ wq[h]; k_ = x @ wk[h]; v = x @ wv[h]
            wei = (q @ jnp.swapaxes(k_, -2, -1)) * (hs ** -0.5)
            mask = jnp.tril(jnp.ones((T, T), bool))
            wei = jnp.where(mask, wei, -jnp.inf)
            wei = jax.nn.softmax(wei, axis=-1)
            outs.append(wei @ v)
        cat = jnp.concatenate(outs, axis=-1)
        return cat @ w_proj + b_proj

    ref_out = ref(x)
    assert jnp.allclose(out, ref_out, atol=1e-2, rtol=1e-2), (
        float(jnp.max(jnp.abs(out - ref_out))))

    print("KERNEL_OK")
</pallas_src>

<mosaic_0001>
module attributes {stable_mosaic.version = 11 : i64} {
  func.func @_mha_fused_kernel(%arg0: i32, %arg1: memref<1x128x384xf32, #tpu.memory_space<vmem>>, %arg2: memref<384x1152xbf16, #tpu.memory_space<vmem>>, %arg3: memref<384x384xbf16, #tpu.memory_space<vmem>>, %arg4: memref<1x384xf32, #tpu.memory_space<vmem>>, %arg5: memref<1x128x384xf32, #tpu.memory_space<vmem>>) attributes {dimension_semantics = [#tpu.dimension_semantics<parallel>], iteration_bounds = array<i64: 2>, scalar_prefetch = 0 : i64, scratch_operands = 0 : i64, tpu.core_type = #tpu.core_type<tc>, window_params = [{transform_indices = @transform_0, window_bounds = array<i64: 1, 128, 384>}, {pipeline_mode = #tpu.pipeline_mode<synchronous>, transform_indices = @transform_1, window_bounds = array<i64: 384, 1152>}, {pipeline_mode = #tpu.pipeline_mode<synchronous>, transform_indices = @transform_2, window_bounds = array<i64: 384, 384>}, {pipeline_mode = #tpu.pipeline_mode<synchronous>, transform_indices = @transform_3, window_bounds = array<i64: 1, 384>}, {transform_indices = @transform_4, window_bounds = array<i64: 1, 128, 384>}]} {
    %c0 = arith.constant 0 : index
    %c0_0 = arith.constant 0 : index
    %c0_1 = arith.constant 0 : index
    %0 = vector.load %arg1[%c0, %c0_0, %c0_1] : memref<1x128x384xf32, #tpu.memory_space<vmem>>, vector<1x128x384xf32>
    %1 = vector.shape_cast %0 : vector<1x128x384xf32> to vector<128x384xf32>
    %2 = arith.truncf %1 : vector<128x384xf32> to vector<128x384xbf16>
    %c0_2 = arith.constant 0 : index
    %c0_3 = arith.constant 0 : index
    %3 = vector.load %arg2[%c0_2, %c0_3] : memref<384x1152xbf16, #tpu.memory_space<vmem>>, vector<384x1152xbf16>
    %cst = arith.constant dense<0.000000e+00> : vector<128x1152xf32>
    %4 = tpu.matmul %2, %3, %cst {dimension_numbers = #tpu.dot_dimension_numbers<[1], [0], [0], [1], [0, 0, 1, 1], [], []>} : vector<128x384xbf16>, vector<384x1152xbf16>, vector<128x1152xf32> -> vector<128x1152xf32>
    %5 = arith.truncf %4 : vector<128x1152xf32> to vector<128x1152xbf16>
    %6 = tpu.iota {dimensions = array<i32: 0>} : vector<128x128xi32>
    %c0_i32 = arith.constant 0 : i32
    %7 = vector.broadcast %c0_i32 : i32 to vector<128x128xi32>
    %8 = arith.addi %6, %7 : vector<128x128xi32>
    %9 = tpu.iota {dimensions = array<i32: 1>} : vector<128x128xi32>
    %10 = arith.cmpi sle, %9, %8 : vector<128x128xi32>
    %11 = vector.extract_strided_slice %5 {offsets = [0, 0], sizes = [128, 64], strides = [1, 1]} : vector<128x1152xbf16> to vector<128x64xbf16>
    %12 = vector.extract_strided_slice %5 {offsets = [0, 384], sizes = [128, 64], strides = [1, 1]} : vector<128x1152xbf16> to vector<128x64xbf16>
    %13 = vector.extract_strided_slice %5 {offsets = [0, 768], sizes = [128, 64], strides = [1, 1]} : vector<128x1152xbf16> to vector<128x64xbf16>
    %cst_4 = arith.constant dense<0.000000e+00> : vector<128x128xf32>
    %14 = tpu.matmul %11, %12, %cst_4 {dimension_numbers = #tpu.dot_dimension_numbers<[1], [1], [0], [0], [0, 0, 1, 0], [], []>} : vector<128x64xbf16>, vector<128x64xbf16>, vector<128x128xf32> -> vector<128x128xf32>
    %cst_5 = arith.constant -1.000000e+30 : f32
    %15 = vector.broadcast %cst_5 : f32 to vector<128x128xf32>
    %16 = arith.select %10, %14, %15 : vector<128x128xi1>, vector<128x128xf32>
    %cst_6 = arith.constant dense<0xFF800000> : vector<128xf32>
    %17 = vector.multi_reduction <maximumf>, %16, %cst_6 [1] : vector<128x128xf32> to vector<128xf32>
    %18 = vector.shape_cast %17 : vector<128xf32> to vector<128x1xf32>
    %19 = vector.broadcast %18 : vector<128x1xf32> to vector<128x128xf32>
    %20 = arith.subf %16, %19 : vector<128x128xf32>
    %21 = arith.truncf %20 : vector<128x128xf32> to vector<128x128xbf16>
    %22 = math.exp %21 : vector<128x128xbf16>
    %23 = arith.extf %22 : vector<128x128xbf16> to vector<128x128xf32>
    %cst_7 = arith.constant dense<0.000000e+00> : vector<128xf32>
    %24 = vector.multi_reduction <add>, %23, %cst_7 [1] : vector<128x128xf32> to vector<128xf32>
    %25 = vector.shape_cast %24 : vector<128xf32> to vector<128x1xf32>
    %cst_8 = arith.constant dense<0.000000e+00> : vector<128x64xf32>
    %26 = tpu.matmul %22, %13, %cst_8 {dimension_numbers = #tpu.dot_dimension_numbers<[1], [0], [0], [1], [0, 0, 1, 1], [], []>} : vector<128x128xbf16>, vector<128x64xbf16>, vector<128x64xf32> -> vector<128x64xf32>
    %27 = tpu.reciprocal %25 {approx = true} : vector<128x1xf32> -> vector<128x1xf32>
    %28 = vector.broadcast %27 : vector<128x1xf32> to vector<128x64xf32>
    %29 = arith.mulf %26, %28 : vector<128x64xf32>
    %30 = vector.extract_strided_slice %5 {offsets = [0, 64], sizes = [128, 64], strides = [1, 1]} : vector<128x1152xbf16> to vector<128x64xbf16>
    %31 = vector.extract_strided_slice %5 {offsets = [0, 448], sizes = [128, 64], strides = [1, 1]} : vector<128x1152xbf16> to vector<128x64xbf16>
    %32 = vector.extract_strided_slice %5 {offsets = [0, 832], sizes = [128, 64], strides = [1, 1]} : vector<128x1152xbf16> to vector<128x64xbf16>
    %cst_9 = arith.constant dense<0.000000e+00> : vector<128x128xf32>
    %33 = tpu.matmul %30, %31, %cst_9 {dimension_numbers = #tpu.dot_dimension_numbers<[1], [1], [0], [0], [0, 0, 1, 0], [], []>} : vector<128x64xbf16>, vector<128x64xbf16>, vector<128x128xf32> -> vector<128x128xf32>
    %cst_10 = arith.constant -1.000000e+30 : f32
    %34 = vector.broadcast %cst_10 : f32 to vector<128x128xf32>
    %35 = arith.select %10, %33, %34 : vector<128x128xi1>, vector<128x128xf32>
    %cst_11 = arith.constant dense<0xFF800000> : vector<128xf32>
    %36 = vector.multi_reduction <maximumf>, %35, %cst_11 [1] : vector<128x128xf32> to vector<128xf32>
    %37 = vector.shape_cast %36 : vector<128xf32> to vector<128x1xf32>
    %38 = vector.broadcast %37 : vector<128x1xf32> to vector<128x128xf32>
    %39 = arith.subf %35, %38 : vector<128x128xf32>
    %40 = arith.truncf %39 : vector<128x128xf32> to vector<128x128xbf16>
    %41 = math.exp %40 : vector<128x128xbf16>
    %42 = arith.extf %41 : vector<128x128xbf16> to vector<128x128xf32>
    %cst_12 = arith.constant dense<0.000000e+00> : vector<128xf32>
    %43 = vector.multi_reduction <add>, %42, %cst_12 [1] : vector<128x128xf32> to vector<128xf32>
    %44 = vector.shape_cast %43 : vector<128xf32> to vector<128x1xf32>
    %cst_13 = arith.constant dense<0.000000e+00> : vector<128x64xf32>
    %45 = tpu.matmul %41, %32, %cst_13 {dimension_numbers = #tpu.dot_dimension_numbers<[1], [0], [0], [1], [0, 0, 1, 1], [], []>} : vector<128x128xbf16>, vector<128x64xbf16>, vector<128x64xf32> -> vector<128x64xf32>
    %46 = tpu.reciprocal %44 {approx = true} : vector<128x1xf32> -> vector<128x1xf32>
    %47 = vector.broadcast %46 : vector<128x1xf32> to vector<128x64xf32>
    %48 = arith.mulf %45, %47 : vector<128x64xf32>
    %49 = vector.extract_strided_slice %5 {offsets = [0, 128], sizes = [128, 64], strides = [1, 1]} : vector<128x1152xbf16> to vector<128x64xbf16>
    %50 = vector.extract_strided_slice %5 {offsets = [0, 512], sizes = [128, 64], strides = [1, 1]} : vector<128x1152xbf16> to vector<128x64xbf16>
    %51 = vector.extract_strided_slice %5 {offsets = [0, 896], sizes = [128, 64], strides = [1, 1]} : vector<128x1152xbf16> to vector<128x64xbf16>
    %cst_14 = arith.constant dense<0.000000e+00> : vector<128x128xf32>
    %52 = tpu.matmul %49, %50, %cst_14 {dimension_numbers = #tpu.dot_dimension_numbers<[1], [1], [0], [0], [0, 0, 1, 0], [], []>} : vector<128x64xbf16>, vector<128x64xbf16>, vector<128x128xf32> -> vector<128x128xf32>
    %cst_15 = arith.constant -1.000000e+30 : f32
    %53 = vector.broadcast %cst_15 : f32 to vector<128x128xf32>
    %54 = arith.select %10, %52, %53 : vector<128x128xi1>, vector<128x128xf32>
    %cst_16 = arith.constant dense<0xFF800000> : vector<128xf32>
    %55 = vector.multi_reduction <maximumf>, %54, %cst_16 [1] : vector<128x128xf32> to vector<128xf32>
    %56 = vector.shape_cast %55 : vector<128xf32> to vector<128x1xf32>
    %57 = vector.broadcast %56 : vector<128x1xf32> to vector<128x128xf32>
    %58 = arith.subf %54, %57 : vector<128x128xf32>
    %59 = arith.truncf %58 : vector<128x128xf32> to vector<128x128xbf16>
    %60 = math.exp %59 : vector<128x128xbf16>
    %61 = arith.extf %60 : vector<128x128xbf16> to vector<128x128xf32>
    %cst_17 = arith.constant dense<0.000000e+00> : vector<128xf32>
    %62 = vector.multi_reduction <add>, %61, %cst_17 [1] : vector<128x128xf32> to vector<128xf32>
    %63 = vector.shape_cast %62 : vector<128xf32> to vector<128x1xf32>
    %cst_18 = arith.constant dense<0.000000e+00> : vector<128x64xf32>
    %64 = tpu.matmul %60, %51, %cst_18 {dimension_numbers = #tpu.dot_dimension_numbers<[1], [0], [0], [1], [0, 0, 1, 1], [], []>} : vector<128x128xbf16>, vector<128x64xbf16>, vector<128x64xf32> -> vector<128x64xf32>
    %65 = tpu.reciprocal %63 {approx = true} : vector<128x1xf32> -> vector<128x1xf32>
    %66 = vector.broadcast %65 : vector<128x1xf32> to vector<128x64xf32>
    %67 = arith.mulf %64, %66 : vector<128x64xf32>
    %68 = vector.extract_strided_slice %5 {offsets = [0, 192], sizes = [128, 64], strides = [1, 1]} : vector<128x1152xbf16> to vector<128x64xbf16>
    %69 = vector.extract_strided_slice %5 {offsets = [0, 576], sizes = [128, 64], strides = [1, 1]} : vector<128x1152xbf16> to vector<128x64xbf16>
    %70 = vector.extract_strided_slice %5 {offsets = [0, 960], sizes = [128, 64], strides = [1, 1]} : vector<128x1152xbf16> to vector<128x64xbf16>
    %cst_19 = arith.constant dense<0.000000e+00> : vector<128x128xf32>
    %71 = tpu.matmul %68, %69, %cst_19 {dimension_numbers = #tpu.dot_dimension_numbers<[1], [1], [0], [0], [0, 0, 1, 0], [], []>} : vector<128x64xbf16>, vector<128x64xbf16>, vector<128x128xf32> -> vector<128x128xf32>
    %cst_20 = arith.constant -1.000000e+30 : f32
    %72 = vector.broadcast %cst_20 : f32 to vector<128x128xf32>
    %73 = arith.select %10, %71, %72 : vector<128x128xi1>, vector<128x128xf32>
    %cst_21 = arith.constant dense<0xFF800000> : vector<128xf32>
    %74 = vector.multi_reduction <maximumf>, %73, %cst_21 [1] : vector<128x128xf32> to vector<128xf32>
    %75 = vector.shape_cast %74 : vector<128xf32> to vector<128x1xf32>
    %76 = vector.broadcast %75 : vector<128x1xf32> to vector<128x128xf32>
    %77 = arith.subf %73, %76 : vector<128x128xf32>
    %78 = arith.truncf %77 : vector<128x128xf32> to vector<128x128xbf16>
    %79 = math.exp %78 : vector<128x128xbf16>
    %80 = arith.extf %79 : vector<128x128xbf16> to vector<128x128xf32>
    %cst_22 = arith.constant dense<0.000000e+00> : vector<128xf32>
    %81 = vector.multi_reduction <add>, %80, %cst_22 [1] : vector<128x128xf32> to vector<128xf32>
    %82 = vector.shape_cast %81 : vector<128xf32> to vector<128x1xf32>
    %cst_23 = arith.constant dense<0.000000e+00> : vector<128x64xf32>
    %83 = tpu.matmul %79, %70, %cst_23 {dimension_numbers = #tpu.dot_dimension_numbers<[1], [0], [0], [1], [0, 0, 1, 1], [], []>} : vector<128x128xbf16>, vector<128x64xbf16>, vector<128x64xf32> -> vector<128x64xf32>
    %84 = tpu.reciprocal %82 {approx = true} : vector<128x1xf32> -> vector<128x1xf32>
    %85 = vector.broadcast %84 : vector<128x1xf32> to vector<128x64xf32>
    %86 = arith.mulf %83, %85 : vector<128x64xf32>
    %87 = vector.extract_strided_slice %5 {offsets = [0, 256], sizes = [128, 64], strides = [1, 1]} : vector<128x1152xbf16> to vector<128x64xbf16>
    %88 = vector.extract_strided_slice %5 {offsets = [0, 640], sizes = [128, 64], strides = [1, 1]} : vector<128x1152xbf16> to vector<128x64xbf16>
    %89 = vector.extract_strided_slice %5 {offsets = [0, 1024], sizes = [128, 64], strides = [1, 1]} : vector<128x1152xbf16> to vector<128x64xbf16>
    %cst_24 = arith.constant dense<0.000000e+00> : vector<128x128xf32>
    %90 = tpu.matmul %87, %88, %cst_24 {dimension_numbers = #tpu.dot_dimension_numbers<[1], [1], [0], [0], [0, 0, 1, 0], [], []>} : vector<128x64xbf16>, vector<128x64xbf16>, vector<128x128xf32> -> vector<128x128xf32>
    %cst_25 = arith.constant -1.000000e+30 : f32
    %91 = vector.broadcast %cst_25 : f32 to vector<128x128xf32>
    %92 = arith.select %10, %90, %91 : vector<128x128xi1>, vector<128x128xf32>
    %cst_26 = arith.constant dense<0xFF800000> : vector<128xf32>
    %93 = vector.multi_reduction <maximumf>, %92, %cst_26 [1] : vector<128x128xf32> to vector<128xf32>
    %94 = vector.shape_cast %93 : vector<128xf32> to vector<128x1xf32>
    %95 = vector.broadcast %94 : vector<128x1xf32> to vector<128x128xf32>
    %96 = arith.subf %92, %95 : vector<128x128xf32>
    %97 = arith.truncf %96 : vector<128x128xf32> to vector<128x128xbf16>
    %98 = math.exp %97 : vector<128x128xbf16>
    %99 = arith.extf %98 : vector<128x128xbf16> to vector<128x128xf32>
    %cst_27 = arith.constant dense<0.000000e+00> : vector<128xf32>
    %100 = vector.multi_reduction <add>, %99, %cst_27 [1] : vector<128x128xf32> to vector<128xf32>
    %101 = vector.shape_cast %100 : vector<128xf32> to vector<128x1xf32>
    %cst_28 = arith.constant dense<0.000000e+00> : vector<128x64xf32>
    %102 = tpu.matmul %98, %89, %cst_28 {dimension_numbers = #tpu.dot_dimension_numbers<[1], [0], [0], [1], [0, 0, 1, 1], [], []>} : vector<128x128xbf16>, vector<128x64xbf16>, vector<128x64xf32> -> vector<128x64xf32>
    %103 = tpu.reciprocal %101 {approx = true} : vector<128x1xf32> -> vector<128x1xf32>
    %104 = vector.broadcast %103 : vector<128x1xf32> to vector<128x64xf32>
    %105 = arith.mulf %102, %104 : vector<128x64xf32>
    %106 = vector.extract_strided_slice %5 {offsets = [0, 320], sizes = [128, 64], strides = [1, 1]} : vector<128x1152xbf16> to vector<128x64xbf16>
    %107 = vector.extract_strided_slice %5 {offsets = [0, 704], sizes = [128, 64], strides = [1, 1]} : vector<128x1152xbf16> to vector<128x64xbf16>
    %108 = vector.extract_strided_slice %5 {offsets = [0, 1088], sizes = [128, 64], strides = [1, 1]} : vector<128x1152xbf16> to vector<128x64xbf16>
    %cst_29 = arith.constant dense<0.000000e+00> : vector<128x128xf32>
    %109 = tpu.matmul %106, %107, %cst_29 {dimension_numbers = #tpu.dot_dimension_numbers<[1], [1], [0], [0], [0, 0, 1, 0], [], []>} : vector<128x64xbf16>, vector<128x64xbf16>, vector<128x128xf32> -> vector<128x128xf32>
    %cst_30 = arith.constant -1.000000e+30 : f32
    %110 = vector.broadcast %cst_30 : f32 to vector<128x128xf32>
    %111 = arith.select %10, %109, %110 : vector<128x128xi1>, vector<128x128xf32>
    %cst_31 = arith.constant dense<0xFF800000> : vector<128xf32>
    %112 = vector.multi_reduction <maximumf>, %111, %cst_31 [1] : vector<128x128xf32> to vector<128xf32>
    %113 = vector.shape_cast %112 : vector<128xf32> to vector<128x1xf32>
    %114 = vector.broadcast %113 : vector<128x1xf32> to vector<128x128xf32>
    %115 = arith.subf %111, %114 : vector<128x128xf32>
    %116 = arith.truncf %115 : vector<128x128xf32> to vector<128x128xbf16>
    %117 = math.exp %116 : vector<128x128xbf16>
    %118 = arith.extf %117 : vector<128x128xbf16> to vector<128x128xf32>
    %cst_32 = arith.constant dense<0.000000e+00> : vector<128xf32>
    %119 = vector.multi_reduction <add>, %118, %cst_32 [1] : vector<128x128xf32> to vector<128xf32>
    %120 = vector.shape_cast %119 : vector<128xf32> to vector<128x1xf32>
    %cst_33 = arith.constant dense<0.000000e+00> : vector<128x64xf32>
    %121 = tpu.matmul %117, %108, %cst_33 {dimension_numbers = #tpu.dot_dimension_numbers<[1], [0], [0], [1], [0, 0, 1, 1], [], []>} : vector<128x128xbf16>, vector<128x64xbf16>, vector<128x64xf32> -> vector<128x64xf32>
    %122 = tpu.reciprocal %120 {approx = true} : vector<128x1xf32> -> vector<128x1xf32>
    %123 = vector.broadcast %122 : vector<128x1xf32> to vector<128x64xf32>
    %124 = arith.mulf %121, %123 : vector<128x64xf32>
    %125 = tpu.concatenate %29, %48, %67, %86, %105, %124 in 1 : vector<128x64xf32>, vector<128x64xf32>, vector<128x64xf32>, vector<128x64xf32>, vector<128x64xf32>, vector<128x64xf32> -> vector<128x384xf32>
    %126 = arith.truncf %125 : vector<128x384xf32> to vector<128x384xbf16>
    %c0_34 = arith.constant 0 : index
    %c0_35 = arith.constant 0 : index
    %127 = vector.load %arg3[%c0_34, %c0_35] : memref<384x384xbf16, #tpu.memory_space<vmem>>, vector<384x384xbf16>
    %cst_36 = arith.constant dense<0.000000e+00> : vector<128x384xf32>
    %128 = tpu.matmul %126, %127, %cst_36 {dimension_numbers = #tpu.dot_dimension_numbers<[1], [0], [0], [1], [0, 0, 1, 1], [], []>} : vector<128x384xbf16>, vector<384x384xbf16>, vector<128x384xf32> -> vector<128x384xf32>
    %c0_37 = arith.constant 0 : index
    %c0_38 = arith.constant 0 : index
    %129 = vector.load %arg4[%c0_37, %c0_38] : memref<1x384xf32, #tpu.memory_space<vmem>>, vector<1x384xf32>
    %130 = vector.broadcast %129 : vector<1x384xf32> to vector<128x384xf32>
    %131 = arith.addf %128, %130 : vector<128x384xf32>
    %132 = vector.shape_cast %131 : vector<128x384xf32> to vector<1x128x384xf32>
    %c0_39 = arith.constant 0 : index
    %c0_40 = arith.constant 0 : index
    %c0_41 = arith.constant 0 : index
    %133 = vector.load %arg5[%c0_39, %c0_40, %c0_41] : memref<1x128x384xf32, #tpu.memory_space<vmem>>, vector<1x128x384xf32>
    tpu.vector_store %arg5[%c0_39, %c0_40, %c0_41], %132 {strides = array<i32>} : memref<1x128x384xf32, #tpu.memory_space<vmem>>, vector<1x128x384xf32>,
    return
  }
  func.func @transform_0(%arg0: i32) -> (i32, i32, i32) {
    %c0_i32 = arith.constant 0 : i32
    %c0_i32_0 = arith.constant 0 : i32
    %c0_i32_1 = arith.constant 0 : i32
    return %arg0, %c0_i32, %c0_i32_0 : i32, i32, i32
  }
  func.func @transform_1(%arg0: i32) -> (i32, i32) {
    %c0_i32 = arith.constant 0 : i32
    %c0_i32_0 = arith.constant 0 : i32
    %c0_i32_1 = arith.constant 0 : i32
    return %c0_i32, %c0_i32_0 : i32, i32
  }
  func.func @transform_2(%arg0: i32) -> (i32, i32) {
    %c0_i32 = arith.constant 0 : i32
    %c0_i32_0 = arith.constant 0 : i32
    %c0_i32_1 = arith.constant 0 : i32
    return %c0_i32, %c0_i32_0 : i32, i32
  }
  func.func @transform_3(%arg0: i32) -> (i32, i32) {
    %c0_i32 = arith.constant 0 : i32
    %c0_i32_0 = arith.constant 0 : i32
    %c0_i32_1 = arith.constant 0 : i32
    return %c0_i32, %c0_i32_0 : i32, i32
  }
  func.func @transform_4(%arg0: i32) -> (i32, i32, i32) {
    %c0_i32 = arith.constant 0 : i32
    %c0_i32_0 = arith.constant 0 : i32
    %c0_i32_1 = arith.constant 0 : i32
    return %arg0, %c0_i32, %c0_i32_0 : i32, i32, i32
  }
}

</mosaic_0001>

<llo_original>
// kernel: tpu_custom_call.1
$region0: #{tpu_custom_call.1}
  #allocation0 [shape = 'u32[]', space=smem, size = 0x4, offset = 0x4, fixed_abs, tag = 'smem constant byte address 0x4 - core index']
  #allocation1 [shape = 'u32[72,128]{1,0:T(1,128)}', space=vmem, size = 0x9000, scoped, tag = 'internal scratch']
  %s0 = inlined_call_operand.hbm [shape: f32[2,128,384], index: 0, kind: input, shape index: {}]
  %s1 = inlined_call_operand.hbm [shape: bf16[384,1152], index: 1, kind: input, shape index: {}]
  %s2 = inlined_call_operand.hbm [shape: bf16[384,384], index: 2, kind: input, shape index: {}]
  %s3 = inlined_call_operand.hbm [shape: f32[1,384], index: 3, kind: input, shape index: {}]
  %s4 = inlined_call_operand.hbm [shape: f32[2,128,384], index: 4, kind: output, shape index: {}]
  %s5 = sld [smem:[#allocation0]]
  $region65: #{tpu_custom_call.1} parent=0
    _
  %s7 = ssub.s32 1, %s5
  %s8 = scalar_select 0, %s7, %s5
  $region1: #{tpu_custom_call.1} parent=0
    #allocation2 [shape = 'u8[393216]{0}', space=vmem, size = 0x60000, scoped, tag = 'input window, operand 0']
    #allocation3 [shape = 's32[2]{0}', space=sflag, size = 0x8, scoped, tag = 'scoped memory for tpu_custom_call.1']
    #allocation4 [shape = 's32[2]{0}', space=sflag, size = 0x8, scoped, tag = 'scoped memory for tpu_custom_call.1']
    #allocation5 [shape = 'u8[884736]{0}', space=vmem, size = 0xd8000, scoped, tag = 'input window, operand 1, single buffered']
    #allocation6 [shape = 's32[1]{0}', space=sflag, size = 0x4, scoped, tag = 'scoped memory for tpu_custom_call.1']
    #allocation7 [shape = 'u8[294912]{0}', space=vmem, size = 0x48000, scoped, tag = 'input window, operand 2, single buffered']
    #allocation8 [shape = 'u8[1536]{0}', space=vmem, size = 0x800, scoped, tag = 'input window, operand 3, single buffered']
    #allocation9 [shape = 's32[1]{0}', space=sflag, size = 0x4, scoped, tag = 'scoped memory for tpu_custom_call.1']
    #allocation10 [shape = 'u8[393216]{0}', space=vmem, size = 0x60000, scoped, tag = 'output window, operand 0']
    %9 = vsyncpa [#allocation3], 0
    %s10 = scalar_lea.sflag [#allocation3], 1
    %11 = vsyncpa %s10, 0
    %12 = vsyncpa [#allocation6], 0
    %13 = vsyncpa [#allocation9], 0
    %14 = vsyncpa [#allocation4], 0
    %s15 = scalar_lea.sflag [#allocation4], 1
    %16 = vsyncpa %s15, 0
    loop: start=0, step=1, limit=4
    $region2: #{tpu_custom_call.1} parent=1 // loop_pre_header
      _
    $region3: #{tpu_custom_call.1} parent=1 // loop_header
      %s18 = sphi 0, %s22
      %p19 = scmp.ge.s32.totalorder %s18, 4
      %s28 = sphi 0, %s30
      %s31 = sphi 0, %s28
      %s32 = sphi 0, %s31
      %s48 = sphi 0, %s32
      %s52 = sphi 0, %s52
      %s54 = sphi 0, %s52
      %s55 = sphi 0, %s54
      %s69 = sphi 0, %s55
      %s73 = sphi 0, %s73
      %s75 = sphi 0, %s73
      %s76 = sphi 0, %s75
      %s90 = sphi 0, %s76
      %s94 = sphi 0, %s94
      %s96 = sphi 0, %s94
      %s97 = sphi 0, %s96
      %s111 = sphi 0, %s97
      %s117 = sphi 0, %s119
      %s120 = sphi 0, %s117
      %s121 = sphi 0, %s120
      %s137 = sphi 0, %s121
    $region4: #{tpu_custom_call.1} parent=1 // loop_header_branch
      %21 = sbr.rel (%p19) target = $region8
    $region5: #{tpu_custom_call.1} parent=1 // loop_body
      %s23 = ssub.s32 %s18, 1
      %s24 = ssub.s32 %s18, 2
      %s25 = sadd.s32 %s18, 1
      %s26 = ssub.s32 %s18, %s25
      %p27 = scmp.eq.s32.totalorder %s26, 0
      %s29 = sadd.s32 %s28, 1
      %s30 = scalar_select %p27, %s28, %s29
      %p33 = pneg %p27
      %p34 = scmp.eq.s32.totalorder %s18, 1
      %p35 = por %p33, %p34
      %p36 = scmp.ne.s32.totalorder %s28, %s31
      %p37 = scmp.eq.s32.totalorder %s18, 0
      %p38 = por %p36, %p37
      %p39 = scmp.ne.s32.totalorder %s28, %s31
      %p40 = scmp.eq.s32.totalorder %s23, 1
      %p41 = por %p39, %p40
      %p42 = scmp.ne.s32.totalorder %s31, %s32
      %p43 = scmp.eq.s32.totalorder %s23, 0
      %p44 = por %p42, %p43
      %p45 = scmp.ne.s32.totalorder %s31, %s32
      %p46 = scmp.eq.s32.totalorder %s24, 1
      %p47 = por %p45, %p46
      %p49 = scmp.ne.s32.totalorder %s32, %s48
      %p50 = scmp.eq.s32.totalorder %s24, 0
      %p51 = por %p49, %p50
      %s53 = sadd.s32 %s52, 1
      %p56 = scmp.eq.s32.totalorder %s18, 1
      %p57 = scmp.ne.s32.totalorder %s52, %s54
      %p58 = scmp.eq.s32.totalorder %s18, 0
      %p59 = por %p57, %p58
      %p60 = scmp.ne.s32.totalorder %s52, %s54
      %p61 = scmp.eq.s32.totalorder %s23, 1
      %p62 = por %p60, %p61
      %p63 = scmp.ne.s32.totalorder %s54, %s55
      %p64 = scmp.eq.s32.totalorder %s23, 0
      %p65 = por %p63, %p64
      %p66 = scmp.ne.s32.totalorder %s54, %s55
      %p67 = scmp.eq.s32.totalorder %s24, 1
      %p68 = por %p66, %p67
      %p70 = scmp.ne.s32.totalorder %s55, %s69
      %p71 = scmp.eq.s32.totalorder %s24, 0
      %p72 = por %p70, %p71
      %s74 = sadd.s32 %s73, 1
      %p77 = scmp.eq.s32.totalorder %s18, 1
      %p78 = scmp.ne.s32.totalorder %s73, %s75
      %p79 = scmp.eq.s32.totalorder %s18, 0
      %p80 = por %p78, %p79
      %p81 = scmp.ne.s32.totalorder %s73, %s75
      %p82 = scmp.eq.s32.totalorder %s23, 1
      %p83 = por %p81, %p82
      %p84 = scmp.ne.s32.totalorder %s75, %s76
      %p85 = scmp.eq.s32.totalorder %s23, 0
      %p86 = por %p84, %p85
      %p87 = scmp.ne.s32.totalorder %s75, %s76
      %p88 = scmp.eq.s32.totalorder %s24, 1
      %p89 = por %p87, %p88
      %p91 = scmp.ne.s32.totalorder %s76, %s90
      %p92 = scmp.eq.s32.totalorder %s24, 0
      %p93 = por %p91, %p92
      %s95 = sadd.s32 %s94, 1
      %p98 = scmp.eq.s32.totalorder %s18, 1
      %p99 = scmp.ne.s32.totalorder %s94, %s96
      %p100 = scmp.eq.s32.totalorder %s18, 0
      %p101 = por %p99, %p100
      %p102 = scmp.ne.s32.totalorder %s94, %s96
      %p103 = scmp.eq.s32.totalorder %s23, 1
      %p104 = por %p102, %p103
      %p105 = scmp.ne.s32.totalorder %s96, %s97
      %p106 = scmp.eq.s32.totalorder %s23, 0
      %p107 = por %p105, %p106
      %p108 = scmp.ne.s32.totalorder %s96, %s97
      %p109 = scmp.eq.s32.totalorder %s24, 1
      %p110 = por %p108, %p109
      %p112 = scmp.ne.s32.totalorder %s97, %s111
      %p113 = scmp.eq.s32.totalorder %s24, 0
      %p114 = por %p112, %p113
      %s115 = ssub.s32 %s18, %s25
      %p116 = scmp.eq.s32.totalorder %s115, 0
      %s118 = sadd.s32 %s117, 1
      %s119 = scalar_select %p116, %s117, %s118
      %p122 = pneg %p116
      %p123 = scmp.eq.s32.totalorder %s18, 1
      %p124 = por %p122, %p123
      %p125 = scmp.ne.s32.totalorder %s117, %s120
      %p126 = scmp.eq.s32.totalorder %s18, 0
      %p127 = por %p125, %p126
      %p128 = scmp.ne.s32.totalorder %s117, %s120
      %p129 = scmp.eq.s32.totalorder %s23, 1
      %p130 = por %p128, %p129
      %p131 = scmp.ne.s32.totalorder %s120, %s121
      %p132 = scmp.eq.s32.totalorder %s23, 0
      %p133 = por %p131, %p132
      %p134 = scmp.ne.s32.totalorder %s120, %s121
      %p135 = scmp.eq.s32.totalorder %s24, 1
      %p136 = por %p134, %p135
      %p138 = scmp.ne.s32.totalorder %s121, %s137
      %p139 = scmp.eq.s32.totalorder %s24, 0
      %p140 = por %p138, %p139
      %p141 = scmp.le.s32.totalorder 1, %s18
      %p142 = scmp.lt.s32.totalorder %s18, 3
      %p143 = pnand %p141, %p142
      %p144 = pneg %p143
      // Predicated region
      $region9: #{tpu_custom_call.1} parent=5 // pred_check
        _
      $region10: #{tpu_custom_call.1} parent=5 // pred_check_branch
        %146 = sbr.rel (%p143) target = $region12
      $region11: #{tpu_custom_call.1} parent=5 // pred_region
        %s147 = ssub.s32 %s18, 1
        // Predicated region
        $region13: #{tpu_custom_call.1} parent=11 // pred_check
          %p148 = pneg %p65
        $region14: #{tpu_custom_call.1} parent=11 // pred_check_branch
          %150 = sbr.rel (%p148) target = $region16
        $region15: #{tpu_custom_call.1} parent=11 // pred_region
          %152 = vsyncadd [#allocation6], 0
          %s153 = sshll.u32 %s1, 4
          %s154 = int_to_ptr.hbm [resolvable:$true] %s153
          %s155 = sshll.u32 [#allocation5], 4
          %s156 = int_to_ptr.vmem [resolvable:$true] %s155
          %161 = dma.hbm_to_vmem [thread:$0]  %s154, 27648, %s156, [#allocation6], 576, 576, 36
        $region16: #{tpu_custom_call.1} parent=11 // pred_fallthru
          _
        // Predicated region
        $region17: #{tpu_custom_call.1} parent=11 // pred_check
          %p162 = pneg %p86
        $region18: #{tpu_custom_call.1} parent=11 // pred_check_branch
          %164 = sbr.rel (%p162) target = $region20
        $region19: #{tpu_custom_call.1} parent=11 // pred_region
          %166 = vsyncadd [#allocation6], 0
          %s167 = sshll.u32 %s2, 4
          %s168 = int_to_ptr.hbm [resolvable:$true] %s167
          %s169 = sshll.u32 [#allocation7], 4
          %s170 = int_to_ptr.vmem [resolvable:$true] %s169
          %175 = dma.hbm_to_vmem [thread:$0]  %s168, 9216, %s170, [#allocation6], 192, 192, 12
        $region20: #{tpu_custom_call.1} parent=11 // pred_fallthru
          _
        // Predicated region
        $region21: #{tpu_custom_call.1} parent=11 // pred_check
          %p176 = pneg %p107
        $region22: #{tpu_custom_call.1} parent=11 // pred_check_branch
          %178 = sbr.rel (%p176) target = $region24
        $region23: #{tpu_custom_call.1} parent=11 // pred_region
          %180 = vsyncadd [#allocation9], 0
          %s182 = sshll.u32 %s3, 4
          %s183 = int_to_ptr.hbm [resolvable:$true] %s182
          %s184 = sshll.u32 [#allocation8], 4
          %s185 = int_to_ptr.vmem [resolvable:$true] %s184
          %187 = dma.hbm_to_vmem [thread:$0]  %s183, 48, %s185, [#allocation9]
        $region24: #{tpu_custom_call.1} parent=11 // pred_fallthru
          _
      $region12: #{tpu_custom_call.1} parent=5 // pred_fallthru
        _
      %p188 = scmp.lt.s32.totalorder %s18, 2
      // Predicated region
      $region25: #{tpu_custom_call.1} parent=5 // pred_check
        %p189 = pneg %p188
      $region26: #{tpu_custom_call.1} parent=5 // pred_check_branch
        %191 = sbr.rel (%p189) target = $region28
      $region27: #{tpu_custom_call.1} parent=5 // pred_region
        // Predicated region
        $region29: #{tpu_custom_call.1} parent=27 // pred_check
          %p192 = pneg %p38
        $region30: #{tpu_custom_call.1} parent=27 // pred_check_branch
          %194 = sbr.rel (%p192) target = $region32
        $region31: #{tpu_custom_call.1} parent=27 // pred_region
          %s195 = sand.u32 %s28, 1
          %s196 = scalar_lea.sflag [#allocation3], %s195
          %s197 = sand.u32 %s28, 1
          %s198 = smul.addr %s197, 384
          %s199 = scalar_lea.vmem [#allocation2], %s198
          %201 = vsyncadd %s196, 0
          %s202 = smul.addr %s18, 48
          %s203 = smul.addr %s202, 8
          %s204 = scalar_lea.hbm %s0, %s203
          %s205 = sshll.u32 %s204, 4
          %s206 = int_to_ptr.hbm [resolvable:$true] %s205
          %s207 = sshll.u32 %s199, 4
          %s208 = int_to_ptr.vmem [resolvable:$true] %s207
          %213 = dma.hbm_to_vmem [thread:$0]  %s206, 6144, %s208, %s196, 384, 384, 24
        $region32: #{tpu_custom_call.1} parent=27 // pred_fallthru
          _
      $region28: #{tpu_custom_call.1} parent=5 // pred_fallthru
        _
      %p214 = scmp.le.s32.totalorder 1, %s18
      %p215 = scmp.lt.s32.totalorder %s18, 3
      %p216 = pnand %p214, %p215
      %p217 = pneg %p216
      // Predicated region
      $region33: #{tpu_custom_call.1} parent=5 // pred_check
        _
      $region34: #{tpu_custom_call.1} parent=5 // pred_check_branch
        %219 = sbr.rel (%p216) target = $region36
      $region35: #{tpu_custom_call.1} parent=5 // pred_region
        %s220 = ssub.s32 %s18, 1
        %s221 = sand.u32 %s31, 1
        %s222 = scalar_lea.sflag [#allocation3], %s221
        %s223 = sand.u32 %s31, 1
        %s224 = smul.addr %s223, 384
        %s225 = scalar_lea.vmem [#allocation2], %s224
        // Predicated region
        $region37: #{tpu_custom_call.1} parent=35 // pred_check
          %p226 = pneg %p44
        $region38: #{tpu_custom_call.1} parent=35 // pred_check_branch
          %228 = sbr.rel (%p226) target = $region40
        $region39: #{tpu_custom_call.1} parent=35 // pred_region
          %230 = dma.done %s222, 6144
        $region40: #{tpu_custom_call.1} parent=35 // pred_fallthru
          _
        // Predicated region
        $region41: #{tpu_custom_call.1} parent=35 // pred_check
          %p231 = pneg %p65
        $region42: #{tpu_custom_call.1} parent=35 // pred_check_branch
          %233 = sbr.rel (%p231) target = $region44
        $region43: #{tpu_custom_call.1} parent=35 // pred_region
          %235 = dma.done [#allocation6], 27648
        $region44: #{tpu_custom_call.1} parent=35 // pred_fallthru
          _
        // Predicated region
        $region45: #{tpu_custom_call.1} parent=35 // pred_check
          %p236 = pneg %p86
        $region46: #{tpu_custom_call.1} parent=35 // pred_check_branch
          %238 = sbr.rel (%p236) target = $region48
        $region47: #{tpu_custom_call.1} parent=35 // pred_region
          %240 = dma.done [#allocation6], 9216
        $region48: #{tpu_custom_call.1} parent=35 // pred_fallthru
          _
        // Predicated region
        $region49: #{tpu_custom_call.1} parent=35 // pred_check
          %p241 = pneg %p107
        $region50: #{tpu_custom_call.1} parent=35 // pred_check_branch
          %243 = sbr.rel (%p241) target = $region52
        $region51: #{tpu_custom_call.1} parent=35 // pred_region
          %245 = dma.done [#allocation9], 48
        $region52: #{tpu_custom_call.1} parent=35 // pred_fallthru
          _
        %s246 = sand.u32 %s31, 1
        %s247 = scalar_lea.sflag [#allocation3], %s246
        %s248 = sand.u32 %s31, 1
        %s249 = smul.addr %s248, 384
        %s250 = scalar_lea.vmem [#allocation2], %s249
        %p251 = pneg %p44
        %p252 = pneg %p41
        %p253 = pneg %p65
        %p254 = pneg %p62
        %p255 = pneg %p86
        %p256 = pneg %p83
        %p257 = pneg %p107
        %p258 = pneg %p104
        %p259 = pneg %p133
        %p260 = pneg %p130
        %s261 = sand.u32 %s120, 1
        %s262 = scalar_lea.sflag [#allocation4], %s261
        %s263 = sand.u32 %s120, 1
        %s264 = smul.addr %s263, 384
        %s265 = scalar_lea.vmem [#allocation10], %s264
        %v266 = vld [vmem:[%s225] sm:$0xff]
        %v267 = vld [vmem:[%s225 + $0x8] sm:$0xff]
        %v268 = vld [vmem:[%s225 + $0x10] sm:$0xff]
        %v269 = vld [vmem:[%s225 + $0x18] sm:$0xff]
        %v270 = vld [vmem:[%s225 + $0x20] sm:$0xff]
        %v271 = vld [vmem:[%s225 + $0x28] sm:$0xff]
        %v272 = vld [vmem:[%s225 + $0x30] sm:$0xff]
        %v273 = vld [vmem:[%s225 + $0x38] sm:$0xff]
        %v274 = vld [vmem:[%s225 + $0x40] sm:$0xff]
        %v275 = vld [vmem:[%s225 + $0x48] sm:$0xff]
        %v276 = vld [vmem:[%s225 + $0x50] sm:$0xff]
        %v277 = vld [vmem:[%s225 + $0x58] sm:$0xff]
        %v278 = vld [vmem:[%s225 + $0x60] sm:$0xff]
        %v279 = vld [vmem:[%s225 + $0x68] sm:$0xff]
        %v280 = vld [vmem:[%s225 + $0x70] sm:$0xff]
        %v281 = vld [vmem:[%s225 + $0x78] sm:$0xff]
        %v282 = vld [vmem:[%s225 + $0x80] sm:$0xff]
        %v283 = vld [vmem:[%s225 + $0x88] sm:$0xff]
        %v284 = vld [vmem:[%s225 + $0x90] sm:$0xff]
        %v285 = vld [vmem:[%s225 + $0x98] sm:$0xff]
        %v286 = vld [vmem:[%s225 + $0xa0] sm:$0xff]
        %v287 = vld [vmem:[%s225 + $0xa8] sm:$0xff]
        %v288 = vld [vmem:[%s225 + $0xb0] sm:$0xff]
        %v289 = vld [vmem:[%s225 + $0xb8] sm:$0xff]
        %v290 = vld [vmem:[%s225 + $0xc0] sm:$0xff]
        %v291 = vld [vmem:[%s225 + $0xc8] sm:$0xff]
        %v292 = vld [vmem:[%s225 + $0xd0] sm:$0xff]
        %v293 = vld [vmem:[%s225 + $0xd8] sm:$0xff]
        %v294 = vld [vmem:[%s225 + $0xe0] sm:$0xff]
        %v295 = vld [vmem:[%s225 + $0xe8] sm:$0xff]
        %v296 = vld [vmem:[%s225 + $0xf0] sm:$0xff]
        %v297 = vld [vmem:[%s225 + $0xf8] sm:$0xff]
        %v298 = vld [vmem:[%s225 + $0x100] sm:$0xff]
        %v299 = vld [vmem:[%s225 + $0x108] sm:$0xff]
        %v300 = vld [vmem:[%s225 + $0x110] sm:$0xff]
        %v301 = vld [vmem:[%s225 + $0x118] sm:$0xff]
        %v302 = vld [vmem:[%s225 + $0x120] sm:$0xff]
        %v303 = vld [vmem:[%s225 + $0x128] sm:$0xff]
        %v304 = vld [vmem:[%s225 + $0x130] sm:$0xff]
        %v305 = vld [vmem:[%s225 + $0x138] sm:$0xff]
        %v306 = vld [vmem:[%s225 + $0x140] sm:$0xff]
        %v307 = vld [vmem:[%s225 + $0x148] sm:$0xff]
        %v308 = vld [vmem:[%s225 + $0x150] sm:$0xff]
        %v309 = vld [vmem:[%s225 + $0x158] sm:$0xff]
        %v310 = vld [vmem:[%s225 + $0x160] sm:$0xff]
        %v311 = vld [vmem:[%s225 + $0x168] sm:$0xff]
        %v312 = vld [vmem:[%s225 + $0x170] sm:$0xff]
        %v313 = vld [vmem:[%s225 + $0x178] sm:$0xff]
        %v314 = vpack.c.bf16 %v269, %v266
        %v315 = vpack.c.bf16 %v270, %v267
        %v316 = vpack.c.bf16 %v271, %v268
        %v317 = vpack.c.bf16 %v275, %v272
        %v318 = vpack.c.bf16 %v276, %v273
        %v319 = vpack.c.bf16 %v277, %v274
        %v320 = vpack.c.bf16 %v281, %v278
        %v321 = vpack.c.bf16 %v282, %v279
        %v322 = vpack.c.bf16 %v283, %v280
        %v323 = vpack.c.bf16 %v287, %v284
        %v324 = vpack.c.bf16 %v288, %v285
        %v325 = vpack.c.bf16 %v289, %v286
        %v326 = vpack.c.bf16 %v293, %v290
        %v327 = vpack.c.bf16 %v294, %v291
        %v328 = vpack.c.bf16 %v295, %v292
        %v329 = vpack.c.bf16 %v299, %v296
        %v330 = vpack.c.bf16 %v300, %v297
        %v331 = vpack.c.bf16 %v301, %v298
        %v332 = vpack.c.bf16 %v305, %v302
        %v333 = vpack.c.bf16 %v306, %v303
        %v334 = vpack.c.bf16 %v307, %v304
        %v335 = vpack.c.bf16 %v311, %v308
        %v336 = vpack.c.bf16 %v312, %v309
        %v337 = vpack.c.bf16 %v313, %v310
        %v338 = vld [vmem:[#allocation5] sm:$0xff]
        %v339 = vld [vmem:[#allocation5 + $0x8] sm:$0xff]
        %v340 = vld [vmem:[#allocation5 + $0x10] sm:$0xff]
        %v341 = vld [vmem:[#allocation5 + $0x18] sm:$0xff]
        %v342 = vld [vmem:[#allocation5 + $0x20] sm:$0xf]
        %v343 = vld [vmem:[#allocation5 + $0x24] sm:$0xff]
        %v344 = vld [vmem:[#allocation5 + $0x2c] sm:$0xff]
        %v345 = vld [vmem:[#allocation5 + $0x34] sm:$0xff]
        %v346 = vld [vmem:[#allocation5 + $0x3c] sm:$0xff]
        %v347 = vld [vmem:[#allocation5 + $0x44] sm:$0xf]
        %v348 = vld [vmem:[#allocation5 + $0x48] sm:$0xff]
        %v349 = vld [vmem:[#allocation5 + $0x50] sm:$0xff]
        %v350 = vld [vmem:[#allocation5 + $0x58] sm:$0xff]
        %v351 = vld [vmem:[#allocation5 + $0x60] sm:$0xff]
        %v352 = vld [vmem:[#allocation5 + $0x68] sm:$0xf]
        %v353 = vld [vmem:[#allocation5 + $0x6c] sm:$0xff]
        %v354 = vld [vmem:[#allocation5 + $0x74] sm:$0xff]
        %v355 = vld [vmem:[#allocation5 + $0x7c] sm:$0xff]
        %v356 = vld [vmem:[#allocation5 + $0x84] sm:$0xff]
        %v357 = vld [vmem:[#allocation5 + $0x8c] sm:$0xf]
        %v358 = vld [vmem:[#allocation5 + $0x90] sm:$0xff]
        %v359 = vld [vmem:[#allocation5 + $0x98] sm:$0xff]
        %v360 = vld [vmem:[#allocation5 + $0xa0] sm:$0xff]
        %v361 = vld [vmem:[#allocation5 + $0xa8] sm:$0xff]
        %v362 = vld [vmem:[#allocation5 + $0xb0] sm:$0xf]
        %v363 = vld [vmem:[#allocation5 + $0xb4] sm:$0xff]
        %v364 = vld [vmem:[#allocation5 + $0xbc] sm:$0xff]
        %v365 = vld [vmem:[#allocation5 + $0xc4] sm:$0xff]
        %v366 = vld [vmem:[#allocation5 + $0xcc] sm:$0xff]
        %v367 = vld [vmem:[#allocation5 + $0xd4] sm:$0xf]
        %v368 = vld [vmem:[#allocation5 + $0xd8] sm:$0xff]
        %v369 = vld [vmem:[#allocation5 + $0xe0] sm:$0xff]
        %v370 = vld [vmem:[#allocation5 + $0xe8] sm:$0xff]
        %v371 = vld [vmem:[#allocation5 + $0xf0] sm:$0xff]
        %v372 = vld [vmem:[#allocation5 + $0xf8] sm:$0xf]
        %v373 = vld [vmem:[#allocation5 + $0xfc] sm:$0xff]
        %v374 = vld [vmem:[#allocation5 + $0x104] sm:$0xff]
        %v375 = vld [vmem:[#allocation5 + $0x10c] sm:$0xff]
        %v376 = vld [vmem:[#allocation5 + $0x114] sm:$0xff]
        %v377 = vld [vmem:[#allocation5 + $0x11c] sm:$0xf]
        %v378 = vld [vmem:[#allocation5 + $0x120] sm:$0xff]
        %v379 = vld [vmem:[#allocation5 + $0x128] sm:$0xff]
        %v380 = vld [vmem:[#allocation5 + $0x130] sm:$0xff]
        %v381 = vld [vmem:[#allocation5 + $0x138] sm:$0xff]
        %v382 = vld [vmem:[#allocation5 + $0x140] sm:$0xf]
        %v383 = vld [vmem:[#allocation5 + $0x144] sm:$0xff]
        %v384 = vld [vmem:[#allocation5 + $0x14c] sm:$0xff]
        %v385 = vld [vmem:[#allocation5 + $0x154] sm:$0xff]
        %v386 = vld [vmem:[#allocation5 + $0x15c] sm:$0xff]
        %v387 = vld [vmem:[#allocation5 + $0x164] sm:$0xf]
        %v388 = vld [vmem:[#allocation5 + $0x168] sm:$0xff]
        %v389 = vld [vmem:[#allocation5 + $0x170] sm:$0xff]
        %v390 = vld [vmem:[#allocation5 + $0x178] sm:$0xff]
        %v391 = vld [vmem:[#allocation5 + $0x180] sm:$0xff]
        %v392 = vld [vmem:[#allocation5 + $0x188] sm:$0xf]
        %v393 = vld [vmem:[#allocation5 + $0x18c] sm:$0xff]
        %v394 = vld [vmem:[#allocation5 + $0x194] sm:$0xff]
        %v395 = vld [vmem:[#allocation5 + $0x19c] sm:$0xff]
        %v396 = vld [vmem:[#allocation5 + $0x1a4] sm:$0xff]
        %v397 = vld [vmem:[#allocation5 + $0x1ac] sm:$0xf]
        %v398 = vld [vmem:[#allocation5 + $0x1b0] sm:$0xff]
        %v399 = vld [vmem:[#allocation5 + $0x1b8] sm:$0xff]
        %v400 = vld [vmem:[#allocation5 + $0x1c0] sm:$0xff]
        %v401 = vld [vmem:[#allocation5 + $0x1c8] sm:$0xff]
        %v402 = vld [vmem:[#allocation5 + $0x1d0] sm:$0xf]
        %v403 = vld [vmem:[#allocation5 + $0x1d4] sm:$0xff]
        %v404 = vld [vmem:[#allocation5 + $0x1dc] sm:$0xff]
        %v405 = vld [vmem:[#allocation5 + $0x1e4] sm:$0xff]
        %v406 = vld [vmem:[#allocation5 + $0x1ec] sm:$0xff]
        %v407 = vld [vmem:[#allocation5 + $0x1f4] sm:$0xf]
        %v408 = vld [vmem:[#allocation5 + $0x1f8] sm:$0xff]
        %v409 = vld [vmem:[#allocation5 + $0x200] sm:$0xff]
        %v410 = vld [vmem:[#allocation5 + $0x208] sm:$0xff]
        %v411 = vld [vmem:[#allocation5 + $0x210] sm:$0xff]
        %v412 = vld [vmem:[#allocation5 + $0x218] sm:$0xf]
        %v413 = vld [vmem:[#allocation5 + $0x21c] sm:$0xff]
        %v414 = vld [vmem:[#allocation5 + $0x224] sm:$0xff]
        %v415 = vld [vmem:[#allocation5 + $0x22c] sm:$0xff]
        %v416 = vld [vmem:[#allocation5 + $0x234] sm:$0xff]
        %v417 = vld [vmem:[#allocation5 + $0x23c] sm:$0xf]
        %v418 = vld [vmem:[#allocation5 + $0x240] sm:$0xff]
        %v419 = vld [vmem:[#allocation5 + $0x248] sm:$0xff]
        %v420 = vld [vmem:[#allocation5 + $0x250] sm:$0xff]
        %v421 = vld [vmem:[#allocation5 + $0x258] sm:$0xff]
        %v422 = vld [vmem:[#allocation5 + $0x260] sm:$0xf]
        %v423 = vld [vmem:[#allocation5 + $0x264] sm:$0xff]
        %v424 = vld [vmem:[#allocation5 + $0x26c] sm:$0xff]
        %v425 = vld [vmem:[#allocation5 + $0x274] sm:$0xff]
        %v426 = vld [vmem:[#allocation5 + $0x27c] sm:$0xff]
        %v427 = vld [vmem:[#allocation5 + $0x284] sm:$0xf]
        %v428 = vld [vmem:[#allocation5 + $0x288] sm:$0xff]
        %v429 = vld [vmem:[#allocation5 + $0x290] sm:$0xff]
        %v430 = vld [vmem:[#allocation5 + $0x298] sm:$0xff]
        %v431 = vld [vmem:[#allocation5 + $0x2a0] sm:$0xff]
        %v432 = vld [vmem:[#allocation5 + $0x2a8] sm:$0xf]
        %v433 = vld [vmem:[#allocation5 + $0x2ac] sm:$0xff]
        %v434 = vld [vmem:[#allocation5 + $0x2b4] sm:$0xff]
        %v435 = vld [vmem:[#allocation5 + $0x2bc] sm:$0xff]
        %v436 = vld [vmem:[#allocation5 + $0x2c4] sm:$0xff]
        %v437 = vld [vmem:[#allocation5 + $0x2cc] sm:$0xf]
        %v438 = vld [vmem:[#allocation5 + $0x2d0] sm:$0xff]
        %v439 = vld [vmem:[#allocation5 + $0x2d8] sm:$0xff]
        %v440 = vld [vmem:[#allocation5 + $0x2e0] sm:$0xff]
        %v441 = vld [vmem:[#allocation5 + $0x2e8] sm:$0xff]
        %v442 = vld [vmem:[#allocation5 + $0x2f0] sm:$0xf]
        %v443 = vld [vmem:[#allocation5 + $0x2f4] sm:$0xff]
        %v444 = vld [vmem:[#allocation5 + $0x2fc] sm:$0xff]
        %v445 = vld [vmem:[#allocation5 + $0x304] sm:$0xff]
        %v446 = vld [vmem:[#allocation5 + $0x30c] sm:$0xff]
        %v447 = vld [vmem:[#allocation5 + $0x314] sm:$0xf]
        %v448 = vld [vmem:[#allocation5 + $0x318] sm:$0xff]
        %v449 = vld [vmem:[#allocation5 + $0x320] sm:$0xff]
        %v450 = vld [vmem:[#allocation5 + $0x328] sm:$0xff]
        %v451 = vld [vmem:[#allocation5 + $0x330] sm:$0xff]
        %v452 = vld [vmem:[#allocation5 + $0x338] sm:$0xf]
        %v453 = vld [vmem:[#allocation5 + $0x33c] sm:$0xff]
        %v454 = vld [vmem:[#allocation5 + $0x344] sm:$0xff]
        %v455 = vld [vmem:[#allocation5 + $0x34c] sm:$0xff]
        %v456 = vld [vmem:[#allocation5 + $0x354] sm:$0xff]
        %v457 = vld [vmem:[#allocation5 + $0x35c] sm:$0xf]
        %v458 = vld [vmem:[#allocation5 + $0x360] sm:$0xff]
        %v459 = vld [vmem:[#allocation5 + $0x368] sm:$0xff]
        %v460 = vld [vmem:[#allocation5 + $0x370] sm:$0xff]
        %v461 = vld [vmem:[#allocation5 + $0x378] sm:$0xff]
        %v462 = vld [vmem:[#allocation5 + $0x380] sm:$0xf]
        %v463 = vld [vmem:[#allocation5 + $0x384] sm:$0xff]
        %v464 = vld [vmem:[#allocation5 + $0x38c] sm:$0xff]
        %v465 = vld [vmem:[#allocation5 + $0x394] sm:$0xff]
        %v466 = vld [vmem:[#allocation5 + $0x39c] sm:$0xff]
        %v467 = vld [vmem:[#allocation5 + $0x3a4] sm:$0xf]
        %v468 = vld [vmem:[#allocation5 + $0x3a8] sm:$0xff]
        %v469 = vld [vmem:[#allocation5 + $0x3b0] sm:$0xff]
        %v470 = vld [vmem:[#allocation5 + $0x3b8] sm:$0xff]
        %v471 = vld [vmem:[#allocation5 + $0x3c0] sm:$0xff]
        %v472 = vld [vmem:[#allocation5 + $0x3c8] sm:$0xf]
        %v473 = vld [vmem:[#allocation5 + $0x3cc] sm:$0xff]
        %v474 = vld [vmem:[#allocation5 + $0x3d4] sm:$0xff]
        %v475 = vld [vmem:[#allocation5 + $0x3dc] sm:$0xff]
        %v476 = vld [vmem:[#allocation5 + $0x3e4] sm:$0xff]
        %v477 = vld [vmem:[#allocation5 + $0x3ec] sm:$0xf]
        %v478 = vld [vmem:[#allocation5 + $0x3f0] sm:$0xff]
        %v479 = vld [vmem:[#allocation5 + $0x3f8] sm:$0xff]
        %v480 = vld [vmem:[#allocation5 + $0x400] sm:$0xff]
        %v481 = vld [vmem:[#allocation5 + $0x408] sm:$0xff]
        %v482 = vld [vmem:[#allocation5 + $0x410] sm:$0xf]
        %v483 = vld [vmem:[#allocation5 + $0x414] sm:$0xff]
        %v484 = vld [vmem:[#allocation5 + $0x41c] sm:$0xff]
        %v485 = vld [vmem:[#allocation5 + $0x424] sm:$0xff]
        %v486 = vld [vmem:[#allocation5 + $0x42c] sm:$0xff]
        %v487 = vld [vmem:[#allocation5 + $0x434] sm:$0xf]
        %v488 = vld [vmem:[#allocation5 + $0x438] sm:$0xff]
        %v489 = vld [vmem:[#allocation5 + $0x440] sm:$0xff]
        %v490 = vld [vmem:[#allocation5 + $0x448] sm:$0xff]
        %v491 = vld [vmem:[#allocation5 + $0x450] sm:$0xff]
        %v492 = vld [vmem:[#allocation5 + $0x458] sm:$0xf]
        %v493 = vld [vmem:[#allocation5 + $0x45c] sm:$0xff]
        %v494 = vld [vmem:[#allocation5 + $0x464] sm:$0xff]
        %v495 = vld [vmem:[#allocation5 + $0x46c] sm:$0xff]
        %v496 = vld [vmem:[#allocation5 + $0x474] sm:$0xff]
        %v497 = vld [vmem:[#allocation5 + $0x47c] sm:$0xf]
        %v498 = vld [vmem:[#allocation5 + $0x480] sm:$0xff]
        %v499 = vld [vmem:[#allocation5 + $0x488] sm:$0xff]
        %v500 = vld [vmem:[#allocation5 + $0x490] sm:$0xff]
        %v501 = vld [vmem:[#allocation5 + $0x498] sm:$0xff]
        %v502 = vld [vmem:[#allocation5 + $0x4a0] sm:$0xf]
        %v503 = vld [vmem:[#allocation5 + $0x4a4] sm:$0xff]
        %v504 = vld [vmem:[#allocation5 + $0x4ac] sm:$0xff]
        %v505 = vld [vmem:[#allocation5 + $0x4b4] sm:$0xff]
        %v506 = vld [vmem:[#allocation5 + $0x4bc] sm:$0xff]
        %v507 = vld [vmem:[#allocation5 + $0x4c4] sm:$0xf]
        %v508 = vld [vmem:[#allocation5 + $0x4c8] sm:$0xff]
        %v509 = vld [vmem:[#allocation5 + $0x4d0] sm:$0xff]
        %v510 = vld [vmem:[#allocation5 + $0x4d8] sm:$0xff]
        %v511 = vld [vmem:[#allocation5 + $0x4e0] sm:$0xff]
        %v512 = vld [vmem:[#allocation5 + $0x4e8] sm:$0xf]
        %v513 = vld [vmem:[#allocation5 + $0x4ec] sm:$0xff]
        %v514 = vld [vmem:[#allocation5 + $0x4f4] sm:$0xff]
        %v515 = vld [vmem:[#allocation5 + $0x4fc] sm:$0xff]
        %v516 = vld [vmem:[#allocation5 + $0x504] sm:$0xff]
        %v517 = vld [vmem:[#allocation5 + $0x50c] sm:$0xf]
        %v518 = vld [vmem:[#allocation5 + $0x510] sm:$0xff]
        %v519 = vld [vmem:[#allocation5 + $0x518] sm:$0xff]
        %v520 = vld [vmem:[#allocation5 + $0x520] sm:$0xff]
        %v521 = vld [vmem:[#allocation5 + $0x528] sm:$0xff]
        %v522 = vld [vmem:[#allocation5 + $0x530] sm:$0xf]
        %v523 = vld [vmem:[#allocation5 + $0x534] sm:$0xff]
        %v524 = vld [vmem:[#allocation5 + $0x53c] sm:$0xff]
        %v525 = vld [vmem:[#allocation5 + $0x544] sm:$0xff]
        %v526 = vld [vmem:[#allocation5 + $0x54c] sm:$0xff]
        %v527 = vld [vmem:[#allocation5 + $0x554] sm:$0xf]
        %v528 = vld [vmem:[#allocation5 + $0x558] sm:$0xff]
        %v529 = vld [vmem:[#allocation5 + $0x560] sm:$0xff]
        %v530 = vld [vmem:[#allocation5 + $0x568] sm:$0xff]
        %v531 = vld [vmem:[#allocation5 + $0x570] sm:$0xff]
        %v532 = vld [vmem:[#allocation5 + $0x578] sm:$0xf]
        %v533 = vld [vmem:[#allocation5 + $0x57c] sm:$0xff]
        %v534 = vld [vmem:[#allocation5 + $0x584] sm:$0xff]
        %v535 = vld [vmem:[#allocation5 + $0x58c] sm:$0xff]
        %v536 = vld [vmem:[#allocation5 + $0x594] sm:$0xff]
        %v537 = vld [vmem:[#allocation5 + $0x59c] sm:$0xf]
        %v538 = vld [vmem:[#allocation5 + $0x5a0] sm:$0xff]
        %v539 = vld [vmem:[#allocation5 + $0x5a8] sm:$0xff]
        %v540 = vld [vmem:[#allocation5 + $0x5b0] sm:$0xff]
        %v541 = vld [vmem:[#allocation5 + $0x5b8] sm:$0xff]
        %v542 = vld [vmem:[#allocation5 + $0x5c0] sm:$0xf]
        %v543 = vld [vmem:[#allocation5 + $0x5c4] sm:$0xff]
        %v544 = vld [vmem:[#allocation5 + $0x5cc] sm:$0xff]
        %v545 = vld [vmem:[#allocation5 + $0x5d4] sm:$0xff]
        %v546 = vld [vmem:[#allocation5 + $0x5dc] sm:$0xff]
        %v547 = vld [vmem:[#allocation5 + $0x5e4] sm:$0xf]
        %v548 = vld [vmem:[#allocation5 + $0x5e8] sm:$0xff]
        %v549 = vld [vmem:[#allocation5 + $0x5f0] sm:$0xff]
        %v550 = vld [vmem:[#allocation5 + $0x5f8] sm:$0xff]
        %v551 = vld [vmem:[#allocation5 + $0x600] sm:$0xff]
        %v552 = vld [vmem:[#allocation5 + $0x608] sm:$0xf]
        %v553 = vld [vmem:[#allocation5 + $0x60c] sm:$0xff]
        %v554 = vld [vmem:[#allocation5 + $0x614] sm:$0xff]
        %v555 = vld [vmem:[#allocation5 + $0x61c] sm:$0xff]
        %v556 = vld [vmem:[#allocation5 + $0x624] sm:$0xff]
        %v557 = vld [vmem:[#allocation5 + $0x62c] sm:$0xf]
        %v558 = vld [vmem:[#allocation5 + $0x630] sm:$0xff]
        %v559 = vld [vmem:[#allocation5 + $0x638] sm:$0xff]
        %v560 = vld [vmem:[#allocation5 + $0x640] sm:$0xff]
        %v561 = vld [vmem:[#allocation5 + $0x648] sm:$0xff]
        %v562 = vld [vmem:[#allocation5 + $0x650] sm:$0xf]
        %v563 = vld [vmem:[#allocation5 + $0x654] sm:$0xff]
        %v564 = vld [vmem:[#allocation5 + $0x65c] sm:$0xff]
        %v565 = vld [vmem:[#allocation5 + $0x664] sm:$0xff]
        %v566 = vld [vmem:[#allocation5 + $0x66c] sm:$0xff]
        %v567 = vld [vmem:[#allocation5 + $0x674] sm:$0xf]
        %v568 = vld [vmem:[#allocation5 + $0x678] sm:$0xff]
        %v569 = vld [vmem:[#allocation5 + $0x680] sm:$0xff]
        %v570 = vld [vmem:[#allocation5 + $0x688] sm:$0xff]
        %v571 = vld [vmem:[#allocation5 + $0x690] sm:$0xff]
        %v572 = vld [vmem:[#allocation5 + $0x698] sm:$0xf]
        %v573 = vld [vmem:[#allocation5 + $0x69c] sm:$0xff]
        %v574 = vld [vmem:[#allocation5 + $0x6a4] sm:$0xff]
        %v575 = vld [vmem:[#allocation5 + $0x6ac] sm:$0xff]
        %v576 = vld [vmem:[#allocation5 + $0x6b4] sm:$0xff]
        %v577 = vld [vmem:[#allocation5 + $0x6bc] sm:$0xf]
        %v818 = vunpack.c.l.b16 %v338
        %v819 = vunpack.c.h.b16 %v338
        %v820 = vunpack.c.l.b16 %v339
        %v821 = vunpack.c.h.b16 %v339
        %v822 = vunpack.c.l.b16 %v340
        %v823 = vunpack.c.h.b16 %v340
        %v824 = vunpack.c.l.b16 %v341
        %v825 = vunpack.c.h.b16 %v341
        %v826 = vunpack.c.l.b16 %v342
        %v827 = vunpack.c.l.b16 %v343
        %v828 = vunpack.c.h.b16 %v343
        %v829 = vunpack.c.l.b16 %v344
        %v830 = vunpack.c.h.b16 %v344
        %v831 = vunpack.c.l.b16 %v345
        %v832 = vunpack.c.h.b16 %v345
        %v833 = vunpack.c.l.b16 %v346
        %v834 = vunpack.c.h.b16 %v346
        %v835 = vunpack.c.l.b16 %v347
        %v836 = vunpack.c.l.b16 %v348
        %v837 = vunpack.c.h.b16 %v348
        %v838 = vunpack.c.l.b16 %v349
        %v839 = vunpack.c.h.b16 %v349
        %v840 = vunpack.c.l.b16 %v350
        %v841 = vunpack.c.h.b16 %v350
        %v842 = vunpack.c.l.b16 %v351
        %v843 = vunpack.c.h.b16 %v351
        %v844 = vunpack.c.l.b16 %v352
        %v845 = vunpack.c.l.b16 %v353
        %v846 = vunpack.c.h.b16 %v353
        %v847 = vunpack.c.l.b16 %v354
        %v848 = vunpack.c.h.b16 %v354
        %v849 = vunpack.c.l.b16 %v355
        %v850 = vunpack.c.h.b16 %v355
        %v851 = vunpack.c.l.b16 %v356
        %v852 = vunpack.c.h.b16 %v356
        %v853 = vunpack.c.l.b16 %v357
        %v854 = vunpack.c.l.b16 %v358
        %v855 = vunpack.c.h.b16 %v358
        %v856 = vunpack.c.l.b16 %v359
        %v857 = vunpack.c.h.b16 %v359
        %v858 = vunpack.c.l.b16 %v360
        %v859 = vunpack.c.h.b16 %v360
        %v860 = vunpack.c.l.b16 %v361
        %v861 = vunpack.c.h.b16 %v361
        %v862 = vunpack.c.l.b16 %v362
        %v863 = vunpack.c.l.b16 %v363
        %v864 = vunpack.c.h.b16 %v363
        %v865 = vunpack.c.l.b16 %v364
        %v866 = vunpack.c.h.b16 %v364
        %v867 = vunpack.c.l.b16 %v365
        %v868 = vunpack.c.h.b16 %v365
        %v869 = vunpack.c.l.b16 %v366
        %v870 = vunpack.c.h.b16 %v366
        %v871 = vunpack.c.l.b16 %v367
        %v872 = vunpack.c.l.b16 %v368
        %v873 = vunpack.c.h.b16 %v368
        %v874 = vunpack.c.l.b16 %v369
        %v875 = vunpack.c.h.b16 %v369
        %v876 = vunpack.c.l.b16 %v370
        %v877 = vunpack.c.h.b16 %v370
        %v878 = vunpack.c.l.b16 %v371
        %v879 = vunpack.c.h.b16 %v371
        %v880 = vunpack.c.l.b16 %v372
        %v881 = vunpack.c.l.b16 %v373
        %v882 = vunpack.c.h.b16 %v373
        %v883 = vunpack.c.l.b16 %v374
        %v884 = vunpack.c.h.b16 %v374
        %v885 = vunpack.c.l.b16 %v375
        %v886 = vunpack.c.h.b16 %v375
        %v887 = vunpack.c.l.b16 %v376
        %v888 = vunpack.c.h.b16 %v376
        %v889 = vunpack.c.l.b16 %v377
        %v890 = vunpack.c.l.b16 %v378
        %v891 = vunpack.c.h.b16 %v378
        %v892 = vunpack.c.l.b16 %v379
        %v893 = vunpack.c.h.b16 %v379
        %v894 = vunpack.c.l.b16 %v380
        %v895 = vunpack.c.h.b16 %v380
        %v896 = vunpack.c.l.b16 %v381
        %v897 = vunpack.c.h.b16 %v381
        %v898 = vunpack.c.l.b16 %v382
        %v899 = vunpack.c.l.b16 %v383
        %v900 = vunpack.c.h.b16 %v383
        %v901 = vunpack.c.l.b16 %v384
        %v902 = vunpack.c.h.b16 %v384
        %v903 = vunpack.c.l.b16 %v385
        %v904 = vunpack.c.h.b16 %v385
        %v905 = vunpack.c.l.b16 %v386
        %v906 = vunpack.c.h.b16 %v386
        %v907 = vunpack.c.l.b16 %v387
        %v908 = vunpack.c.l.b16 %v388
        %v909 = vunpack.c.h.b16 %v388
        %v910 = vunpack.c.l.b16 %v389
        %v911 = vunpack.c.h.b16 %v389
        %v912 = vunpack.c.l.b16 %v390
        %v913 = vunpack.c.h.b16 %v390
        %v914 = vunpack.c.l.b16 %v391
        %v915 = vunpack.c.h.b16 %v391
        %v916 = vunpack.c.l.b16 %v392
        %v917 = vunpack.c.l.b16 %v393
        %v918 = vunpack.c.h.b16 %v393
        %v919 = vunpack.c.l.b16 %v394
        %v920 = vunpack.c.h.b16 %v394
        %v921 = vunpack.c.l.b16 %v395
        %v922 = vunpack.c.h.b16 %v395
        %v923 = vunpack.c.l.b16 %v396
        %v924 = vunpack.c.h.b16 %v396
        %v925 = vunpack.c.l.b16 %v397
        %v926 = vunpack.c.l.b16 %v398
        %v927 = vunpack.c.h.b16 %v398
        %v928 = vunpack.c.l.b16 %v399
        %v929 = vunpack.c.h.b16 %v399
        %v930 = vunpack.c.l.b16 %v400
        %v931 = vunpack.c.h.b16 %v400
        %v932 = vunpack.c.l.b16 %v401
        %v933 = vunpack.c.h.b16 %v401
        %v934 = vunpack.c.l.b16 %v402
        %v935 = vunpack.c.l.b16 %v403
        %v936 = vunpack.c.h.b16 %v403
        %v937 = vunpack.c.l.b16 %v404
        %v938 = vunpack.c.h.b16 %v404
        %v939 = vunpack.c.l.b16 %v405
        %v940 = vunpack.c.h.b16 %v405
        %v941 = vunpack.c.l.b16 %v406
        %v942 = vunpack.c.h.b16 %v406
        %v943 = vunpack.c.l.b16 %v407
        %v944 = vunpack.c.l.b16 %v408
        %v945 = vunpack.c.h.b16 %v408
        %v946 = vunpack.c.l.b16 %v409
        %v947 = vunpack.c.h.b16 %v409
        %v948 = vunpack.c.l.b16 %v410
        %v949 = vunpack.c.h.b16 %v410
        %v950 = vunpack.c.l.b16 %v411
        %v951 = vunpack.c.h.b16 %v411
        %v952 = vunpack.c.l.b16 %v412
        %v953 = vunpack.c.l.b16 %v413
        %v954 = vunpack.c.h.b16 %v413
        %v955 = vunpack.c.l.b16 %v414
        %v956 = vunpack.c.h.b16 %v414
        %v957 = vunpack.c.l.b16 %v415
        %v958 = vunpack.c.h.b16 %v415
        %v959 = vunpack.c.l.b16 %v416
        %v960 = vunpack.c.h.b16 %v416
        %v961 = vunpack.c.l.b16 %v417
        %v962 = vunpack.c.l.b16 %v418
        %v963 = vunpack.c.h.b16 %v418
        %v964 = vunpack.c.l.b16 %v419
        %v965 = vunpack.c.h.b16 %v419
        %v966 = vunpack.c.l.b16 %v420
        %v967 = vunpack.c.h.b16 %v420
        %v968 = vunpack.c.l.b16 %v421
        %v969 = vunpack.c.h.b16 %v421
        %v970 = vunpack.c.l.b16 %v422
        %v971 = vunpack.c.l.b16 %v423
        %v972 = vunpack.c.h.b16 %v423
        %v973 = vunpack.c.l.b16 %v424
        %v974 = vunpack.c.h.b16 %v424
        %v975 = vunpack.c.l.b16 %v425
        %v976 = vunpack.c.h.b16 %v425
        %v977 = vunpack.c.l.b16 %v426
        %v978 = vunpack.c.h.b16 %v426
        %v979 = vunpack.c.l.b16 %v427
        %v980 = vunpack.c.l.b16 %v428
        %v981 = vunpack.c.h.b16 %v428
        %v982 = vunpack.c.l.b16 %v429
        %v983 = vunpack.c.h.b16 %v429
        %v984 = vunpack.c.l.b16 %v430
        %v985 = vunpack.c.h.b16 %v430
        %v986 = vunpack.c.l.b16 %v431
        %v987 = vunpack.c.h.b16 %v431
        %v988 = vunpack.c.l.b16 %v432
        %v989 = vunpack.c.l.b16 %v433
        %v990 = vunpack.c.h.b16 %v433
        %v991 = vunpack.c.l.b16 %v434
        %v992 = vunpack.c.h.b16 %v434
        %v993 = vunpack.c.l.b16 %v435
        %v994 = vunpack.c.h.b16 %v435
        %v995 = vunpack.c.l.b16 %v436
        %v996 = vunpack.c.h.b16 %v436
        %v997 = vunpack.c.l.b16 %v437
        %v998 = vunpack.c.l.b16 %v438
        %v999 = vunpack.c.h.b16 %v438
        %v1000 = vunpack.c.l.b16 %v439
        %v1001 = vunpack.c.h.b16 %v439
        %v1002 = vunpack.c.l.b16 %v440
        %v1003 = vunpack.c.h.b16 %v440
        %v1004 = vunpack.c.l.b16 %v441
        %v1005 = vunpack.c.h.b16 %v441
        %v1006 = vunpack.c.l.b16 %v442
        %v1007 = vunpack.c.l.b16 %v443
        %v1008 = vunpack.c.h.b16 %v443
        %v1009 = vunpack.c.l.b16 %v444
        %v1010 = vunpack.c.h.b16 %v444
        %v1011 = vunpack.c.l.b16 %v445
        %v1012 = vunpack.c.h.b16 %v445
        %v1013 = vunpack.c.l.b16 %v446
        %v1014 = vunpack.c.h.b16 %v446
        %v1015 = vunpack.c.l.b16 %v447
        %v1016 = vunpack.c.l.b16 %v448
        %v1017 = vunpack.c.h.b16 %v448
        %v1018 = vunpack.c.l.b16 %v449
        %v1019 = vunpack.c.h.b16 %v449
        %v1020 = vunpack.c.l.b16 %v450
        %v1021 = vunpack.c.h.b16 %v450
        %v1022 = vunpack.c.l.b16 %v451
        %v1023 = vunpack.c.h.b16 %v451
        %v1024 = vunpack.c.l.b16 %v452
        %v1025 = vunpack.c.l.b16 %v453
        %v1026 = vunpack.c.h.b16 %v453
        %v1027 = vunpack.c.l.b16 %v454
        %v1028 = vunpack.c.h.b16 %v454
        %v1029 = vunpack.c.l.b16 %v455
        %v1030 = vunpack.c.h.b16 %v455
        %v1031 = vunpack.c.l.b16 %v456
        %v1032 = vunpack.c.h.b16 %v456
        %v1033 = vunpack.c.l.b16 %v457
        %v1034 = vunpack.c.l.b16 %v458
        %v1035 = vunpack.c.h.b16 %v458
        %v1036 = vunpack.c.l.b16 %v459
        %v1037 = vunpack.c.h.b16 %v459
        %v1038 = vunpack.c.l.b16 %v460
        %v1039 = vunpack.c.h.b16 %v460
        %v1040 = vunpack.c.l.b16 %v461
        %v1041 = vunpack.c.h.b16 %v461
        %v1042 = vunpack.c.l.b16 %v462
        %v1043 = vunpack.c.l.b16 %v463
        %v1044 = vunpack.c.h.b16 %v463
        %v1045 = vunpack.c.l.b16 %v464
        %v1046 = vunpack.c.h.b16 %v464
        %v1047 = vunpack.c.l.b16 %v465
        %v1048 = vunpack.c.h.b16 %v465
        %v1049 = vunpack.c.l.b16 %v466
        %v1050 = vunpack.c.h.b16 %v466
        %v1051 = vunpack.c.l.b16 %v467
        %v1052 = vunpack.c.l.b16 %v468
        %v1053 = vunpack.c.h.b16 %v468
        %v1054 = vunpack.c.l.b16 %v469
        %v1055 = vunpack.c.h.b16 %v469
        %v1056 = vunpack.c.l.b16 %v470
        %v1057 = vunpack.c.h.b16 %v470
        %v1058 = vunpack.c.l.b16 %v471
        %v1059 = vunpack.c.h.b16 %v471
        %v1060 = vunpack.c.l.b16 %v472
        %v1061 = vunpack.c.l.b16 %v473
        %v1062 = vunpack.c.h.b16 %v473
        %v1063 = vunpack.c.l.b16 %v474
        %v1064 = vunpack.c.h.b16 %v474
        %v1065 = vunpack.c.l.b16 %v475
        %v1066 = vunpack.c.h.b16 %v475
        %v1067 = vunpack.c.l.b16 %v476
        %v1068 = vunpack.c.h.b16 %v476
        %v1069 = vunpack.c.l.b16 %v477
        %v1070 = vunpack.c.l.b16 %v478
        %v1071 = vunpack.c.h.b16 %v478
        %v1072 = vunpack.c.l.b16 %v479
        %v1073 = vunpack.c.h.b16 %v479
        %v1074 = vunpack.c.l.b16 %v480
        %v1075 = vunpack.c.h.b16 %v480
        %v1076 = vunpack.c.l.b16 %v481
        %v1077 = vunpack.c.h.b16 %v481
        %v1078 = vunpack.c.l.b16 %v482
        %v1079 = vunpack.c.l.b16 %v483
        %v1080 = vunpack.c.h.b16 %v483
        %v1081 = vunpack.c.l.b16 %v484
        %v1082 = vunpack.c.h.b16 %v484
        %v1083 = vunpack.c.l.b16 %v485
        %v1084 = vunpack.c.h.b16 %v485
        %v1085 = vunpack.c.l.b16 %v486
        %v1086 = vunpack.c.h.b16 %v486
        %v1087 = vunpack.c.l.b16 %v487
        %v1088 = vunpack.c.l.b16 %v488
        %v1089 = vunpack.c.h.b16 %v488
        %v1090 = vunpack.c.l.b16 %v489
        %v1091 = vunpack.c.h.b16 %v489
        %v1092 = vunpack.c.l.b16 %v490
        %v1093 = vunpack.c.h.b16 %v490
        %v1094 = vunpack.c.l.b16 %v491
        %v1095 = vunpack.c.h.b16 %v491
        %v1096 = vunpack.c.l.b16 %v492
        %v1097 = vunpack.c.l.b16 %v493
        %v1098 = vunpack.c.h.b16 %v493
        %v1099 = vunpack.c.l.b16 %v494
        %v1100 = vunpack.c.h.b16 %v494
        %v1101 = vunpack.c.l.b16 %v495
        %v1102 = vunpack.c.h.b16 %v495
        %v1103 = vunpack.c.l.b16 %v496
        %v1104 = vunpack.c.h.b16 %v496
        %v1105 = vunpack.c.l.b16 %v497
        %v1106 = vunpack.c.l.b16 %v498
        %v1107 = vunpack.c.h.b16 %v498
        %v1108 = vunpack.c.l.b16 %v499
        %v1109 = vunpack.c.h.b16 %v499
        %v1110 = vunpack.c.l.b16 %v500
        %v1111 = vunpack.c.h.b16 %v500
        %v1112 = vunpack.c.l.b16 %v501
        %v1113 = vunpack.c.h.b16 %v501
        %v1114 = vunpack.c.l.b16 %v502
        %v1115 = vunpack.c.l.b16 %v503
        %v1116 = vunpack.c.h.b16 %v503
        %v1117 = vunpack.c.l.b16 %v504
        %v1118 = vunpack.c.h.b16 %v504
        %v1119 = vunpack.c.l.b16 %v505
        %v1120 = vunpack.c.h.b16 %v505
        %v1121 = vunpack.c.l.b16 %v506
        %v1122 = vunpack.c.h.b16 %v506
        %v1123 = vunpack.c.l.b16 %v507
        %v1124 = vunpack.c.l.b16 %v508
        %v1125 = vunpack.c.h.b16 %v508
        %v1126 = vunpack.c.l.b16 %v509
        %v1127 = vunpack.c.h.b16 %v509
        %v1128 = vunpack.c.l.b16 %v510
        %v1129 = vunpack.c.h.b16 %v510
        %v1130 = vunpack.c.l.b16 %v511
        %v1131 = vunpack.c.h.b16 %v511
        %v1132 = vunpack.c.l.b16 %v512
        %v1133 = vunpack.c.l.b16 %v513
        %v1134 = vunpack.c.h.b16 %v513
        %v1135 = vunpack.c.l.b16 %v514
        %v1136 = vunpack.c.h.b16 %v514
        %v1137 = vunpack.c.l.b16 %v515
        %v1138 = vunpack.c.h.b16 %v515
        %v1139 = vunpack.c.l.b16 %v516
        %v1140 = vunpack.c.h.b16 %v516
        %v1141 = vunpack.c.l.b16 %v517
        %v1142 = vunpack.c.l.b16 %v518
        %v1143 = vunpack.c.h.b16 %v518
        %v1144 = vunpack.c.l.b16 %v519
        %v1145 = vunpack.c.h.b16 %v519
        %v1146 = vunpack.c.l.b16 %v520
        %v1147 = vunpack.c.h.b16 %v520
        %v1148 = vunpack.c.l.b16 %v521
        %v1149 = vunpack.c.h.b16 %v521
        %v1150 = vunpack.c.l.b16 %v522
        %v1151 = vunpack.c.l.b16 %v523
        %v1152 = vunpack.c.h.b16 %v523
        %v1153 = vunpack.c.l.b16 %v524
        %v1154 = vunpack.c.h.b16 %v524
        %v1155 = vunpack.c.l.b16 %v525
        %v1156 = vunpack.c.h.b16 %v525
        %v1157 = vunpack.c.l.b16 %v526
        %v1158 = vunpack.c.h.b16 %v526
        %v1159 = vunpack.c.l.b16 %v527
        %v1160 = vunpack.c.l.b16 %v528
        %v1161 = vunpack.c.h.b16 %v528
        %v1162 = vunpack.c.l.b16 %v529
        %v1163 = vunpack.c.h.b16 %v529
        %v1164 = vunpack.c.l.b16 %v530
        %v1165 = vunpack.c.h.b16 %v530
        %v1166 = vunpack.c.l.b16 %v531
        %v1167 = vunpack.c.h.b16 %v531
        %v1168 = vunpack.c.l.b16 %v532
        %v1169 = vunpack.c.l.b16 %v533
        %v1170 = vunpack.c.h.b16 %v533
        %v1171 = vunpack.c.l.b16 %v534
        %v1172 = vunpack.c.h.b16 %v534
        %v1173 = vunpack.c.l.b16 %v535
        %v1174 = vunpack.c.h.b16 %v535
        %v1175 = vunpack.c.l.b16 %v536
        %v1176 = vunpack.c.h.b16 %v536
        %v1177 = vunpack.c.l.b16 %v537
        %v1178 = vunpack.c.l.b16 %v538
        %v1179 = vunpack.c.h.b16 %v538
        %v1180 = vunpack.c.l.b16 %v539
        %v1181 = vunpack.c.h.b16 %v539
        %v1182 = vunpack.c.l.b16 %v540
        %v1183 = vunpack.c.h.b16 %v540
        %v1184 = vunpack.c.l.b16 %v541
        %v1185 = vunpack.c.h.b16 %v541
        %v1186 = vunpack.c.l.b16 %v542
        %v1187 = vunpack.c.l.b16 %v543
        %v1188 = vunpack.c.h.b16 %v543
        %v1189 = vunpack.c.l.b16 %v544
        %v1190 = vunpack.c.h.b16 %v544
        %v1191 = vunpack.c.l.b16 %v545
        %v1192 = vunpack.c.h.b16 %v545
        %v1193 = vunpack.c.l.b16 %v546
        %v1194 = vunpack.c.h.b16 %v546
        %v1195 = vunpack.c.l.b16 %v547
        %v1196 = vunpack.c.l.b16 %v548
        %v1197 = vunpack.c.h.b16 %v548
        %v1198 = vunpack.c.l.b16 %v549
        %v1199 = vunpack.c.h.b16 %v549
        %v1200 = vunpack.c.l.b16 %v550
        %v1201 = vunpack.c.h.b16 %v550
        %v1202 = vunpack.c.l.b16 %v551
        %v1203 = vunpack.c.h.b16 %v551
        %v1204 = vunpack.c.l.b16 %v552
        %v1205 = vunpack.c.l.b16 %v553
        %v1206 = vunpack.c.h.b16 %v553
        %v1207 = vunpack.c.l.b16 %v554
        %v1208 = vunpack.c.h.b16 %v554
        %v1209 = vunpack.c.l.b16 %v555
        %v1210 = vunpack.c.h.b16 %v555
        %v1211 = vunpack.c.l.b16 %v556
        %v1212 = vunpack.c.h.b16 %v556
        %v1213 = vunpack.c.l.b16 %v557
        %v1214 = vunpack.c.l.b16 %v558
        %v1215 = vunpack.c.h.b16 %v558
        %v1216 = vunpack.c.l.b16 %v559
        %v1217 = vunpack.c.h.b16 %v559
        %v1218 = vunpack.c.l.b16 %v560
        %v1219 = vunpack.c.h.b16 %v560
        %v1220 = vunpack.c.l.b16 %v561
        %v1221 = vunpack.c.h.b16 %v561
        %v1222 = vunpack.c.l.b16 %v562
        %v1223 = vunpack.c.l.b16 %v563
        %v1224 = vunpack.c.h.b16 %v563
        %v1225 = vunpack.c.l.b16 %v564
        %v1226 = vunpack.c.h.b16 %v564
        %v1227 = vunpack.c.l.b16 %v565
        %v1228 = vunpack.c.h.b16 %v565
        %v1229 = vunpack.c.l.b16 %v566
        %v1230 = vunpack.c.h.b16 %v566
        %v1231 = vunpack.c.l.b16 %v567
        %v1232 = vunpack.c.l.b16 %v568
        %v1233 = vunpack.c.h.b16 %v568
        %v1234 = vunpack.c.l.b16 %v569
        %v1235 = vunpack.c.h.b16 %v569
        %v1236 = vunpack.c.l.b16 %v570
        %v1237 = vunpack.c.h.b16 %v570
        %v1238 = vunpack.c.l.b16 %v571
        %v1239 = vunpack.c.h.b16 %v571
        %v1240 = vunpack.c.l.b16 %v572
        %v1241 = vunpack.c.l.b16 %v573
        %v1242 = vunpack.c.h.b16 %v573
        %v1243 = vunpack.c.l.b16 %v574
        %v1244 = vunpack.c.h.b16 %v574
        %v1245 = vunpack.c.l.b16 %v575
        %v1246 = vunpack.c.h.b16 %v575
        %v1247 = vunpack.c.l.b16 %v576
        %v1248 = vunpack.c.h.b16 %v576
        %v1249 = vunpack.c.l.b16 %v577
        %v1250 = vpack.c.b16 %v827, %v818
        %v1251 = vpack.c.b16 %v828, %v819
        %v1252 = vpack.c.b16 %v829, %v820
        %v1253 = vpack.c.b16 %v830, %v821
        %v1254 = vpack.c.b16 %v831, %v822
        %v1255 = vpack.c.b16 %v832, %v823
        %v1256 = vpack.c.b16 %v833, %v824
        %v1257 = vpack.c.b16 %v834, %v825
        %v1258 = vpack.c.b16 %v835, %v826
        %v1259 = vpack.c.b16 %v845, %v836
        %v1260 = vpack.c.b16 %v846, %v837
        %v1261 = vpack.c.b16 %v847, %v838
        %v1262 = vpack.c.b16 %v848, %v839
        %v1263 = vpack.c.b16 %v849, %v840
        %v1264 = vpack.c.b16 %v850, %v841
        %v1265 = vpack.c.b16 %v851, %v842
        %v1266 = vpack.c.b16 %v852, %v843
        %v1267 = vpack.c.b16 %v853, %v844
        %v1268 = vpack.c.b16 %v863, %v854
        %v1269 = vpack.c.b16 %v864, %v855
        %v1270 = vpack.c.b16 %v865, %v856
        %v1271 = vpack.c.b16 %v866, %v857
        %v1272 = vpack.c.b16 %v867, %v858
        %v1273 = vpack.c.b16 %v868, %v859
        %v1274 = vpack.c.b16 %v869, %v860
        %v1275 = vpack.c.b16 %v870, %v861
        %v1276 = vpack.c.b16 %v871, %v862
        %v1277 = vpack.c.b16 %v881, %v872
        %v1278 = vpack.c.b16 %v882, %v873
        %v1279 = vpack.c.b16 %v883, %v874
        %v1280 = vpack.c.b16 %v884, %v875
        %v1281 = vpack.c.b16 %v885, %v876
        %v1282 = vpack.c.b16 %v886, %v877
        %v1283 = vpack.c.b16 %v887, %v878
        %v1284 = vpack.c.b16 %v888, %v879
        %v1285 = vpack.c.b16 %v889, %v880
        %v1286 = vpack.c.b16 %v899, %v890
        %v1287 = vpack.c.b16 %v900, %v891
        %v1288 = vpack.c.b16 %v901, %v892
        %v1289 = vpack.c.b16 %v902, %v893
        %v1290 = vpack.c.b16 %v903, %v894
        %v1291 = vpack.c.b16 %v904, %v895
        %v1292 = vpack.c.b16 %v905, %v896
        %v1293 = vpack.c.b16 %v906, %v897
        %v1294 = vpack.c.b16 %v907, %v898
        %v1295 = vpack.c.b16 %v917, %v908
        %v1296 = vpack.c.b16 %v918, %v909
        %v1297 = vpack.c.b16 %v919, %v910
        %v1298 = vpack.c.b16 %v920, %v911
        %v1299 = vpack.c.b16 %v921, %v912
        %v1300 = vpack.c.b16 %v922, %v913
        %v1301 = vpack.c.b16 %v923, %v914
        %v1302 = vpack.c.b16 %v924, %v915
        %v1303 = vpack.c.b16 %v925, %v916
        %v1304 = vpack.c.b16 %v935, %v926
        %v1305 = vpack.c.b16 %v936, %v927
        %v1306 = vpack.c.b16 %v937, %v928
        %v1307 = vpack.c.b16 %v938, %v929
        %v1308 = vpack.c.b16 %v939, %v930
        %v1309 = vpack.c.b16 %v940, %v931
        %v1310 = vpack.c.b16 %v941, %v932
        %v1311 = vpack.c.b16 %v942, %v933
        %v1312 = vpack.c.b16 %v943, %v934
        %v1313 = vpack.c.b16 %v953, %v944
        %v1314 = vpack.c.b16 %v954, %v945
        %v1315 = vpack.c.b16 %v955, %v946
        %v1316 = vpack.c.b16 %v956, %v947
        %v1317 = vpack.c.b16 %v957, %v948
        %v1318 = vpack.c.b16 %v958, %v949
        %v1319 = vpack.c.b16 %v959, %v950
        %v1320 = vpack.c.b16 %v960, %v951
        %v1321 = vpack.c.b16 %v961, %v952
        %v1322 = vpack.c.b16 %v971, %v962
        %v1323 = vpack.c.b16 %v972, %v963
        %v1324 = vpack.c.b16 %v973, %v964
        %v1325 = vpack.c.b16 %v974, %v965
        %v1326 = vpack.c.b16 %v975, %v966
        %v1327 = vpack.c.b16 %v976, %v967
        %v1328 = vpack.c.b16 %v977, %v968
        %v1329 = vpack.c.b16 %v978, %v969
        %v1330 = vpack.c.b16 %v979, %v970
        %v1331 = vpack.c.b16 %v989, %v980
        %v1332 = vpack.c.b16 %v990, %v981
        %v1333 = vpack.c.b16 %v991, %v982
        %v1334 = vpack.c.b16 %v992, %v983
        %v1335 = vpack.c.b16 %v993, %v984
        %v1336 = vpack.c.b16 %v994, %v985
        %v1337 = vpack.c.b16 %v995, %v986
        %v1338 = vpack.c.b16 %v996, %v987
        %v1339 = vpack.c.b16 %v997, %v988
        %v1340 = vpack.c.b16 %v1007, %v998
        %v1341 = vpack.c.b16 %v1008, %v999
        %v1342 = vpack.c.b16 %v1009, %v1000
        %v1343 = vpack.c.b16 %v1010, %v1001
        %v1344 = vpack.c.b16 %v1011, %v1002
        %v1345 = vpack.c.b16 %v1012, %v1003
        %v1346 = vpack.c.b16 %v1013, %v1004
        %v1347 = vpack.c.b16 %v1014, %v1005
        %v1348 = vpack.c.b16 %v1015, %v1006
        %v1349 = vpack.c.b16 %v1025, %v1016
        %v1350 = vpack.c.b16 %v1026, %v1017
        %v1351 = vpack.c.b16 %v1027, %v1018
        %v1352 = vpack.c.b16 %v1028, %v1019
        %v1353 = vpack.c.b16 %v1029, %v1020
        %v1354 = vpack.c.b16 %v1030, %v1021
        %v1355 = vpack.c.b16 %v1031, %v1022
        %v1356 = vpack.c.b16 %v1032, %v1023
        %v1357 = vpack.c.b16 %v1033, %v1024
        %v1358 = vpack.c.b16 %v1043, %v1034
        %v1359 = vpack.c.b16 %v1044, %v1035
        %v1360 = vpack.c.b16 %v1045, %v1036
        %v1361 = vpack.c.b16 %v1046, %v1037
        %v1362 = vpack.c.b16 %v1047, %v1038
        %v1363 = vpack.c.b16 %v1048, %v1039
        %v1364 = vpack.c.b16 %v1049, %v1040
        %v1365 = vpack.c.b16 %v1050, %v1041
        %v1366 = vpack.c.b16 %v1051, %v1042
        %v1367 = vpack.c.b16 %v1061, %v1052
        %v1368 = vpack.c.b16 %v1062, %v1053
        %v1369 = vpack.c.b16 %v1063, %v1054
        %v1370 = vpack.c.b16 %v1064, %v1055
        %v1371 = vpack.c.b16 %v1065, %v1056
        %v1372 = vpack.c.b16 %v1066, %v1057
        %v1373 = vpack.c.b16 %v1067, %v1058
        %v1374 = vpack.c.b16 %v1068, %v1059
        %v1375 = vpack.c.b16 %v1069, %v1060
        %v1376 = vpack.c.b16 %v1079, %v1070
        %v1377 = vpack.c.b16 %v1080, %v1071
        %v1378 = vpack.c.b16 %v1081, %v1072
        %v1379 = vpack.c.b16 %v1082, %v1073
        %v1380 = vpack.c.b16 %v1083, %v1074
        %v1381 = vpack.c.b16 %v1084, %v1075
        %v1382 = vpack.c.b16 %v1085, %v1076
        %v1383 = vpack.c.b16 %v1086, %v1077
        %v1384 = vpack.c.b16 %v1087, %v1078
        %v1385 = vpack.c.b16 %v1097, %v1088
        %v1386 = vpack.c.b16 %v1098, %v1089
        %v1387 = vpack.c.b16 %v1099, %v1090
        %v1388 = vpack.c.b16 %v1100, %v1091
        %v1389 = vpack.c.b16 %v1101, %v1092
        %v1390 = vpack.c.b16 %v1102, %v1093
        %v1391 = vpack.c.b16 %v1103, %v1094
        %v1392 = vpack.c.b16 %v1104, %v1095
        %v1393 = vpack.c.b16 %v1105, %v1096
        %v1394 = vpack.c.b16 %v1115, %v1106
        %v1395 = vpack.c.b16 %v1116, %v1107
        %v1396 = vpack.c.b16 %v1117, %v1108
        %v1397 = vpack.c.b16 %v1118, %v1109
        %v1398 = vpack.c.b16 %v1119, %v1110
        %v1399 = vpack.c.b16 %v1120, %v1111
        %v1400 = vpack.c.b16 %v1121, %v1112
        %v1401 = vpack.c.b16 %v1122, %v1113
        %v1402 = vpack.c.b16 %v1123, %v1114
        %v1403 = vpack.c.b16 %v1133, %v1124
        %v1404 = vpack.c.b16 %v1134, %v1125
        %v1405 = vpack.c.b16 %v1135, %v1126
        %v1406 = vpack.c.b16 %v1136, %v1127
        %v1407 = vpack.c.b16 %v1137, %v1128
        %v1408 = vpack.c.b16 %v1138, %v1129
        %v1409 = vpack.c.b16 %v1139, %v1130
        %v1410 = vpack.c.b16 %v1140, %v1131
        %v1411 = vpack.c.b16 %v1141, %v1132
        %v1412 = vpack.c.b16 %v1151, %v1142
        %v1413 = vpack.c.b16 %v1152, %v1143
        %v1414 = vpack.c.b16 %v1153, %v1144
        %v1415 = vpack.c.b16 %v1154, %v1145
        %v1416 = vpack.c.b16 %v1155, %v1146
        %v1417 = vpack.c.b16 %v1156, %v1147
        %v1418 = vpack.c.b16 %v1157, %v1148
        %v1419 = vpack.c.b16 %v1158, %v1149
        %v1420 = vpack.c.b16 %v1159, %v1150
        %v1421 = vpack.c.b16 %v1169, %v1160
        %v1422 = vpack.c.b16 %v1170, %v1161
        %v1423 = vpack.c.b16 %v1171, %v1162
        %v1424 = vpack.c.b16 %v1172, %v1163
        %v1425 = vpack.c.b16 %v1173, %v1164
        %v1426 = vpack.c.b16 %v1174, %v1165
        %v1427 = vpack.c.b16 %v1175, %v1166
        %v1428 = vpack.c.b16 %v1176, %v1167
        %v1429 = vpack.c.b16 %v1177, %v1168
        %v1430 = vpack.c.b16 %v1187, %v1178
        %v1431 = vpack.c.b16 %v1188, %v1179
        %v1432 = vpack.c.b16 %v1189, %v1180
        %v1433 = vpack.c.b16 %v1190, %v1181
        %v1434 = vpack.c.b16 %v1191, %v1182
        %v1435 = vpack.c.b16 %v1192, %v1183
        %v1436 = vpack.c.b16 %v1193, %v1184
        %v1437 = vpack.c.b16 %v1194, %v1185
        %v1438 = vpack.c.b16 %v1195, %v1186
        %v1439 = vpack.c.b16 %v1205, %v1196
        %v1440 = vpack.c.b16 %v1206, %v1197
        %v1441 = vpack.c.b16 %v1207, %v1198
        %v1442 = vpack.c.b16 %v1208, %v1199
        %v1443 = vpack.c.b16 %v1209, %v1200
        %v1444 = vpack.c.b16 %v1210, %v1201
        %v1445 = vpack.c.b16 %v1211, %v1202
        %v1446 = vpack.c.b16 %v1212, %v1203
        %v1447 = vpack.c.b16 %v1213, %v1204
        %v1448 = vpack.c.b16 %v1223, %v1214
        %v1449 = vpack.c.b16 %v1224, %v1215
        %v1450 = vpack.c.b16 %v1225, %v1216
        %v1451 = vpack.c.b16 %v1226, %v1217
        %v1452 = vpack.c.b16 %v1227, %v1218
        %v1453 = vpack.c.b16 %v1228, %v1219
        %v1454 = vpack.c.b16 %v1229, %v1220
        %v1455 = vpack.c.b16 %v1230, %v1221
        %v1456 = vpack.c.b16 %v1231, %v1222
        %v1457 = vpack.c.b16 %v1241, %v1232
        %v1458 = vpack.c.b16 %v1242, %v1233
        %v1459 = vpack.c.b16 %v1243, %v1234
        %v1460 = vpack.c.b16 %v1244, %v1235
        %v1461 = vpack.c.b16 %v1245, %v1236
        %v1462 = vpack.c.b16 %v1246, %v1237
        %v1463 = vpack.c.b16 %v1247, %v1238
        %v1464 = vpack.c.b16 %v1248, %v1239
        %v1465 = vpack.c.b16 %v1249, %v1240
        %1682 = vmatpush.bf16.msra.mxu0 %v1313
        %1683 = vmatpush.bf16.msra.mxu0 %v1304
        %1684 = vmatpush.bf16.msra.mxu0 %v1295
        %1685 = vmatpush.bf16.msra.mxu0 %v1286
        %1686 = vmatpush.bf16.msra.mxu0 %v1277
        %1687 = vmatpush.bf16.msra.mxu0 %v1268
        %1688 = vmatpush.bf16.msra.mxu0 %v1259
        %1689 = vmatpush.bf16.msra.mxu0 %v1250
        %1690 = vmatmul.bf16.gmra.mxu0 %v314
        %v1691 = vpop.f32.mrf.mxu0
        %v1692 = vadd.f32 0.0, %v1691
        %v1693 = vpop.f32.mrf.mxu0
        %v1694 = vadd.f32 0.0, %v1693
        %1695 = vmatmul.bf16.gmra.mxu0 %v317
        %v1696 = vpop.f32.mrf.mxu0
        %v1697 = vadd.f32 0.0, %v1696
        %v1698 = vpop.f32.mrf.mxu0
        %v1699 = vadd.f32 0.0, %v1698
        %1700 = vmatmul.bf16.gmra.mxu0 %v320
        %v1701 = vpop.f32.mrf.mxu0
        %v1702 = vadd.f32 0.0, %v1701
        %v1703 = vpop.f32.mrf.mxu0
        %v1704 = vadd.f32 0.0, %v1703
        %1705 = vmatmul.bf16.gmra.mxu0 %v323
        %v1706 = vpop.f32.mrf.mxu0
        %v1707 = vadd.f32 0.0, %v1706
        %v1708 = vpop.f32.mrf.mxu0
        %v1709 = vadd.f32 0.0, %v1708
        %1710 = vmatmul.bf16.gmra.mxu0 %v326
        %v1711 = vpop.f32.mrf.mxu0
        %v1712 = vadd.f32 0.0, %v1711
        %v1713 = vpop.f32.mrf.mxu0
        %v1714 = vadd.f32 0.0, %v1713
        %1715 = vmatmul.bf16.gmra.mxu0 %v329
        %v1716 = vpop.f32.mrf.mxu0
        %v1717 = vadd.f32 0.0, %v1716
        %v1718 = vpop.f32.mrf.mxu0
        %v1719 = vadd.f32 0.0, %v1718
        %1720 = vmatmul.bf16.gmra.mxu0 %v332
        %v1721 = vpop.f32.mrf.mxu0
        %v1722 = vadd.f32 0.0, %v1721
        %v1723 = vpop.f32.mrf.mxu0
        %v1724 = vadd.f32 0.0, %v1723
        %1725 = vmatmul.bf16.gmra.mxu0 %v335
        %v1726 = vpop.f32.mrf.mxu0
        %v1727 = vadd.f32 0.0, %v1726
        %v1728 = vpop.f32.mrf.mxu0
        %v1729 = vadd.f32 0.0, %v1728
        %1730 = vdwg.mxu0
        %1731 = vmatpush.bf16.msra.mxu0 %v1385
        %1732 = vmatpush.bf16.msra.mxu0 %v1376
        %1733 = vmatpush.bf16.msra.mxu0 %v1367
        %1734 = vmatpush.bf16.msra.mxu0 %v1358
        %1735 = vmatpush.bf16.msra.mxu0 %v1349
        %1736 = vmatpush.bf16.msra.mxu0 %v1340
        %1737 = vmatpush.bf16.msra.mxu0 %v1331
        %1738 = vmatpush.bf16.msra.mxu0 %v1322
        %1739 = vmatmul.bf16.gmra.mxu0 %v315
        %v1740 = vpop.f32.mrf.mxu0
        %v1741 = vadd.f32 %v1692, %v1740
        %v1742 = vpop.f32.mrf.mxu0
        %v1743 = vadd.f32 %v1694, %v1742
        %1744 = vmatmul.bf16.gmra.mxu0 %v318
        %v1745 = vpop.f32.mrf.mxu0
        %v1746 = vadd.f32 %v1697, %v1745
        %v1747 = vpop.f32.mrf.mxu0
        %v1748 = vadd.f32 %v1699, %v1747
        %1749 = vmatmul.bf16.gmra.mxu0 %v321
        %v1750 = vpop.f32.mrf.mxu0
        %v1751 = vadd.f32 %v1702, %v1750
        %v1752 = vpop.f32.mrf.mxu0
        %v1753 = vadd.f32 %v1704, %v1752
        %1754 = vmatmul.bf16.gmra.mxu0 %v324
        %v1755 = vpop.f32.mrf.mxu0
        %v1756 = vadd.f32 %v1707, %v1755
        %v1757 = vpop.f32.mrf.mxu0
        %v1758 = vadd.f32 %v1709, %v1757
        %1759 = vmatmul.bf16.gmra.mxu0 %v327
        %v1760 = vpop.f32.mrf.mxu0
        %v1761 = vadd.f32 %v1712, %v1760
        %v1762 = vpop.f32.mrf.mxu0
        %v1763 = vadd.f32 %v1714, %v1762
        %1764 = vmatmul.bf16.gmra.mxu0 %v330
        %v1765 = vpop.f32.mrf.mxu0
        %v1766 = vadd.f32 %v1717, %v1765
        %v1767 = vpop.f32.mrf.mxu0
        %v1768 = vadd.f32 %v1719, %v1767
        %1769 = vmatmul.bf16.gmra.mxu0 %v333
        %v1770 = vpop.f32.mrf.mxu0
        %v1771 = vadd.f32 %v1722, %v1770
        %v1772 = vpop.f32.mrf.mxu0
        %v1773 = vadd.f32 %v1724, %v1772
        %1774 = vmatmul.bf16.gmra.mxu0 %v336
        %v1775 = vpop.f32.mrf.mxu0
        %v1776 = vadd.f32 %v1727, %v1775
        %v1777 = vpop.f32.mrf.mxu0
        %v1778 = vadd.f32 %v1729, %v1777
        %1779 = vdwg.mxu0
        %1780 = vmatpush.bf16.msra.mxu0 %v1457
        %1781 = vmatpush.bf16.msra.mxu0 %v1448
        %1782 = vmatpush.bf16.msra.mxu0 %v1439
        %1783 = vmatpush.bf16.msra.mxu0 %v1430
        %1784 = vmatpush.bf16.msra.mxu0 %v1421
        %1785 = vmatpush.bf16.msra.mxu0 %v1412
        %1786 = vmatpush.bf16.msra.mxu0 %v1403
        %1787 = vmatpush.bf16.msra.mxu0 %v1394
        %1788 = vmatmul.bf16.gmra.mxu0 %v316
        %v1789 = vpop.f32.mrf.mxu0
        %v1790 = vadd.f32 %v1741, %v1789
        %v1791 = vpop.f32.mrf.mxu0
        %v1792 = vadd.f32 %v1743, %v1791
        %1793 = vmatmul.bf16.gmra.mxu0 %v319
        %v1794 = vpop.f32.mrf.mxu0
        %v1795 = vadd.f32 %v1746, %v1794
        %v1796 = vpop.f32.mrf.mxu0
        %v1797 = vadd.f32 %v1748, %v1796
        %1798 = vmatmul.bf16.gmra.mxu0 %v322
        %v1799 = vpop.f32.mrf.mxu0
        %v1800 = vadd.f32 %v1751, %v1799
        %v1801 = vpop.f32.mrf.mxu0
        %v1802 = vadd.f32 %v1753, %v1801
        %1803 = vmatmul.bf16.gmra.mxu0 %v325
        %v1804 = vpop.f32.mrf.mxu0
        %v1805 = vadd.f32 %v1756, %v1804
        %v1806 = vpop.f32.mrf.mxu0
        %v1807 = vadd.f32 %v1758, %v1806
        %1808 = vmatmul.bf16.gmra.mxu0 %v328
        %v1809 = vpop.f32.mrf.mxu0
        %v1810 = vadd.f32 %v1761, %v1809
        %v1811 = vpop.f32.mrf.mxu0
        %v1812 = vadd.f32 %v1763, %v1811
        %1813 = vmatmul.bf16.gmra.mxu0 %v331
        %v1814 = vpop.f32.mrf.mxu0
        %v1815 = vadd.f32 %v1766, %v1814
        %v1816 = vpop.f32.mrf.mxu0
        %v1817 = vadd.f32 %v1768, %v1816
        %1818 = vmatmul.bf16.gmra.mxu0 %v334
        %v1819 = vpop.f32.mrf.mxu0
        %v1820 = vadd.f32 %v1771, %v1819
        %v1821 = vpop.f32.mrf.mxu0
        %v1822 = vadd.f32 %v1773, %v1821
        %1823 = vmatmul.bf16.gmra.mxu0 %v337
        %v1824 = vpop.f32.mrf.mxu0
        %v1825 = vadd.f32 %v1776, %v1824
        %v1826 = vpop.f32.mrf.mxu0
        %v1827 = vadd.f32 %v1778, %v1826
        %1828 = vdwg.mxu0
        %1829 = vmatpush.bf16.msra.mxu0 %v1314
        %1830 = vmatpush.bf16.msra.mxu0 %v1305
        %1831 = vmatpush.bf16.msra.mxu0 %v1296
        %1832 = vmatpush.bf16.msra.mxu0 %v1287
        %1833 = vmatpush.bf16.msra.mxu0 %v1278
        %1834 = vmatpush.bf16.msra.mxu0 %v1269
        %1835 = vmatpush.bf16.msra.mxu0 %v1260
        %1836 = vmatpush.bf16.msra.mxu0 %v1251
        %1837 = vmatmul.bf16.gmra.mxu0 %v314
        %v1838 = vpop.f32.mrf.mxu0
        %v1839 = vadd.f32 0.0, %v1838
        %v1840 = vpop.f32.mrf.mxu0
        %v1841 = vadd.f32 0.0, %v1840
        %1842 = vmatmul.bf16.gmra.mxu0 %v317
        %v1843 = vpop.f32.mrf.mxu0
        %v1844 = vadd.f32 0.0, %v1843
        %v1845 = vpop.f32.mrf.mxu0
        %v1846 = vadd.f32 0.0, %v1845
        %1847 = vmatmul.bf16.gmra.mxu0 %v320
        %v1848 = vpop.f32.mrf.mxu0
        %v1849 = vadd.f32 0.0, %v1848
        %v1850 = vpop.f32.mrf.mxu0
        %v1851 = vadd.f32 0.0, %v1850
        %1852 = vmatmul.bf16.gmra.mxu0 %v323
        %v1853 = vpop.f32.mrf.mxu0
        %v1854 = vadd.f32 0.0, %v1853
        %v1855 = vpop.f32.mrf.mxu0
        %v1856 = vadd.f32 0.0, %v1855
        %1857 = vmatmul.bf16.gmra.mxu0 %v326
        %v1858 = vpop.f32.mrf.mxu0
        %v1859 = vadd.f32 0.0, %v1858
        %v1860 = vpop.f32.mrf.mxu0
        %v1861 = vadd.f32 0.0, %v1860
        %1862 = vmatmul.bf16.gmra.mxu0 %v329
        %v1863 = vpop.f32.mrf.mxu0
        %v1864 = vadd.f32 0.0, %v1863
        %v1865 = vpop.f32.mrf.mxu0
        %v1866 = vadd.f32 0.0, %v1865
        %1867 = vmatmul.bf16.gmra.mxu0 %v332
        %v1868 = vpop.f32.mrf.mxu0
        %v1869 = vadd.f32 0.0, %v1868
        %v1870 = vpop.f32.mrf.mxu0
        %v1871 = vadd.f32 0.0, %v1870
        %1872 = vmatmul.bf16.gmra.mxu0 %v335
        %v1873 = vpop.f32.mrf.mxu0
        %v1874 = vadd.f32 0.0, %v1873
        %v1875 = vpop.f32.mrf.mxu0
        %v1876 = vadd.f32 0.0, %v1875
        %1877 = vdwg.mxu0
        %1878 = vmatpush.bf16.msra.mxu0 %v1386
        %1879 = vmatpush.bf16.msra.mxu0 %v1377
        %1880 = vmatpush.bf16.msra.mxu0 %v1368
        %1881 = vmatpush.bf16.msra.mxu0 %v1359
        %1882 = vmatpush.bf16.msra.mxu0 %v1350
        %1883 = vmatpush.bf16.msra.mxu0 %v1341
        %1884 = vmatpush.bf16.msra.mxu0 %v1332
        %1885 = vmatpush.bf16.msra.mxu0 %v1323
        %1886 = vmatmul.bf16.gmra.mxu0 %v315
        %v1887 = vpop.f32.mrf.mxu0
        %v1888 = vadd.f32 %v1839, %v1887
        %v1889 = vpop.f32.mrf.mxu0
        %v1890 = vadd.f32 %v1841, %v1889
        %1891 = vmatmul.bf16.gmra.mxu0 %v318
        %v1892 = vpop.f32.mrf.mxu0
        %v1893 = vadd.f32 %v1844, %v1892
        %v1894 = vpop.f32.mrf.mxu0
        %v1895 = vadd.f32 %v1846, %v1894
        %1896 = vmatmul.bf16.gmra.mxu0 %v321
        %v1897 = vpop.f32.mrf.mxu0
        %v1898 = vadd.f32 %v1849, %v1897
        %v1899 = vpop.f32.mrf.mxu0
        %v1900 = vadd.f32 %v1851, %v1899
        %1901 = vmatmul.bf16.gmra.mxu0 %v324
        %v1902 = vpop.f32.mrf.mxu0
        %v1903 = vadd.f32 %v1854, %v1902
        %v1904 = vpop.f32.mrf.mxu0
        %v1905 = vadd.f32 %v1856, %v1904
        %1906 = vmatmul.bf16.gmra.mxu0 %v327
        %v1907 = vpop.f32.mrf.mxu0
        %v1908 = vadd.f32 %v1859, %v1907
        %v1909 = vpop.f32.mrf.mxu0
        %v1910 = vadd.f32 %v1861, %v1909
        %1911 = vmatmul.bf16.gmra.mxu0 %v330
        %v1912 = vpop.f32.mrf.mxu0
        %v1913 = vadd.f32 %v1864, %v1912
        %v1914 = vpop.f32.mrf.mxu0
        %v1915 = vadd.f32 %v1866, %v1914
        %1916 = vmatmul.bf16.gmra.mxu0 %v333
        %v1917 = vpop.f32.mrf.mxu0
        %v1918 = vadd.f32 %v1869, %v1917
        %v1919 = vpop.f32.mrf.mxu0
        %v1920 = vadd.f32 %v1871, %v1919
        %1921 = vmatmul.bf16.gmra.mxu0 %v336
        %v1922 = vpop.f32.mrf.mxu0
        %v1923 = vadd.f32 %v1874, %v1922
        %v1924 = vpop.f32.mrf.mxu0
        %v1925 = vadd.f32 %v1876, %v1924
        %1926 = vdwg.mxu0
        %1927 = vmatpush.bf16.msra.mxu0 %v1458
        %1928 = vmatpush.bf16.msra.mxu0 %v1449
        %1929 = vmatpush.bf16.msra.mxu0 %v1440
        %1930 = vmatpush.bf16.msra.mxu0 %v1431
        %1931 = vmatpush.bf16.msra.mxu0 %v1422
        %1932 = vmatpush.bf16.msra.mxu0 %v1413
        %1933 = vmatpush.bf16.msra.mxu0 %v1404
        %1934 = vmatpush.bf16.msra.mxu0 %v1395
        %1935 = vmatmul.bf16.gmra.mxu0 %v316
        %v1936 = vpop.f32.mrf.mxu0
        %v1937 = vadd.f32 %v1888, %v1936
        %v1938 = vpop.f32.mrf.mxu0
        %v1939 = vadd.f32 %v1890, %v1938
        %1940 = vmatmul.bf16.gmra.mxu0 %v319
        %v1941 = vpop.f32.mrf.mxu0
        %v1942 = vadd.f32 %v1893, %v1941
        %v1943 = vpop.f32.mrf.mxu0
        %v1944 = vadd.f32 %v1895, %v1943
        %1945 = vmatmul.bf16.gmra.mxu0 %v322
        %v1946 = vpop.f32.mrf.mxu0
        %v1947 = vadd.f32 %v1898, %v1946
        %v1948 = vpop.f32.mrf.mxu0
        %v1949 = vadd.f32 %v1900, %v1948
        %1950 = vmatmul.bf16.gmra.mxu0 %v325
        %v1951 = vpop.f32.mrf.mxu0
        %v1952 = vadd.f32 %v1903, %v1951
        %v1953 = vpop.f32.mrf.mxu0
        %v1954 = vadd.f32 %v1905, %v1953
        %1955 = vmatmul.bf16.gmra.mxu0 %v328
        %v1956 = vpop.f32.mrf.mxu0
        %v1957 = vadd.f32 %v1908, %v1956
        %v1958 = vpop.f32.mrf.mxu0
        %v1959 = vadd.f32 %v1910, %v1958
        %1960 = vmatmul.bf16.gmra.mxu0 %v331
        %v1961 = vpop.f32.mrf.mxu0
        %v1962 = vadd.f32 %v1913, %v1961
        %v1963 = vpop.f32.mrf.mxu0
        %v1964 = vadd.f32 %v1915, %v1963
        %1965 = vmatmul.bf16.gmra.mxu0 %v334
        %v1966 = vpop.f32.mrf.mxu0
        %v1967 = vadd.f32 %v1918, %v1966
        %v1968 = vpop.f32.mrf.mxu0
        %v1969 = vadd.f32 %v1920, %v1968
        %1970 = vmatmul.bf16.gmra.mxu0 %v337
        %v1971 = vpop.f32.mrf.mxu0
        %v1972 = vadd.f32 %v1923, %v1971
        %v1973 = vpop.f32.mrf.mxu0
        %v1974 = vadd.f32 %v1925, %v1973
        %1975 = vdwg.mxu0
        %1976 = vmatpush.bf16.msra.mxu0 %v1315
        %1977 = vmatpush.bf16.msra.mxu0 %v1306
        %1978 = vmatpush.bf16.msra.mxu0 %v1297
        %1979 = vmatpush.bf16.msra.mxu0 %v1288
        %1980 = vmatpush.bf16.msra.mxu0 %v1279
        %1981 = vmatpush.bf16.msra.mxu0 %v1270
        %1982 = vmatpush.bf16.msra.mxu0 %v1261
        %1983 = vmatpush.bf16.msra.mxu0 %v1252
        %1984 = vmatmul.bf16.gmra.mxu0 %v314
        %v1985 = vpop.f32.mrf.mxu0
        %v1986 = vadd.f32 0.0, %v1985
        %v1987 = vpop.f32.mrf.mxu0
        %v1988 = vadd.f32 0.0, %v1987
        %1989 = vmatmul.bf16.gmra.mxu0 %v317
        %v1990 = vpop.f32.mrf.mxu0
        %v1991 = vadd.f32 0.0, %v1990
        %v1992 = vpop.f32.mrf.mxu0
        %v1993 = vadd.f32 0.0, %v1992
        %1994 = vmatmul.bf16.gmra.mxu0 %v320
        %v1995 = vpop.f32.mrf.mxu0
        %v1996 = vadd.f32 0.0, %v1995
        %v1997 = vpop.f32.mrf.mxu0
        %v1998 = vadd.f32 0.0, %v1997
        %1999 = vmatmul.bf16.gmra.mxu0 %v323
        %v2000 = vpop.f32.mrf.mxu0
        %v2001 = vadd.f32 0.0, %v2000
        %v2002 = vpop.f32.mrf.mxu0
        %v2003 = vadd.f32 0.0, %v2002
        %2004 = vmatmul.bf16.gmra.mxu0 %v326
        %v2005 = vpop.f32.mrf.mxu0
        %v2006 = vadd.f32 0.0, %v2005
        %v2007 = vpop.f32.mrf.mxu0
        %v2008 = vadd.f32 0.0, %v2007
        %2009 = vmatmul.bf16.gmra.mxu0 %v329
        %v2010 = vpop.f32.mrf.mxu0
        %v2011 = vadd.f32 0.0, %v2010
        %v2012 = vpop.f32.mrf.mxu0
        %v2013 = vadd.f32 0.0, %v2012
        %2014 = vmatmul.bf16.gmra.mxu0 %v332
        %v2015 = vpop.f32.mrf.mxu0
        %v2016 = vadd.f32 0.0, %v2015
        %v2017 = vpop.f32.mrf.mxu0
        %v2018 = vadd.f32 0.0, %v2017
        %2019 = vmatmul.bf16.gmra.mxu0 %v335
        %v2020 = vpop.f32.mrf.mxu0
        %v2021 = vadd.f32 0.0, %v2020
        %v2022 = vpop.f32.mrf.mxu0
        %v2023 = vadd.f32 0.0, %v2022
        %2024 = vdwg.mxu0
        %2025 = vmatpush.bf16.msra.mxu0 %v1387
        %2026 = vmatpush.bf16.msra.mxu0 %v1378
        %2027 = vmatpush.bf16.msra.mxu0 %v1369
        %2028 = vmatpush.bf16.msra.mxu0 %v1360
        %2029 = vmatpush.bf16.msra.mxu0 %v1351
        %2030 = vmatpush.bf16.msra.mxu0 %v1342
        %2031 = vmatpush.bf16.msra.mxu0 %v1333
        %2032 = vmatpush.bf16.msra.mxu0 %v1324
        %2033 = vmatmul.bf16.gmra.mxu0 %v315
        %v2034 = vpop.f32.mrf.mxu0
        %v2035 = vadd.f32 %v1986, %v2034
        %v2036 = vpop.f32.mrf.mxu0
        %v2037 = vadd.f32 %v1988, %v2036
        %2038 = vmatmul.bf16.gmra.mxu0 %v318
        %v2039 = vpop.f32.mrf.mxu0
        %v2040 = vadd.f32 %v1991, %v2039
        %v2041 = vpop.f32.mrf.mxu0
        %v2042 = vadd.f32 %v1993, %v2041
        %2043 = vmatmul.bf16.gmra.mxu0 %v321
        %v2044 = vpop.f32.mrf.mxu0
        %v2045 = vadd.f32 %v1996, %v2044
        %v2046 = vpop.f32.mrf.mxu0
        %v2047 = vadd.f32 %v1998, %v2046
        %2048 = vmatmul.bf16.gmra.mxu0 %v324
        %v2049 = vpop.f32.mrf.mxu0
        %v2050 = vadd.f32 %v2001, %v2049
        %v2051 = vpop.f32.mrf.mxu0
        %v2052 = vadd.f32 %v2003, %v2051
        %2053 = vmatmul.bf16.gmra.mxu0 %v327
        %v2054 = vpop.f32.mrf.mxu0
        %v2055 = vadd.f32 %v2006, %v2054
        %v2056 = vpop.f32.mrf.mxu0
        %v2057 = vadd.f32 %v2008, %v2056
        %2058 = vmatmul.bf16.gmra.mxu0 %v330
        %v2059 = vpop.f32.mrf.mxu0
        %v2060 = vadd.f32 %v2011, %v2059
        %v2061 = vpop.f32.mrf.mxu0
        %v2062 = vadd.f32 %v2013, %v2061
        %2063 = vmatmul.bf16.gmra.mxu0 %v333
        %v2064 = vpop.f32.mrf.mxu0
        %v2065 = vadd.f32 %v2016, %v2064
        %v2066 = vpop.f32.mrf.mxu0
        %v2067 = vadd.f32 %v2018, %v2066
        %2068 = vmatmul.bf16.gmra.mxu0 %v336
        %v2069 = vpop.f32.mrf.mxu0
        %v2070 = vadd.f32 %v2021, %v2069
        %v2071 = vpop.f32.mrf.mxu0
        %v2072 = vadd.f32 %v2023, %v2071
        %2073 = vdwg.mxu0
        %2074 = vmatpush.bf16.msra.mxu0 %v1459
        %2075 = vmatpush.bf16.msra.mxu0 %v1450
        %2076 = vmatpush.bf16.msra.mxu0 %v1441
        %2077 = vmatpush.bf16.msra.mxu0 %v1432
        %2078 = vmatpush.bf16.msra.mxu0 %v1423
        %2079 = vmatpush.bf16.msra.mxu0 %v1414
        %2080 = vmatpush.bf16.msra.mxu0 %v1405
        %2081 = vmatpush.bf16.msra.mxu0 %v1396
        %2082 = vmatmul.bf16.gmra.mxu0 %v316
        %v2083 = vpop.f32.mrf.mxu0
        %v2084 = vadd.f32 %v2035, %v2083
        %v2085 = vpop.f32.mrf.mxu0
        %v2086 = vadd.f32 %v2037, %v2085
        %2087 = vmatmul.bf16.gmra.mxu0 %v319
        %v2088 = vpop.f32.mrf.mxu0
        %v2089 = vadd.f32 %v2040, %v2088
        %v2090 = vpop.f32.mrf.mxu0
        %v2091 = vadd.f32 %v2042, %v2090
        %2092 = vmatmul.bf16.gmra.mxu0 %v322
        %v2093 = vpop.f32.mrf.mxu0
        %v2094 = vadd.f32 %v2045, %v2093
        %v2095 = vpop.f32.mrf.mxu0
        %v2096 = vadd.f32 %v2047, %v2095
        %2097 = vmatmul.bf16.gmra.mxu0 %v325
        %v2098 = vpop.f32.mrf.mxu0
        %v2099 = vadd.f32 %v2050, %v2098
        %v2100 = vpop.f32.mrf.mxu0
        %v2101 = vadd.f32 %v2052, %v2100
        %2102 = vmatmul.bf16.gmra.mxu0 %v328
        %v2103 = vpop.f32.mrf.mxu0
        %v2104 = vadd.f32 %v2055, %v2103
        %v2105 = vpop.f32.mrf.mxu0
        %v2106 = vadd.f32 %v2057, %v2105
        %2107 = vmatmul.bf16.gmra.mxu0 %v331
        %v2108 = vpop.f32.mrf.mxu0
        %v2109 = vadd.f32 %v2060, %v2108
        %v2110 = vpop.f32.mrf.mxu0
        %v2111 = vadd.f32 %v2062, %v2110
        %2112 = vmatmul.bf16.gmra.mxu0 %v334
        %v2113 = vpop.f32.mrf.mxu0
        %v2114 = vadd.f32 %v2065, %v2113
        %v2115 = vpop.f32.mrf.mxu0
        %v2116 = vadd.f32 %v2067, %v2115
        %2117 = vmatmul.bf16.gmra.mxu0 %v337
        %v2118 = vpop.f32.mrf.mxu0
        %v2119 = vadd.f32 %v2070, %v2118
        %v2120 = vpop.f32.mrf.mxu0
        %v2121 = vadd.f32 %v2072, %v2120
        %2122 = vdwg.mxu0
        %2123 = vmatpush.bf16.msra.mxu0 %v1316
        %2124 = vmatpush.bf16.msra.mxu0 %v1307
        %2125 = vmatpush.bf16.msra.mxu0 %v1298
        %2126 = vmatpush.bf16.msra.mxu0 %v1289
        %2127 = vmatpush.bf16.msra.mxu0 %v1280
        %2128 = vmatpush.bf16.msra.mxu0 %v1271
        %2129 = vmatpush.bf16.msra.mxu0 %v1262
        %2130 = vmatpush.bf16.msra.mxu0 %v1253
        %2131 = vmatmul.bf16.gmra.mxu0 %v314
        %v2132 = vpop.f32.mrf.mxu0
        %v2133 = vadd.f32 0.0, %v2132
        %v2134 = vpop.f32.mrf.mxu0
        %v2135 = vadd.f32 0.0, %v2134
        %2136 = vmatmul.bf16.gmra.mxu0 %v317
        %v2137 = vpop.f32.mrf.mxu0
        %v2138 = vadd.f32 0.0, %v2137
        %v2139 = vpop.f32.mrf.mxu0
        %v2140 = vadd.f32 0.0, %v2139
        %2141 = vmatmul.bf16.gmra.mxu0 %v320
        %v2142 = vpop.f32.mrf.mxu0
        %v2143 = vadd.f32 0.0, %v2142
        %v2144 = vpop.f32.mrf.mxu0
        %v2145 = vadd.f32 0.0, %v2144
        %2146 = vmatmul.bf16.gmra.mxu0 %v323
        %v2147 = vpop.f32.mrf.mxu0
        %v2148 = vadd.f32 0.0, %v2147
        %v2149 = vpop.f32.mrf.mxu0
        %v2150 = vadd.f32 0.0, %v2149
        %2151 = vmatmul.bf16.gmra.mxu0 %v326
        %v2152 = vpop.f32.mrf.mxu0
        %v2153 = vadd.f32 0.0, %v2152
        %v2154 = vpop.f32.mrf.mxu0
        %v2155 = vadd.f32 0.0, %v2154
        %2156 = vmatmul.bf16.gmra.mxu0 %v329
        %v2157 = vpop.f32.mrf.mxu0
        %v2158 = vadd.f32 0.0, %v2157
        %v2159 = vpop.f32.mrf.mxu0
        %v2160 = vadd.f32 0.0, %v2159
        %2161 = vmatmul.bf16.gmra.mxu0 %v332
        %v2162 = vpop.f32.mrf.mxu0
        %v2163 = vadd.f32 0.0, %v2162
        %v2164 = vpop.f32.mrf.mxu0
        %v2165 = vadd.f32 0.0, %v2164
        %2166 = vmatmul.bf16.gmra.mxu0 %v335
        %v2167 = vpop.f32.mrf.mxu0
        %v2168 = vadd.f32 0.0, %v2167
        %v2169 = vpop.f32.mrf.mxu0
        %v2170 = vadd.f32 0.0, %v2169
        %2171 = vdwg.mxu0
        %2172 = vmatpush.bf16.msra.mxu0 %v1388
        %2173 = vmatpush.bf16.msra.mxu0 %v1379
        %2174 = vmatpush.bf16.msra.mxu0 %v1370
        %2175 = vmatpush.bf16.msra.mxu0 %v1361
        %2176 = vmatpush.bf16.msra.mxu0 %v1352
        %2177 = vmatpush.bf16.msra.mxu0 %v1343
        %2178 = vmatpush.bf16.msra.mxu0 %v1334
        %2179 = vmatpush.bf16.msra.mxu0 %v1325
        %2180 = vmatmul.bf16.gmra.mxu0 %v315
        %v2181 = vpop.f32.mrf.mxu0
        %v2182 = vadd.f32 %v2133, %v2181
        %v2183 = vpop.f32.mrf.mxu0
        %v2184 = vadd.f32 %v2135, %v2183
        %2185 = vmatmul.bf16.gmra.mxu0 %v318
        %v2186 = vpop.f32.mrf.mxu0
        %v2187 = vadd.f32 %v2138, %v2186
        %v2188 = vpop.f32.mrf.mxu0
        %v2189 = vadd.f32 %v2140, %v2188
        %2190 = vmatmul.bf16.gmra.mxu0 %v321
        %v2191 = vpop.f32.mrf.mxu0
        %v2192 = vadd.f32 %v2143, %v2191
        %v2193 = vpop.f32.mrf.mxu0
        %v2194 = vadd.f32 %v2145, %v2193
        %2195 = vmatmul.bf16.gmra.mxu0 %v324
        %v2196 = vpop.f32.mrf.mxu0
        %v2197 = vadd.f32 %v2148, %v2196
        %v2198 = vpop.f32.mrf.mxu0
        %v2199 = vadd.f32 %v2150, %v2198
        %2200 = vmatmul.bf16.gmra.mxu0 %v327
        %v2201 = vpop.f32.mrf.mxu0
        %v2202 = vadd.f32 %v2153, %v2201
        %v2203 = vpop.f32.mrf.mxu0
        %v2204 = vadd.f32 %v2155, %v2203
        %2205 = vmatmul.bf16.gmra.mxu0 %v330
        %v2206 = vpop.f32.mrf.mxu0
        %v2207 = vadd.f32 %v2158, %v2206
        %v2208 = vpop.f32.mrf.mxu0
        %v2209 = vadd.f32 %v2160, %v2208
        %2210 = vmatmul.bf16.gmra.mxu0 %v333
        %v2211 = vpop.f32.mrf.mxu0
        %v2212 = vadd.f32 %v2163, %v2211
        %v2213 = vpop.f32.mrf.mxu0
        %v2214 = vadd.f32 %v2165, %v2213
        %2215 = vmatmul.bf16.gmra.mxu0 %v336
        %v2216 = vpop.f32.mrf.mxu0
        %v2217 = vadd.f32 %v2168, %v2216
        %v2218 = vpop.f32.mrf.mxu0
        %v2219 = vadd.f32 %v2170, %v2218
        %2220 = vdwg.mxu0
        %2221 = vmatpush.bf16.msra.mxu0 %v1460
        %2222 = vmatpush.bf16.msra.mxu0 %v1451
        %2223 = vmatpush.bf16.msra.mxu0 %v1442
        %2224 = vmatpush.bf16.msra.mxu0 %v1433
        %2225 = vmatpush.bf16.msra.mxu0 %v1424
        %2226 = vmatpush.bf16.msra.mxu0 %v1415
        %2227 = vmatpush.bf16.msra.mxu0 %v1406
        %2228 = vmatpush.bf16.msra.mxu0 %v1397
        %2229 = vmatmul.bf16.gmra.mxu0 %v316
        %v2230 = vpop.f32.mrf.mxu0
        %v2231 = vadd.f32 %v2182, %v2230
        %v2232 = vpop.f32.mrf.mxu0
        %v2233 = vadd.f32 %v2184, %v2232
        %2234 = vmatmul.bf16.gmra.mxu0 %v319
        %v2235 = vpop.f32.mrf.mxu0
        %v2236 = vadd.f32 %v2187, %v2235
        %v2237 = vpop.f32.mrf.mxu0
        %v2238 = vadd.f32 %v2189, %v2237
        %2239 = vmatmul.bf16.gmra.mxu0 %v322
        %v2240 = vpop.f32.mrf.mxu0
        %v2241 = vadd.f32 %v2192, %v2240
        %v2242 = vpop.f32.mrf.mxu0
        %v2243 = vadd.f32 %v2194, %v2242
        %2244 = vmatmul.bf16.gmra.mxu0 %v325
        %v2245 = vpop.f32.mrf.mxu0
        %v2246 = vadd.f32 %v2197, %v2245
        %v2247 = vpop.f32.mrf.mxu0
        %v2248 = vadd.f32 %v2199, %v2247
        %2249 = vmatmul.bf16.gmra.mxu0 %v328
        %v2250 = vpop.f32.mrf.mxu0
        %v2251 = vadd.f32 %v2202, %v2250
        %v2252 = vpop.f32.mrf.mxu0
        %v2253 = vadd.f32 %v2204, %v2252
        %2254 = vmatmul.bf16.gmra.mxu0 %v331
        %v2255 = vpop.f32.mrf.mxu0
        %v2256 = vadd.f32 %v2207, %v2255
        %v2257 = vpop.f32.mrf.mxu0
        %v2258 = vadd.f32 %v2209, %v2257
        %2259 = vmatmul.bf16.gmra.mxu0 %v334
        %v2260 = vpop.f32.mrf.mxu0
        %v2261 = vadd.f32 %v2212, %v2260
        %v2262 = vpop.f32.mrf.mxu0
        %v2263 = vadd.f32 %v2214, %v2262
        %2264 = vmatmul.bf16.gmra.mxu0 %v337
        %v2265 = vpop.f32.mrf.mxu0
        %v2266 = vadd.f32 %v2217, %v2265
        %v2267 = vpop.f32.mrf.mxu0
        %v2268 = vadd.f32 %v2219, %v2267
        %2269 = vdwg.mxu0
        %2270 = vmatpush.bf16.msra.mxu0 %v1317
        %2271 = vmatpush.bf16.msra.mxu0 %v1308
        %2272 = vmatpush.bf16.msra.mxu0 %v1299
        %2273 = vmatpush.bf16.msra.mxu0 %v1290
        %2274 = vmatpush.bf16.msra.mxu0 %v1281
        %2275 = vmatpush.bf16.msra.mxu0 %v1272
        %2276 = vmatpush.bf16.msra.mxu0 %v1263
        %2277 = vmatpush.bf16.msra.mxu0 %v1254
        %2278 = vmatmul.bf16.gmra.mxu0 %v314
        %v2279 = vpop.f32.mrf.mxu0
        %v2280 = vadd.f32 0.0, %v2279
        %v2281 = vpop.f32.mrf.mxu0
        %v2282 = vadd.f32 0.0, %v2281
        %2283 = vmatmul.bf16.gmra.mxu0 %v317
        %v2284 = vpop.f32.mrf.mxu0
        %v2285 = vadd.f32 0.0, %v2284
        %v2286 = vpop.f32.mrf.mxu0
        %v2287 = vadd.f32 0.0, %v2286
        %2288 = vmatmul.bf16.gmra.mxu0 %v320
        %v2289 = vpop.f32.mrf.mxu0
        %v2290 = vadd.f32 0.0, %v2289
        %v2291 = vpop.f32.mrf.mxu0
        %v2292 = vadd.f32 0.0, %v2291
        %2293 = vmatmul.bf16.gmra.mxu0 %v323
        %v2294 = vpop.f32.mrf.mxu0
        %v2295 = vadd.f32 0.0, %v2294
        %v2296 = vpop.f32.mrf.mxu0
        %v2297 = vadd.f32 0.0, %v2296
        %2298 = vmatmul.bf16.gmra.mxu0 %v326
        %v2299 = vpop.f32.mrf.mxu0
        %v2300 = vadd.f32 0.0, %v2299
        %v2301 = vpop.f32.mrf.mxu0
        %v2302 = vadd.f32 0.0, %v2301
        %2303 = vmatmul.bf16.gmra.mxu0 %v329
        %v2304 = vpop.f32.mrf.mxu0
        %v2305 = vadd.f32 0.0, %v2304
        %v2306 = vpop.f32.mrf.mxu0
        %v2307 = vadd.f32 0.0, %v2306
        %2308 = vmatmul.bf16.gmra.mxu0 %v332
        %v2309 = vpop.f32.mrf.mxu0
        %v2310 = vadd.f32 0.0, %v2309
        %v2311 = vpop.f32.mrf.mxu0
        %v2312 = vadd.f32 0.0, %v2311
        %2313 = vmatmul.bf16.gmra.mxu0 %v335
        %v2314 = vpop.f32.mrf.mxu0
        %v2315 = vadd.f32 0.0, %v2314
        %v2316 = vpop.f32.mrf.mxu0
        %v2317 = vadd.f32 0.0, %v2316
        %2318 = vdwg.mxu0
        %2319 = vmatpush.bf16.msra.mxu0 %v1389
        %2320 = vmatpush.bf16.msra.mxu0 %v1380
        %2321 = vmatpush.bf16.msra.mxu0 %v1371
        %2322 = vmatpush.bf16.msra.mxu0 %v1362
        %2323 = vmatpush.bf16.msra.mxu0 %v1353
        %2324 = vmatpush.bf16.msra.mxu0 %v1344
        %2325 = vmatpush.bf16.msra.mxu0 %v1335
        %2326 = vmatpush.bf16.msra.mxu0 %v1326
        %2327 = vmatmul.bf16.gmra.mxu0 %v315
        %v2328 = vpop.f32.mrf.mxu0
        %v2329 = vadd.f32 %v2280, %v2328
        %v2330 = vpop.f32.mrf.mxu0
        %v2331 = vadd.f32 %v2282, %v2330
        %2332 = vmatmul.bf16.gmra.mxu0 %v318
        %v2333 = vpop.f32.mrf.mxu0
        %v2334 = vadd.f32 %v2285, %v2333
        %v2335 = vpop.f32.mrf.mxu0
        %v2336 = vadd.f32 %v2287, %v2335
        %2337 = vmatmul.bf16.gmra.mxu0 %v321
        %v2338 = vpop.f32.mrf.mxu0
        %v2339 = vadd.f32 %v2290, %v2338
        %v2340 = vpop.f32.mrf.mxu0
        %v2341 = vadd.f32 %v2292, %v2340
        %2342 = vmatmul.bf16.gmra.mxu0 %v324
        %v2343 = vpop.f32.mrf.mxu0
        %v2344 = vadd.f32 %v2295, %v2343
        %v2345 = vpop.f32.mrf.mxu0
        %v2346 = vadd.f32 %v2297, %v2345
        %2347 = vmatmul.bf16.gmra.mxu0 %v327
        %v2348 = vpop.f32.mrf.mxu0
        %v2349 = vadd.f32 %v2300, %v2348
        %v2350 = vpop.f32.mrf.mxu0
        %v2351 = vadd.f32 %v2302, %v2350
        %2352 = vmatmul.bf16.gmra.mxu0 %v330
        %v2353 = vpop.f32.mrf.mxu0
        %v2354 = vadd.f32 %v2305, %v2353
        %v2355 = vpop.f32.mrf.mxu0
        %v2356 = vadd.f32 %v2307, %v2355
        %2357 = vmatmul.bf16.gmra.mxu0 %v333
        %v2358 = vpop.f32.mrf.mxu0
        %v2359 = vadd.f32 %v2310, %v2358
        %v2360 = vpop.f32.mrf.mxu0
        %v2361 = vadd.f32 %v2312, %v2360
        %2362 = vmatmul.bf16.gmra.mxu0 %v336
        %v2363 = vpop.f32.mrf.mxu0
        %v2364 = vadd.f32 %v2315, %v2363
        %v2365 = vpop.f32.mrf.mxu0
        %v2366 = vadd.f32 %v2317, %v2365
        %2367 = vdwg.mxu0
        %2368 = vmatpush.bf16.msra.mxu0 %v1461
        %2369 = vmatpush.bf16.msra.mxu0 %v1452
        %2370 = vmatpush.bf16.msra.mxu0 %v1443
        %2371 = vmatpush.bf16.msra.mxu0 %v1434
        %2372 = vmatpush.bf16.msra.mxu0 %v1425
        %2373 = vmatpush.bf16.msra.mxu0 %v1416
        %2374 = vmatpush.bf16.msra.mxu0 %v1407
        %2375 = vmatpush.bf16.msra.mxu0 %v1398
        %2376 = vmatmul.bf16.gmra.mxu0 %v316
        %v2377 = vpop.f32.mrf.mxu0
        %v2378 = vadd.f32 %v2329, %v2377
        %v2379 = vpop.f32.mrf.mxu0
        %v2380 = vadd.f32 %v2331, %v2379
        %2381 = vmatmul.bf16.gmra.mxu0 %v319
        %v2382 = vpop.f32.mrf.mxu0
        %v2383 = vadd.f32 %v2334, %v2382
        %v2384 = vpop.f32.mrf.mxu0
        %v2385 = vadd.f32 %v2336, %v2384
        %2386 = vmatmul.bf16.gmra.mxu0 %v322
        %v2387 = vpop.f32.mrf.mxu0
        %v2388 = vadd.f32 %v2339, %v2387
        %v2389 = vpop.f32.mrf.mxu0
        %v2390 = vadd.f32 %v2341, %v2389
        %2391 = vmatmul.bf16.gmra.mxu0 %v325
        %v2392 = vpop.f32.mrf.mxu0
        %v2393 = vadd.f32 %v2344, %v2392
        %v2394 = vpop.f32.mrf.mxu0
        %v2395 = vadd.f32 %v2346, %v2394
        %2396 = vmatmul.bf16.gmra.mxu0 %v328
        %v2397 = vpop.f32.mrf.mxu0
        %v2398 = vadd.f32 %v2349, %v2397
        %v2399 = vpop.f32.mrf.mxu0
        %v2400 = vadd.f32 %v2351, %v2399
        %2401 = vmatmul.bf16.gmra.mxu0 %v331
        %v2402 = vpop.f32.mrf.mxu0
        %v2403 = vadd.f32 %v2354, %v2402
        %v2404 = vpop.f32.mrf.mxu0
        %v2405 = vadd.f32 %v2356, %v2404
        %2406 = vmatmul.bf16.gmra.mxu0 %v334
        %v2407 = vpop.f32.mrf.mxu0
        %v2408 = vadd.f32 %v2359, %v2407
        %v2409 = vpop.f32.mrf.mxu0
        %v2410 = vadd.f32 %v2361, %v2409
        %2411 = vmatmul.bf16.gmra.mxu0 %v337
        %v2412 = vpop.f32.mrf.mxu0
        %v2413 = vadd.f32 %v2364, %v2412
        %v2414 = vpop.f32.mrf.mxu0
        %v2415 = vadd.f32 %v2366, %v2414
        %2416 = vdwg.mxu0
        %2417 = vmatpush.bf16.msra.mxu0 %v1318
        %2418 = vmatpush.bf16.msra.mxu0 %v1309
        %2419 = vmatpush.bf16.msra.mxu0 %v1300
        %2420 = vmatpush.bf16.msra.mxu0 %v1291
        %2421 = vmatpush.bf16.msra.mxu0 %v1282
        %2422 = vmatpush.bf16.msra.mxu0 %v1273
        %2423 = vmatpush.bf16.msra.mxu0 %v1264
        %2424 = vmatpush.bf16.msra.mxu0 %v1255
        %2425 = vmatmul.bf16.gmra.mxu0 %v314
        %v2426 = vpop.f32.mrf.mxu0
        %v2427 = vadd.f32 0.0, %v2426
        %v2428 = vpop.f32.mrf.mxu0
        %v2429 = vadd.f32 0.0, %v2428
        %2430 = vmatmul.bf16.gmra.mxu0 %v317
        %v2431 = vpop.f32.mrf.mxu0
        %v2432 = vadd.f32 0.0, %v2431
        %v2433 = vpop.f32.mrf.mxu0
        %v2434 = vadd.f32 0.0, %v2433
        %2435 = vmatmul.bf16.gmra.mxu0 %v320
        %v2436 = vpop.f32.mrf.mxu0
        %v2437 = vadd.f32 0.0, %v2436
        %v2438 = vpop.f32.mrf.mxu0
        %v2439 = vadd.f32 0.0, %v2438
        %2440 = vmatmul.bf16.gmra.mxu0 %v323
        %v2441 = vpop.f32.mrf.mxu0
        %v2442 = vadd.f32 0.0, %v2441
        %v2443 = vpop.f32.mrf.mxu0
        %v2444 = vadd.f32 0.0, %v2443
        %2445 = vmatmul.bf16.gmra.mxu0 %v326
        %v2446 = vpop.f32.mrf.mxu0
        %v2447 = vadd.f32 0.0, %v2446
        %v2448 = vpop.f32.mrf.mxu0
        %v2449 = vadd.f32 0.0, %v2448
        %2450 = vmatmul.bf16.gmra.mxu0 %v329
        %v2451 = vpop.f32.mrf.mxu0
        %v2452 = vadd.f32 0.0, %v2451
        %v2453 = vpop.f32.mrf.mxu0
        %v2454 = vadd.f32 0.0, %v2453
        %2455 = vmatmul.bf16.gmra.mxu0 %v332
        %v2456 = vpop.f32.mrf.mxu0
        %v2457 = vadd.f32 0.0, %v2456
        %v2458 = vpop.f32.mrf.mxu0
        %v2459 = vadd.f32 0.0, %v2458
        %2460 = vmatmul.bf16.gmra.mxu0 %v335
        %v2461 = vpop.f32.mrf.mxu0
        %v2462 = vadd.f32 0.0, %v2461
        %v2463 = vpop.f32.mrf.mxu0
        %v2464 = vadd.f32 0.0, %v2463
        %2465 = vdwg.mxu0
        %2466 = vmatpush.bf16.msra.mxu0 %v1390
        %2467 = vmatpush.bf16.msra.mxu0 %v1381
        %2468 = vmatpush.bf16.msra.mxu0 %v1372
        %2469 = vmatpush.bf16.msra.mxu0 %v1363
        %2470 = vmatpush.bf16.msra.mxu0 %v1354
        %2471 = vmatpush.bf16.msra.mxu0 %v1345
        %2472 = vmatpush.bf16.msra.mxu0 %v1336
        %2473 = vmatpush.bf16.msra.mxu0 %v1327
        %2474 = vmatmul.bf16.gmra.mxu0 %v315
        %v2475 = vpop.f32.mrf.mxu0
        %v2476 = vadd.f32 %v2427, %v2475
        %v2477 = vpop.f32.mrf.mxu0
        %v2478 = vadd.f32 %v2429, %v2477
        %2479 = vmatmul.bf16.gmra.mxu0 %v318
        %v2480 = vpop.f32.mrf.mxu0
        %v2481 = vadd.f32 %v2432, %v2480
        %v2482 = vpop.f32.mrf.mxu0
        %v2483 = vadd.f32 %v2434, %v2482
        %2484 = vmatmul.bf16.gmra.mxu0 %v321
        %v2485 = vpop.f32.mrf.mxu0
        %v2486 = vadd.f32 %v2437, %v2485
        %v2487 = vpop.f32.mrf.mxu0
        %v2488 = vadd.f32 %v2439, %v2487
        %2489 = vmatmul.bf16.gmra.mxu0 %v324
        %v2490 = vpop.f32.mrf.mxu0
        %v2491 = vadd.f32 %v2442, %v2490
        %v2492 = vpop.f32.mrf.mxu0
        %v2493 = vadd.f32 %v2444, %v2492
        %2494 = vmatmul.bf16.gmra.mxu0 %v327
        %v2495 = vpop.f32.mrf.mxu0
        %v2496 = vadd.f32 %v2447, %v2495
        %v2497 = vpop.f32.mrf.mxu0
        %v2498 = vadd.f32 %v2449, %v2497
        %2499 = vmatmul.bf16.gmra.mxu0 %v330
        %v2500 = vpop.f32.mrf.mxu0
        %v2501 = vadd.f32 %v2452, %v2500
        %v2502 = vpop.f32.mrf.mxu0
        %v2503 = vadd.f32 %v2454, %v2502
        %2504 = vmatmul.bf16.gmra.mxu0 %v333
        %v2505 = vpop.f32.mrf.mxu0
        %v2506 = vadd.f32 %v2457, %v2505
        %v2507 = vpop.f32.mrf.mxu0
        %v2508 = vadd.f32 %v2459, %v2507
        %2509 = vmatmul.bf16.gmra.mxu0 %v336
        %v2510 = vpop.f32.mrf.mxu0
        %v2511 = vadd.f32 %v2462, %v2510
        %v2512 = vpop.f32.mrf.mxu0
        %v2513 = vadd.f32 %v2464, %v2512
        %2514 = vdwg.mxu0
        %2515 = vmatpush.bf16.msra.mxu0 %v1462
        %2516 = vmatpush.bf16.msra.mxu0 %v1453
        %2517 = vmatpush.bf16.msra.mxu0 %v1444
        %2518 = vmatpush.bf16.msra.mxu0 %v1435
        %2519 = vmatpush.bf16.msra.mxu0 %v1426
        %2520 = vmatpush.bf16.msra.mxu0 %v1417
        %2521 = vmatpush.bf16.msra.mxu0 %v1408
        %2522 = vmatpush.bf16.msra.mxu0 %v1399
        %2523 = vmatmul.bf16.gmra.mxu0 %v316
        %v2524 = vpop.f32.mrf.mxu0
        %v2525 = vadd.f32 %v2476, %v2524
        %v2526 = vpop.f32.mrf.mxu0
        %v2527 = vadd.f32 %v2478, %v2526
        %2528 = vmatmul.bf16.gmra.mxu0 %v319
        %v2529 = vpop.f32.mrf.mxu0
        %v2530 = vadd.f32 %v2481, %v2529
        %v2531 = vpop.f32.mrf.mxu0
        %v2532 = vadd.f32 %v2483, %v2531
        %2533 = vmatmul.bf16.gmra.mxu0 %v322
        %v2534 = vpop.f32.mrf.mxu0
        %v2535 = vadd.f32 %v2486, %v2534
        %v2536 = vpop.f32.mrf.mxu0
        %v2537 = vadd.f32 %v2488, %v2536
        %2538 = vmatmul.bf16.gmra.mxu0 %v325
        %v2539 = vpop.f32.mrf.mxu0
        %v2540 = vadd.f32 %v2491, %v2539
        %v2541 = vpop.f32.mrf.mxu0
        %v2542 = vadd.f32 %v2493, %v2541
        %2543 = vmatmul.bf16.gmra.mxu0 %v328
        %v2544 = vpop.f32.mrf.mxu0
        %v2545 = vadd.f32 %v2496, %v2544
        %v2546 = vpop.f32.mrf.mxu0
        %v2547 = vadd.f32 %v2498, %v2546
        %2548 = vmatmul.bf16.gmra.mxu0 %v331
        %v2549 = vpop.f32.mrf.mxu0
        %v2550 = vadd.f32 %v2501, %v2549
        %v2551 = vpop.f32.mrf.mxu0
        %v2552 = vadd.f32 %v2503, %v2551
        %2553 = vmatmul.bf16.gmra.mxu0 %v334
        %v2554 = vpop.f32.mrf.mxu0
        %v2555 = vadd.f32 %v2506, %v2554
        %v2556 = vpop.f32.mrf.mxu0
        %v2557 = vadd.f32 %v2508, %v2556
        %2558 = vmatmul.bf16.gmra.mxu0 %v337
        %v2559 = vpop.f32.mrf.mxu0
        %v2560 = vadd.f32 %v2511, %v2559
        %v2561 = vpop.f32.mrf.mxu0
        %v2562 = vadd.f32 %v2513, %v2561
        %2563 = vdwg.mxu0
        %2564 = vmatpush.bf16.msra.mxu0 %v1319
        %2565 = vmatpush.bf16.msra.mxu0 %v1310
        %2566 = vmatpush.bf16.msra.mxu0 %v1301
        %2567 = vmatpush.bf16.msra.mxu0 %v1292
        %2568 = vmatpush.bf16.msra.mxu0 %v1283
        %2569 = vmatpush.bf16.msra.mxu0 %v1274
        %2570 = vmatpush.bf16.msra.mxu0 %v1265
        %2571 = vmatpush.bf16.msra.mxu0 %v1256
        %2572 = vmatmul.bf16.gmra.mxu0 %v314
        %v2573 = vpop.f32.mrf.mxu0
        %v2574 = vadd.f32 0.0, %v2573
        %v2575 = vpop.f32.mrf.mxu0
        %v2576 = vadd.f32 0.0, %v2575
        %2577 = vmatmul.bf16.gmra.mxu0 %v317
        %v2578 = vpop.f32.mrf.mxu0
        %v2579 = vadd.f32 0.0, %v2578
        %v2580 = vpop.f32.mrf.mxu0
        %v2581 = vadd.f32 0.0, %v2580
        %2582 = vmatmul.bf16.gmra.mxu0 %v320
        %v2583 = vpop.f32.mrf.mxu0
        %v2584 = vadd.f32 0.0, %v2583
        %v2585 = vpop.f32.mrf.mxu0
        %v2586 = vadd.f32 0.0, %v2585
        %2587 = vmatmul.bf16.gmra.mxu0 %v323
        %v2588 = vpop.f32.mrf.mxu0
        %v2589 = vadd.f32 0.0, %v2588
        %v2590 = vpop.f32.mrf.mxu0
        %v2591 = vadd.f32 0.0, %v2590
        %2592 = vmatmul.bf16.gmra.mxu0 %v326
        %v2593 = vpop.f32.mrf.mxu0
        %v2594 = vadd.f32 0.0, %v2593
        %v2595 = vpop.f32.mrf.mxu0
        %v2596 = vadd.f32 0.0, %v2595
        %2597 = vmatmul.bf16.gmra.mxu0 %v329
        %v2598 = vpop.f32.mrf.mxu0
        %v2599 = vadd.f32 0.0, %v2598
        %v2600 = vpop.f32.mrf.mxu0
        %v2601 = vadd.f32 0.0, %v2600
        %2602 = vmatmul.bf16.gmra.mxu0 %v332
        %v2603 = vpop.f32.mrf.mxu0
        %v2604 = vadd.f32 0.0, %v2603
        %v2605 = vpop.f32.mrf.mxu0
        %v2606 = vadd.f32 0.0, %v2605
        %2607 = vmatmul.bf16.gmra.mxu0 %v335
        %v2608 = vpop.f32.mrf.mxu0
        %v2609 = vadd.f32 0.0, %v2608
        %v2610 = vpop.f32.mrf.mxu0
        %v2611 = vadd.f32 0.0, %v2610
        %2612 = vdwg.mxu0
        %2613 = vmatpush.bf16.msra.mxu0 %v1391
        %2614 = vmatpush.bf16.msra.mxu0 %v1382
        %2615 = vmatpush.bf16.msra.mxu0 %v1373
        %2616 = vmatpush.bf16.msra.mxu0 %v1364
        %2617 = vmatpush.bf16.msra.mxu0 %v1355
        %2618 = vmatpush.bf16.msra.mxu0 %v1346
        %2619 = vmatpush.bf16.msra.mxu0 %v1337
        %2620 = vmatpush.bf16.msra.mxu0 %v1328
        %2621 = vmatmul.bf16.gmra.mxu0 %v315
        %v2622 = vpop.f32.mrf.mxu0
        %v2623 = vadd.f32 %v2574, %v2622
        %v2624 = vpop.f32.mrf.mxu0
        %v2625 = vadd.f32 %v2576, %v2624
        %2626 = vmatmul.bf16.gmra.mxu0 %v318
        %v2627 = vpop.f32.mrf.mxu0
        %v2628 = vadd.f32 %v2579, %v2627
        %v2629 = vpop.f32.mrf.mxu0
        %v2630 = vadd.f32 %v2581, %v2629
        %2631 = vmatmul.bf16.gmra.mxu0 %v321
        %v2632 = vpop.f32.mrf.mxu0
        %v2633 = vadd.f32 %v2584, %v2632
        %v2634 = vpop.f32.mrf.mxu0
        %v2635 = vadd.f32 %v2586, %v2634
        %2636 = vmatmul.bf16.gmra.mxu0 %v324
        %v2637 = vpop.f32.mrf.mxu0
        %v2638 = vadd.f32 %v2589, %v2637
        %v2639 = vpop.f32.mrf.mxu0
        %v2640 = vadd.f32 %v2591, %v2639
        %2641 = vmatmul.bf16.gmra.mxu0 %v327
        %v2642 = vpop.f32.mrf.mxu0
        %v2643 = vadd.f32 %v2594, %v2642
        %v2644 = vpop.f32.mrf.mxu0
        %v2645 = vadd.f32 %v2596, %v2644
        %2646 = vmatmul.bf16.gmra.mxu0 %v330
        %v2647 = vpop.f32.mrf.mxu0
        %v2648 = vadd.f32 %v2599, %v2647
        %v2649 = vpop.f32.mrf.mxu0
        %v2650 = vadd.f32 %v2601, %v2649
        %2651 = vmatmul.bf16.gmra.mxu0 %v333
        %v2652 = vpop.f32.mrf.mxu0
        %v2653 = vadd.f32 %v2604, %v2652
        %v2654 = vpop.f32.mrf.mxu0
        %v2655 = vadd.f32 %v2606, %v2654
        %2656 = vmatmul.bf16.gmra.mxu0 %v336
        %v2657 = vpop.f32.mrf.mxu0
        %v2658 = vadd.f32 %v2609, %v2657
        %v2659 = vpop.f32.mrf.mxu0
        %v2660 = vadd.f32 %v2611, %v2659
        %2661 = vdwg.mxu0
        %2662 = vmatpush.bf16.msra.mxu0 %v1463
        %2663 = vmatpush.bf16.msra.mxu0 %v1454
        %2664 = vmatpush.bf16.msra.mxu0 %v1445
        %2665 = vmatpush.bf16.msra.mxu0 %v1436
        %2666 = vmatpush.bf16.msra.mxu0 %v1427
        %2667 = vmatpush.bf16.msra.mxu0 %v1418
        %2668 = vmatpush.bf16.msra.mxu0 %v1409
        %2669 = vmatpush.bf16.msra.mxu0 %v1400
        %2670 = vmatmul.bf16.gmra.mxu0 %v316
        %v2671 = vpop.f32.mrf.mxu0
        %v2672 = vadd.f32 %v2623, %v2671
        %v2673 = vpop.f32.mrf.mxu0
        %v2674 = vadd.f32 %v2625, %v2673
        %2675 = vmatmul.bf16.gmra.mxu0 %v319
        %v2676 = vpop.f32.mrf.mxu0
        %v2677 = vadd.f32 %v2628, %v2676
        %v2678 = vpop.f32.mrf.mxu0
        %v2679 = vadd.f32 %v2630, %v2678
        %2680 = vmatmul.bf16.gmra.mxu0 %v322
        %v2681 = vpop.f32.mrf.mxu0
        %v2682 = vadd.f32 %v2633, %v2681
        %v2683 = vpop.f32.mrf.mxu0
        %v2684 = vadd.f32 %v2635, %v2683
        %2685 = vmatmul.bf16.gmra.mxu0 %v325
        %v2686 = vpop.f32.mrf.mxu0
        %v2687 = vadd.f32 %v2638, %v2686
        %v2688 = vpop.f32.mrf.mxu0
        %v2689 = vadd.f32 %v2640, %v2688
        %2690 = vmatmul.bf16.gmra.mxu0 %v328
        %v2691 = vpop.f32.mrf.mxu0
        %v2692 = vadd.f32 %v2643, %v2691
        %v2693 = vpop.f32.mrf.mxu0
        %v2694 = vadd.f32 %v2645, %v2693
        %2695 = vmatmul.bf16.gmra.mxu0 %v331
        %v2696 = vpop.f32.mrf.mxu0
        %v2697 = vadd.f32 %v2648, %v2696
        %v2698 = vpop.f32.mrf.mxu0
        %v2699 = vadd.f32 %v2650, %v2698
        %2700 = vmatmul.bf16.gmra.mxu0 %v334
        %v2701 = vpop.f32.mrf.mxu0
        %v2702 = vadd.f32 %v2653, %v2701
        %v2703 = vpop.f32.mrf.mxu0
        %v2704 = vadd.f32 %v2655, %v2703
        %2705 = vmatmul.bf16.gmra.mxu0 %v337
        %v2706 = vpop.f32.mrf.mxu0
        %v2707 = vadd.f32 %v2658, %v2706
        %v2708 = vpop.f32.mrf.mxu0
        %v2709 = vadd.f32 %v2660, %v2708
        %2710 = vdwg.mxu0
        %2711 = vmatpush.bf16.msra.mxu0 %v1320
        %2712 = vmatpush.bf16.msra.mxu0 %v1311
        %2713 = vmatpush.bf16.msra.mxu0 %v1302
        %2714 = vmatpush.bf16.msra.mxu0 %v1293
        %2715 = vmatpush.bf16.msra.mxu0 %v1284
        %2716 = vmatpush.bf16.msra.mxu0 %v1275
        %2717 = vmatpush.bf16.msra.mxu0 %v1266
        %2718 = vmatpush.bf16.msra.mxu0 %v1257
        %2719 = vmatmul.bf16.gmra.mxu0 %v314
        %v2720 = vpop.f32.mrf.mxu0
        %v2721 = vadd.f32 0.0, %v2720
        %v2722 = vpop.f32.mrf.mxu0
        %v2723 = vadd.f32 0.0, %v2722
        %2724 = vmatmul.bf16.gmra.mxu0 %v317
        %v2725 = vpop.f32.mrf.mxu0
        %v2726 = vadd.f32 0.0, %v2725
        %v2727 = vpop.f32.mrf.mxu0
        %v2728 = vadd.f32 0.0, %v2727
        %2729 = vmatmul.bf16.gmra.mxu0 %v320
        %v2730 = vpop.f32.mrf.mxu0
        %v2731 = vadd.f32 0.0, %v2730
        %v2732 = vpop.f32.mrf.mxu0
        %v2733 = vadd.f32 0.0, %v2732
        %2734 = vmatmul.bf16.gmra.mxu0 %v323
        %v2735 = vpop.f32.mrf.mxu0
        %v2736 = vadd.f32 0.0, %v2735
        %v2737 = vpop.f32.mrf.mxu0
        %v2738 = vadd.f32 0.0, %v2737
        %2739 = vmatmul.bf16.gmra.mxu0 %v326
        %v2740 = vpop.f32.mrf.mxu0
        %v2741 = vadd.f32 0.0, %v2740
        %v2742 = vpop.f32.mrf.mxu0
        %v2743 = vadd.f32 0.0, %v2742
        %2744 = vmatmul.bf16.gmra.mxu0 %v329
        %v2745 = vpop.f32.mrf.mxu0
        %v2746 = vadd.f32 0.0, %v2745
        %v2747 = vpop.f32.mrf.mxu0
        %v2748 = vadd.f32 0.0, %v2747
        %2749 = vmatmul.bf16.gmra.mxu0 %v332
        %v2750 = vpop.f32.mrf.mxu0
        %v2751 = vadd.f32 0.0, %v2750
        %v2752 = vpop.f32.mrf.mxu0
        %v2753 = vadd.f32 0.0, %v2752
        %2754 = vmatmul.bf16.gmra.mxu0 %v335
        %v2755 = vpop.f32.mrf.mxu0
        %v2756 = vadd.f32 0.0, %v2755
        %v2757 = vpop.f32.mrf.mxu0
        %v2758 = vadd.f32 0.0, %v2757
        %2759 = vdwg.mxu0
        %2760 = vmatpush.bf16.msra.mxu0 %v1392
        %2761 = vmatpush.bf16.msra.mxu0 %v1383
        %2762 = vmatpush.bf16.msra.mxu0 %v1374
        %2763 = vmatpush.bf16.msra.mxu0 %v1365
        %2764 = vmatpush.bf16.msra.mxu0 %v1356
        %2765 = vmatpush.bf16.msra.mxu0 %v1347
        %2766 = vmatpush.bf16.msra.mxu0 %v1338
        %2767 = vmatpush.bf16.msra.mxu0 %v1329
        %2768 = vmatmul.bf16.gmra.mxu0 %v315
        %v2769 = vpop.f32.mrf.mxu0
        %v2770 = vadd.f32 %v2721, %v2769
        %v2771 = vpop.f32.mrf.mxu0
        %v2772 = vadd.f32 %v2723, %v2771
        %2773 = vmatmul.bf16.gmra.mxu0 %v318
        %v2774 = vpop.f32.mrf.mxu0
        %v2775 = vadd.f32 %v2726, %v2774
        %v2776 = vpop.f32.mrf.mxu0
        %v2777 = vadd.f32 %v2728, %v2776
        %2778 = vmatmul.bf16.gmra.mxu0 %v321
        %v2779 = vpop.f32.mrf.mxu0
        %v2780 = vadd.f32 %v2731, %v2779
        %v2781 = vpop.f32.mrf.mxu0
        %v2782 = vadd.f32 %v2733, %v2781
        %2783 = vmatmul.bf16.gmra.mxu0 %v324
        %v2784 = vpop.f32.mrf.mxu0
        %v2785 = vadd.f32 %v2736, %v2784
        %v2786 = vpop.f32.mrf.mxu0
        %v2787 = vadd.f32 %v2738, %v2786
        %2788 = vmatmul.bf16.gmra.mxu0 %v327
        %v2789 = vpop.f32.mrf.mxu0
        %v2790 = vadd.f32 %v2741, %v2789
        %v2791 = vpop.f32.mrf.mxu0
        %v2792 = vadd.f32 %v2743, %v2791
        %2793 = vmatmul.bf16.gmra.mxu0 %v330
        %v2794 = vpop.f32.mrf.mxu0
        %v2795 = vadd.f32 %v2746, %v2794
        %v2796 = vpop.f32.mrf.mxu0
        %v2797 = vadd.f32 %v2748, %v2796
        %2798 = vmatmul.bf16.gmra.mxu0 %v333
        %v2799 = vpop.f32.mrf.mxu0
        %v2800 = vadd.f32 %v2751, %v2799
        %v2801 = vpop.f32.mrf.mxu0
        %v2802 = vadd.f32 %v2753, %v2801
        %2803 = vmatmul.bf16.gmra.mxu0 %v336
        %v2804 = vpop.f32.mrf.mxu0
        %v2805 = vadd.f32 %v2756, %v2804
        %v2806 = vpop.f32.mrf.mxu0
        %v2807 = vadd.f32 %v2758, %v2806
        %2808 = vdwg.mxu0
        %2809 = vmatpush.bf16.msra.mxu0 %v1464
        %2810 = vmatpush.bf16.msra.mxu0 %v1455
        %2811 = vmatpush.bf16.msra.mxu0 %v1446
        %2812 = vmatpush.bf16.msra.mxu0 %v1437
        %2813 = vmatpush.bf16.msra.mxu0 %v1428
        %2814 = vmatpush.bf16.msra.mxu0 %v1419
        %2815 = vmatpush.bf16.msra.mxu0 %v1410
        %2816 = vmatpush.bf16.msra.mxu0 %v1401
        %2817 = vmatmul.bf16.gmra.mxu0 %v316
        %v2818 = vpop.f32.mrf.mxu0
        %v2819 = vadd.f32 %v2770, %v2818
        %v2820 = vpop.f32.mrf.mxu0
        %v2821 = vadd.f32 %v2772, %v2820
        %2822 = vmatmul.bf16.gmra.mxu0 %v319
        %v2823 = vpop.f32.mrf.mxu0
        %v2824 = vadd.f32 %v2775, %v2823
        %v2825 = vpop.f32.mrf.mxu0
        %v2826 = vadd.f32 %v2777, %v2825
        %2827 = vmatmul.bf16.gmra.mxu0 %v322
        %v2828 = vpop.f32.mrf.mxu0
        %v2829 = vadd.f32 %v2780, %v2828
        %v2830 = vpop.f32.mrf.mxu0
        %v2831 = vadd.f32 %v2782, %v2830
        %2832 = vmatmul.bf16.gmra.mxu0 %v325
        %v2833 = vpop.f32.mrf.mxu0
        %v2834 = vadd.f32 %v2785, %v2833
        %v2835 = vpop.f32.mrf.mxu0
        %v2836 = vadd.f32 %v2787, %v2835
        %2837 = vmatmul.bf16.gmra.mxu0 %v328
        %v2838 = vpop.f32.mrf.mxu0
        %v2839 = vadd.f32 %v2790, %v2838
        %v2840 = vpop.f32.mrf.mxu0
        %v2841 = vadd.f32 %v2792, %v2840
        %2842 = vmatmul.bf16.gmra.mxu0 %v331
        %v2843 = vpop.f32.mrf.mxu0
        %v2844 = vadd.f32 %v2795, %v2843
        %v2845 = vpop.f32.mrf.mxu0
        %v2846 = vadd.f32 %v2797, %v2845
        %2847 = vmatmul.bf16.gmra.mxu0 %v334
        %v2848 = vpop.f32.mrf.mxu0
        %v2849 = vadd.f32 %v2800, %v2848
        %v2850 = vpop.f32.mrf.mxu0
        %v2851 = vadd.f32 %v2802, %v2850
        %2852 = vmatmul.bf16.gmra.mxu0 %v337
        %v2853 = vpop.f32.mrf.mxu0
        %v2854 = vadd.f32 %v2805, %v2853
        %v2855 = vpop.f32.mrf.mxu0
        %v2856 = vadd.f32 %v2807, %v2855
        %2857 = vdwg.mxu0
        %2858 = vmatpush.bf16.msra.mxu0 %v1321
        %2859 = vmatpush.bf16.msra.mxu0 %v1312
        %2860 = vmatpush.bf16.msra.mxu0 %v1303
        %2861 = vmatpush.bf16.msra.mxu0 %v1294
        %2862 = vmatpush.bf16.msra.mxu0 %v1285
        %2863 = vmatpush.bf16.msra.mxu0 %v1276
        %2864 = vmatpush.bf16.msra.mxu0 %v1267
        %2865 = vmatpush.bf16.msra.mxu0 %v1258
        %2866 = vmatmul.bf16.gmra.mxu0 %v314
        %v2867 = vpop.f32.mrf.mxu0
        %v2868 = vadd.f32 0.0, %v2867
        %v2869 = vpop.f32.mrf.mxu0
        %v2870 = vadd.f32 0.0, %v2869
        %2871 = vmatmul.bf16.gmra.mxu0 %v317
        %v2872 = vpop.f32.mrf.mxu0
        %v2873 = vadd.f32 0.0, %v2872
        %v2874 = vpop.f32.mrf.mxu0
        %v2875 = vadd.f32 0.0, %v2874
        %2876 = vmatmul.bf16.gmra.mxu0 %v320
        %v2877 = vpop.f32.mrf.mxu0
        %v2878 = vadd.f32 0.0, %v2877
        %v2879 = vpop.f32.mrf.mxu0
        %v2880 = vadd.f32 0.0, %v2879
        %2881 = vmatmul.bf16.gmra.mxu0 %v323
        %v2882 = vpop.f32.mrf.mxu0
        %v2883 = vadd.f32 0.0, %v2882
        %v2884 = vpop.f32.mrf.mxu0
        %v2885 = vadd.f32 0.0, %v2884
        %2886 = vmatmul.bf16.gmra.mxu0 %v326
        %v2887 = vpop.f32.mrf.mxu0
        %v2888 = vadd.f32 0.0, %v2887
        %v2889 = vpop.f32.mrf.mxu0
        %v2890 = vadd.f32 0.0, %v2889
        %2891 = vmatmul.bf16.gmra.mxu0 %v329
        %v2892 = vpop.f32.mrf.mxu0
        %v2893 = vadd.f32 0.0, %v2892
        %v2894 = vpop.f32.mrf.mxu0
        %v2895 = vadd.f32 0.0, %v2894
        %2896 = vmatmul.bf16.gmra.mxu0 %v332
        %v2897 = vpop.f32.mrf.mxu0
        %v2898 = vadd.f32 0.0, %v2897
        %v2899 = vpop.f32.mrf.mxu0
        %v2900 = vadd.f32 0.0, %v2899
        %2901 = vmatmul.bf16.gmra.mxu0 %v335
        %v2902 = vpop.f32.mrf.mxu0
        %v2903 = vadd.f32 0.0, %v2902
        %v2904 = vpop.f32.mrf.mxu0
        %v2905 = vadd.f32 0.0, %v2904
        %2906 = vdwg.mxu0
        %2907 = vmatpush.bf16.msra.mxu0 %v1393
        %2908 = vmatpush.bf16.msra.mxu0 %v1384
        %2909 = vmatpush.bf16.msra.mxu0 %v1375
        %2910 = vmatpush.bf16.msra.mxu0 %v1366
        %2911 = vmatpush.bf16.msra.mxu0 %v1357
        %2912 = vmatpush.bf16.msra.mxu0 %v1348
        %2913 = vmatpush.bf16.msra.mxu0 %v1339
        %2914 = vmatpush.bf16.msra.mxu0 %v1330
        %2915 = vmatmul.bf16.gmra.mxu0 %v315
        %v2916 = vpop.f32.mrf.mxu0
        %v2917 = vadd.f32 %v2868, %v2916
        %v2918 = vpop.f32.mrf.mxu0
        %v2919 = vadd.f32 %v2870, %v2918
        %2920 = vmatmul.bf16.gmra.mxu0 %v318
        %v2921 = vpop.f32.mrf.mxu0
        %v2922 = vadd.f32 %v2873, %v2921
        %v2923 = vpop.f32.mrf.mxu0
        %v2924 = vadd.f32 %v2875, %v2923
        %2925 = vmatmul.bf16.gmra.mxu0 %v321
        %v2926 = vpop.f32.mrf.mxu0
        %v2927 = vadd.f32 %v2878, %v2926
        %v2928 = vpop.f32.mrf.mxu0
        %v2929 = vadd.f32 %v2880, %v2928
        %2930 = vmatmul.bf16.gmra.mxu0 %v324
        %v2931 = vpop.f32.mrf.mxu0
        %v2932 = vadd.f32 %v2883, %v2931
        %v2933 = vpop.f32.mrf.mxu0
        %v2934 = vadd.f32 %v2885, %v2933
        %2935 = vmatmul.bf16.gmra.mxu0 %v327
        %v2936 = vpop.f32.mrf.mxu0
        %v2937 = vadd.f32 %v2888, %v2936
        %v2938 = vpop.f32.mrf.mxu0
        %v2939 = vadd.f32 %v2890, %v2938
        %2940 = vmatmul.bf16.gmra.mxu0 %v330
        %v2941 = vpop.f32.mrf.mxu0
        %v2942 = vadd.f32 %v2893, %v2941
        %v2943 = vpop.f32.mrf.mxu0
        %v2944 = vadd.f32 %v2895, %v2943
        %2945 = vmatmul.bf16.gmra.mxu0 %v333
        %v2946 = vpop.f32.mrf.mxu0
        %v2947 = vadd.f32 %v2898, %v2946
        %v2948 = vpop.f32.mrf.mxu0
        %v2949 = vadd.f32 %v2900, %v2948
        %2950 = vmatmul.bf16.gmra.mxu0 %v336
        %v2951 = vpop.f32.mrf.mxu0
        %v2952 = vadd.f32 %v2903, %v2951
        %v2953 = vpop.f32.mrf.mxu0
        %v2954 = vadd.f32 %v2905, %v2953
        %2955 = vdwg.mxu0
        %2956 = vmatpush.bf16.msra.mxu0 %v1465
        %2957 = vmatpush.bf16.msra.mxu0 %v1456
        %2958 = vmatpush.bf16.msra.mxu0 %v1447
        %2959 = vmatpush.bf16.msra.mxu0 %v1438
        %2960 = vmatpush.bf16.msra.mxu0 %v1429
        %2961 = vmatpush.bf16.msra.mxu0 %v1420
        %2962 = vmatpush.bf16.msra.mxu0 %v1411
        %2963 = vmatpush.bf16.msra.mxu0 %v1402
        %2964 = vmatmul.bf16.gmra.mxu0 %v316
        %v2965 = vpop.f32.mrf.mxu0
        %v2966 = vadd.f32 %v2917, %v2965
        %v2967 = vpop.f32.mrf.mxu0
        %v2968 = vadd.f32 %v2919, %v2967
        %2969 = vmatmul.bf16.gmra.mxu0 %v319
        %v2970 = vpop.f32.mrf.mxu0
        %v2971 = vadd.f32 %v2922, %v2970
        %v2972 = vpop.f32.mrf.mxu0
        %v2973 = vadd.f32 %v2924, %v2972
        %2974 = vmatmul.bf16.gmra.mxu0 %v322
        %v2975 = vpop.f32.mrf.mxu0
        %v2976 = vadd.f32 %v2927, %v2975
        %v2977 = vpop.f32.mrf.mxu0
        %v2978 = vadd.f32 %v2929, %v2977
        %2979 = vmatmul.bf16.gmra.mxu0 %v325
        %v2980 = vpop.f32.mrf.mxu0
        %v2981 = vadd.f32 %v2932, %v2980
        %v2982 = vpop.f32.mrf.mxu0
        %v2983 = vadd.f32 %v2934, %v2982
        %2984 = vmatmul.bf16.gmra.mxu0 %v328
        %v2985 = vpop.f32.mrf.mxu0
        %v2986 = vadd.f32 %v2937, %v2985
        %v2987 = vpop.f32.mrf.mxu0
        %v2988 = vadd.f32 %v2939, %v2987
        %2989 = vmatmul.bf16.gmra.mxu0 %v331
        %v2990 = vpop.f32.mrf.mxu0
        %v2991 = vadd.f32 %v2942, %v2990
        %v2992 = vpop.f32.mrf.mxu0
        %v2993 = vadd.f32 %v2944, %v2992
        %2994 = vmatmul.bf16.gmra.mxu0 %v334
        %v2995 = vpop.f32.mrf.mxu0
        %v2996 = vadd.f32 %v2947, %v2995
        %v2997 = vpop.f32.mrf.mxu0
        %v2998 = vadd.f32 %v2949, %v2997
        %2999 = vmatmul.bf16.gmra.mxu0 %v337
        %v3000 = vpop.f32.mrf.mxu0
        %v3001 = vadd.f32 %v2952, %v3000
        %v3002 = vpop.f32.mrf.mxu0
        %v3003 = vadd.f32 %v2954, %v3002
        %3004 = vdwg.mxu0
        %v3005 = vpack.c.bf16 %v1937, %v1790
        %v3006 = vpack.c.bf16 %v2231, %v2084
        %v3007 = vpack.c.bf16 %v2525, %v2378
        %v3008 = vpack.c.bf16 %v2819, %v2672
        %v3009 = vpack.c.bf16 %v2966, %v2966
        %v3010 = vpack.c.bf16 %v1939, %v1792
        %v3011 = vpack.c.bf16 %v2233, %v2086
        %v3012 = vpack.c.bf16 %v2527, %v2380
        %v3013 = vpack.c.bf16 %v2821, %v2674
        %v3014 = vpack.c.bf16 %v2968, %v2968
        %v3015 = vpack.c.bf16 %v1942, %v1795
        %v3016 = vpack.c.bf16 %v2236, %v2089
        %v3017 = vpack.c.bf16 %v2530, %v2383
        %v3018 = vpack.c.bf16 %v2824, %v2677
        %v3019 = vpack.c.bf16 %v2971, %v2971
        %v3020 = vpack.c.bf16 %v1944, %v1797
        %v3021 = vpack.c.bf16 %v2238, %v2091
        %v3022 = vpack.c.bf16 %v2532, %v2385
        %v3023 = vpack.c.bf16 %v2826, %v2679
        %v3024 = vpack.c.bf16 %v2973, %v2973
        %v3025 = vpack.c.bf16 %v1947, %v1800
        %v3026 = vpack.c.bf16 %v2241, %v2094
        %v3027 = vpack.c.bf16 %v2535, %v2388
        %v3028 = vpack.c.bf16 %v2829, %v2682
        %v3029 = vpack.c.bf16 %v2976, %v2976
        %v3030 = vpack.c.bf16 %v1949, %v1802
        %v3031 = vpack.c.bf16 %v2243, %v2096
        %v3032 = vpack.c.bf16 %v2537, %v2390
        %v3033 = vpack.c.bf16 %v2831, %v2684
        %v3034 = vpack.c.bf16 %v2978, %v2978
        %v3035 = vpack.c.bf16 %v1952, %v1805
        %v3036 = vpack.c.bf16 %v2246, %v2099
        %v3037 = vpack.c.bf16 %v2540, %v2393
        %v3038 = vpack.c.bf16 %v2834, %v2687
        %v3039 = vpack.c.bf16 %v2981, %v2981
        %v3040 = vpack.c.bf16 %v1954, %v1807
        %v3041 = vpack.c.bf16 %v2248, %v2101
        %v3042 = vpack.c.bf16 %v2542, %v2395
        %v3043 = vpack.c.bf16 %v2836, %v2689
        %v3044 = vpack.c.bf16 %v2983, %v2983
        %v3045 = vpack.c.bf16 %v1957, %v1810
        %v3046 = vpack.c.bf16 %v2251, %v2104
        %v3047 = vpack.c.bf16 %v2545, %v2398
        %v3048 = vpack.c.bf16 %v2839, %v2692
        %v3049 = vpack.c.bf16 %v2986, %v2986
        %v3050 = vpack.c.bf16 %v1959, %v1812
        %v3051 = vpack.c.bf16 %v2253, %v2106
        %v3052 = vpack.c.bf16 %v2547, %v2400
        %v3053 = vpack.c.bf16 %v2841, %v2694
        %v3054 = vpack.c.bf16 %v2988, %v2988
        %v3055 = vpack.c.bf16 %v1962, %v1815
        %v3056 = vpack.c.bf16 %v2256, %v2109
        %v3057 = vpack.c.bf16 %v2550, %v2403
        %v3058 = vpack.c.bf16 %v2844, %v2697
        %v3059 = vpack.c.bf16 %v2991, %v2991
        %v3060 = vpack.c.bf16 %v1964, %v1817
        %v3061 = vpack.c.bf16 %v2258, %v2111
        %v3062 = vpack.c.bf16 %v2552, %v2405
        %v3063 = vpack.c.bf16 %v2846, %v2699
        %v3064 = vpack.c.bf16 %v2993, %v2993
        %v3065 = vpack.c.bf16 %v1967, %v1820
        %v3066 = vpack.c.bf16 %v2261, %v2114
        %v3067 = vpack.c.bf16 %v2555, %v2408
        %v3068 = vpack.c.bf16 %v2849, %v2702
        %v3069 = vpack.c.bf16 %v2996, %v2996
        %v3070 = vpack.c.bf16 %v1969, %v1822
        %v3071 = vpack.c.bf16 %v2263, %v2116
        %v3072 = vpack.c.bf16 %v2557, %v2410
        %v3073 = vpack.c.bf16 %v2851, %v2704
        %v3074 = vpack.c.bf16 %v2998, %v2998
        %v3075 = vpack.c.bf16 %v1972, %v1825
        %v3076 = vpack.c.bf16 %v2266, %v2119
        %v3077 = vpack.c.bf16 %v2560, %v2413
        %v3078 = vpack.c.bf16 %v2854, %v2707
        %v3079 = vpack.c.bf16 %v3001, %v3001
        %v3080 = vpack.c.bf16 %v1974, %v1827
        %v3081 = vpack.c.bf16 %v2268, %v2121
        %v3082 = vpack.c.bf16 %v2562, %v2415
        %v3083 = vpack.c.bf16 %v2856, %v2709
        %v3084 = vpack.c.bf16 %v3003, %v3003
        %v3085 = vlaneseq
        %v3086 = vshrl.u32 %v3085, 7
        %v3087 = vadd.s32 %v3086, 8
        %v3088 = vadd.s32 %v3086, 16
        %v3089 = vadd.s32 %v3086, 24
        %v3090 = vadd.s32 %v3086, 32
        %v3091 = vadd.s32 %v3086, 40
        %v3092 = vadd.s32 %v3086, 48
        %v3093 = vadd.s32 %v3086, 56
        %v3094 = vadd.s32 %v3086, 64
        %v3095 = vadd.s32 %v3086, 72
        %v3096 = vadd.s32 %v3086, 80
        %v3097 = vadd.s32 %v3086, 88
        %v3098 = vadd.s32 %v3086, 96
        %v3099 = vadd.s32 %v3086, 104
        %v3100 = vadd.s32 %v3086, 112
        %v3101 = vadd.s32 %v3086, 120
        %v3102 = vlaneseq
        %v3103 = vand.u32 %v3102, 127
        %vm3104 = vcmp.le.s32.totalorder %v3103, %v3086
        %vm3105 = vcmp.le.s32.totalorder %v3103, %v3087
        %vm3106 = vcmp.le.s32.totalorder %v3103, %v3088
        %vm3107 = vcmp.le.s32.totalorder %v3103, %v3089
        %vm3108 = vcmp.le.s32.totalorder %v3103, %v3090
        %vm3109 = vcmp.le.s32.totalorder %v3103, %v3091
        %vm3110 = vcmp.le.s32.totalorder %v3103, %v3092
        %vm3111 = vcmp.le.s32.totalorder %v3103, %v3093
        %vm3112 = vcmp.le.s32.totalorder %v3103, %v3094
        %vm3113 = vcmp.le.s32.totalorder %v3103, %v3095
        %vm3114 = vcmp.le.s32.totalorder %v3103, %v3096
        %vm3115 = vcmp.le.s32.totalorder %v3103, %v3097
        %vm3116 = vcmp.le.s32.totalorder %v3103, %v3098
        %vm3117 = vcmp.le.s32.totalorder %v3103, %v3099
        %vm3118 = vcmp.le.s32.totalorder %v3103, %v3100
        %vm3119 = vcmp.le.s32.totalorder %v3103, %v3101
        %v3136 = vunpack.c.l.b16 %v3005
        %v3137 = vunpack.c.l.b16 %v3010
        %v3138 = vunpack.c.l.b16 %v3015
        %v3139 = vunpack.c.l.b16 %v3020
        %v3140 = vunpack.c.l.b16 %v3025
        %v3141 = vunpack.c.l.b16 %v3030
        %v3142 = vunpack.c.l.b16 %v3035
        %v3143 = vunpack.c.l.b16 %v3040
        %v3144 = vunpack.c.l.b16 %v3045
        %v3145 = vunpack.c.l.b16 %v3050
        %v3146 = vunpack.c.l.b16 %v3055
        %v3147 = vunpack.c.l.b16 %v3060
        %v3148 = vunpack.c.l.b16 %v3065
        %v3149 = vunpack.c.l.b16 %v3070
        %v3150 = vunpack.c.l.b16 %v3075
        %v3151 = vunpack.c.l.b16 %v3080
        %v3152 = vpack.c.b16 %v3137, %v3136
        %v3153 = vpack.c.b16 %v3139, %v3138
        %v3154 = vpack.c.b16 %v3141, %v3140
        %v3155 = vpack.c.b16 %v3143, %v3142
        %v3156 = vpack.c.b16 %v3145, %v3144
        %v3157 = vpack.c.b16 %v3147, %v3146
        %v3158 = vpack.c.b16 %v3149, %v3148
        %v3159 = vpack.c.b16 %v3151, %v3150
        %v3176 = vunpack.c.h.b16 %v3006
        %v3177 = vunpack.c.h.b16 %v3011
        %v3178 = vunpack.c.h.b16 %v3016
        %v3179 = vunpack.c.h.b16 %v3021
        %v3180 = vunpack.c.h.b16 %v3026
        %v3181 = vunpack.c.h.b16 %v3031
        %v3182 = vunpack.c.h.b16 %v3036
        %v3183 = vunpack.c.h.b16 %v3041
        %v3184 = vunpack.c.h.b16 %v3046
        %v3185 = vunpack.c.h.b16 %v3051
        %v3186 = vunpack.c.h.b16 %v3056
        %v3187 = vunpack.c.h.b16 %v3061
        %v3188 = vunpack.c.h.b16 %v3066
        %v3189 = vunpack.c.h.b16 %v3071
        %v3190 = vunpack.c.h.b16 %v3076
        %v3191 = vunpack.c.h.b16 %v3081
        %v3192 = vpack.c.b16 %v3177, %v3176
        %v3193 = vpack.c.b16 %v3179, %v3178
        %v3194 = vpack.c.b16 %v3181, %v3180
        %v3195 = vpack.c.b16 %v3183, %v3182
        %v3196 = vpack.c.b16 %v3185, %v3184
        %v3197 = vpack.c.b16 %v3187, %v3186
        %v3198 = vpack.c.b16 %v3189, %v3188
        %v3199 = vpack.c.b16 %v3191, %v3190
        %vm3200 = vcmask 523264
        %v3202 = vsel %vm3200, %v3152, 0
        %v3205 = vsel %vm3200, %v3153, 0
        %v3208 = vsel %vm3200, %v3154, 0
        %v3211 = vsel %vm3200, %v3155, 0
        %v3214 = vsel %vm3200, %v3156, 0
        %v3217 = vsel %vm3200, %v3157, 0
        %v3220 = vsel %vm3200, %v3158, 0
        %v3223 = vsel %vm3200, %v3159, 0
        %v3226 = vsel %vm3200, %v3192, 0
        %v3229 = vsel %vm3200, %v3193, 0
        %v3232 = vsel %vm3200, %v3194, 0
        %v3235 = vsel %vm3200, %v3195, 0
        %v3238 = vsel %vm3200, %v3196, 0
        %v3241 = vsel %vm3200, %v3197, 0
        %v3244 = vsel %vm3200, %v3198, 0
        %v3247 = vsel %vm3200, %v3199, 0
        %3249 = vmatpush.bf16.xpose.msra.mxu0 %v3247
        %3250 = vmatpush.bf16.xpose.msra.mxu0 %v3244
        %3251 = vmatpush.bf16.xpose.msra.mxu0 %v3241
        %3252 = vmatpush.bf16.xpose.msra.mxu0 %v3238
        %3253 = vmatpush.bf16.xpose.msra.mxu0 %v3235
        %3254 = vmatpush.bf16.xpose.msra.mxu0 %v3232
        %3255 = vmatpush.bf16.xpose.msra.mxu0 %v3229
        %3256 = vmatpush.bf16.xpose.msra.mxu0 %v3226
        %3257 = vmatmul.bf16.gmra.mxu0 %v3202
        %v3258 = vpop.f32.mrf.mxu0
        %v3259 = vadd.f32 0.0, %v3258
        %v3260 = vpop.f32.mrf.mxu0
        %v3261 = vadd.f32 0.0, %v3260
        %3262 = vmatmul.bf16.gmra.mxu0 %v3205
        %v3263 = vpop.f32.mrf.mxu0
        %v3264 = vadd.f32 0.0, %v3263
        %v3265 = vpop.f32.mrf.mxu0
        %v3266 = vadd.f32 0.0, %v3265
        %3267 = vmatmul.bf16.gmra.mxu0 %v3208
        %v3268 = vpop.f32.mrf.mxu0
        %v3269 = vadd.f32 0.0, %v3268
        %v3270 = vpop.f32.mrf.mxu0
        %v3271 = vadd.f32 0.0, %v3270
        %3272 = vmatmul.bf16.gmra.mxu0 %v3211
        %v3273 = vpop.f32.mrf.mxu0
        %v3274 = vadd.f32 0.0, %v3273
        %v3275 = vpop.f32.mrf.mxu0
        %v3276 = vadd.f32 0.0, %v3275
        %3277 = vmatmul.bf16.gmra.mxu0 %v3214
        %v3278 = vpop.f32.mrf.mxu0
        %v3279 = vadd.f32 0.0, %v3278
        %v3280 = vpop.f32.mrf.mxu0
        %v3281 = vadd.f32 0.0, %v3280
        %3282 = vmatmul.bf16.gmra.mxu0 %v3217
        %v3283 = vpop.f32.mrf.mxu0
        %v3284 = vadd.f32 0.0, %v3283
        %v3285 = vpop.f32.mrf.mxu0
        %v3286 = vadd.f32 0.0, %v3285
        %3287 = vmatmul.bf16.gmra.mxu0 %v3220
        %v3288 = vpop.f32.mrf.mxu0
        %v3289 = vadd.f32 0.0, %v3288
        %v3290 = vpop.f32.mrf.mxu0
        %v3291 = vadd.f32 0.0, %v3290
        %3292 = vmatmul.bf16.gmra.mxu0 %v3223
        %v3293 = vpop.f32.mrf.mxu0
        %v3294 = vadd.f32 0.0, %v3293
        %v3295 = vpop.f32.mrf.mxu0
        %v3296 = vadd.f32 0.0, %v3295
        %3297 = vdwg.mxu0
        %v3298 = vsel %vm3104, %v3259, -1e+30
        %v3299 = vsel %vm3105, %v3261, -1e+30
        %v3300 = vsel %vm3106, %v3264, -1e+30
        %v3301 = vsel %vm3107, %v3266, -1e+30
        %v3302 = vsel %vm3108, %v3269, -1e+30
        %v3303 = vsel %vm3109, %v3271, -1e+30
        %v3304 = vsel %vm3110, %v3274, -1e+30
        %v3305 = vsel %vm3111, %v3276, -1e+30
        %v3306 = vsel %vm3112, %v3279, -1e+30
        %v3307 = vsel %vm3113, %v3281, -1e+30
        %v3308 = vsel %vm3114, %v3284, -1e+30
        %v3309 = vsel %vm3115, %v3286, -1e+30
        %v3310 = vsel %vm3116, %v3289, -1e+30
        %v3311 = vsel %vm3117, %v3291, -1e+30
        %v3312 = vsel %vm3118, %v3294, -1e+30
        %v3313 = vsel %vm3119, %v3296, -1e+30
        %3314 = vmax.xlane.f32.xlu0 %v3298
        %v3315 = vpop.xlane.xlu0 %3314
        %3316 = vmax.xlane.f32.xlu0 %v3299
        %v3317 = vpop.xlane.xlu0 %3316
        %3318 = vmax.xlane.f32.xlu0 %v3300
        %v3319 = vpop.xlane.xlu0 %3318
        %3320 = vmax.xlane.f32.xlu0 %v3301
        %v3321 = vpop.xlane.xlu0 %3320
        %3322 = vmax.xlane.f32.xlu0 %v3302
        %v3323 = vpop.xlane.xlu0 %3322
        %3324 = vmax.xlane.f32.xlu0 %v3303
        %v3325 = vpop.xlane.xlu0 %3324
        %3326 = vmax.xlane.f32.xlu0 %v3304
        %v3327 = vpop.xlane.xlu0 %3326
        %3328 = vmax.xlane.f32.xlu0 %v3305
        %v3329 = vpop.xlane.xlu0 %3328
        %3330 = vmax.xlane.f32.xlu0 %v3306
        %v3331 = vpop.xlane.xlu0 %3330
        %3332 = vmax.xlane.f32.xlu0 %v3307
        %v3333 = vpop.xlane.xlu0 %3332
        %3334 = vmax.xlane.f32.xlu0 %v3308
        %v3335 = vpop.xlane.xlu0 %3334
        %3336 = vmax.xlane.f32.xlu0 %v3309
        %v3337 = vpop.xlane.xlu0 %3336
        %3338 = vmax.xlane.f32.xlu0 %v3310
        %v3339 = vpop.xlane.xlu0 %3338
        %3340 = vmax.xlane.f32.xlu0 %v3311
        %v3341 = vpop.xlane.xlu0 %3340
        %3342 = vmax.xlane.f32.xlu0 %v3312
        %v3343 = vpop.xlane.xlu0 %3342
        %3344 = vmax.xlane.f32.xlu0 %v3313
        %v3345 = vpop.xlane.xlu0 %3344
        %v3346 = vsub.f32 %v3298, %v3315
        %v3347 = vsub.f32 %v3299, %v3317
        %v3348 = vsub.f32 %v3300, %v3319
        %v3349 = vsub.f32 %v3301, %v3321
        %v3350 = vsub.f32 %v3302, %v3323
        %v3351 = vsub.f32 %v3303, %v3325
        %v3352 = vsub.f32 %v3304, %v3327
        %v3353 = vsub.f32 %v3305, %v3329
        %v3354 = vsub.f32 %v3306, %v3331
        %v3355 = vsub.f32 %v3307, %v3333
        %v3356 = vsub.f32 %v3308, %v3335
        %v3357 = vsub.f32 %v3309, %v3337
        %v3358 = vsub.f32 %v3310, %v3339
        %v3359 = vsub.f32 %v3311, %v3341
        %v3360 = vsub.f32 %v3312, %v3343
        %v3361 = vsub.f32 %v3313, %v3345
        %v3362 = vpack.c.bf16 %v3347, %v3346
        %v3363 = vpack.c.bf16 %v3349, %v3348
        %v3364 = vpack.c.bf16 %v3351, %v3350
        %v3365 = vpack.c.bf16 %v3353, %v3352
        %v3366 = vpack.c.bf16 %v3355, %v3354
        %v3367 = vpack.c.bf16 %v3357, %v3356
        %v3368 = vpack.c.bf16 %v3359, %v3358
        %v3369 = vpack.c.bf16 %v3361, %v3360
        %v3370 = vunpack.c.l.bf16 %v3362
        %v3371 = vunpack.c.h.bf16 %v3362
        %v3372 = vunpack.c.l.bf16 %v3363
        %v3373 = vunpack.c.h.bf16 %v3363
        %v3374 = vunpack.c.l.bf16 %v3364
        %v3375 = vunpack.c.h.bf16 %v3364
        %v3376 = vunpack.c.l.bf16 %v3365
        %v3377 = vunpack.c.h.bf16 %v3365
        %v3378 = vunpack.c.l.bf16 %v3366
        %v3379 = vunpack.c.h.bf16 %v3366
        %v3380 = vunpack.c.l.bf16 %v3367
        %v3381 = vunpack.c.h.bf16 %v3367
        %v3382 = vunpack.c.l.bf16 %v3368
        %v3383 = vunpack.c.h.bf16 %v3368
        %v3384 = vunpack.c.l.bf16 %v3369
        %v3385 = vunpack.c.h.bf16 %v3369
        %v3386 = vmul.f32 %v3370, 1.442695
        %v3387 = vpow.pop %v3386
        %v3388 = vmul.f32 %v3371, 1.442695
        %v3389 = vpow.pop %v3388
        %v3390 = vmul.f32 %v3372, 1.442695
        %v3391 = vpow.pop %v3390
        %v3392 = vmul.f32 %v3373, 1.442695
        %v3393 = vpow.pop %v3392
        %v3394 = vmul.f32 %v3374, 1.442695
        %v3395 = vpow.pop %v3394
        %v3396 = vmul.f32 %v3375, 1.442695
        %v3397 = vpow.pop %v3396
        %v3398 = vmul.f32 %v3376, 1.442695
        %v3399 = vpow.pop %v3398
        %v3400 = vmul.f32 %v3377, 1.442695
        %v3401 = vpow.pop %v3400
        %v3402 = vmul.f32 %v3378, 1.442695
        %v3403 = vpow.pop %v3402
        %v3404 = vmul.f32 %v3379, 1.442695
        %v3405 = vpow.pop %v3404
        %v3406 = vmul.f32 %v3380, 1.442695
        %v3407 = vpow.pop %v3406
        %v3408 = vmul.f32 %v3381, 1.442695
        %v3409 = vpow.pop %v3408
        %v3410 = vmul.f32 %v3382, 1.442695
        %v3411 = vpow.pop %v3410
        %v3412 = vmul.f32 %v3383, 1.442695
        %v3413 = vpow.pop %v3412
        %v3414 = vmul.f32 %v3384, 1.442695
        %v3415 = vpow.pop %v3414
        %v3416 = vmul.f32 %v3385, 1.442695
        %v3417 = vpow.pop %v3416
        %v3418 = vpack.c.bf16 %v3389, %v3387
        %v3419 = vpack.c.bf16 %v3393, %v3391
        %v3420 = vpack.c.bf16 %v3397, %v3395
        %v3421 = vpack.c.bf16 %v3401, %v3399
        %v3422 = vpack.c.bf16 %v3405, %v3403
        %v3423 = vpack.c.bf16 %v3409, %v3407
        %v3424 = vpack.c.bf16 %v3413, %v3411
        %v3425 = vpack.c.bf16 %v3417, %v3415
        %v3426 = vunpack.c.l.bf16 %v3418
        %v3427 = vunpack.c.h.bf16 %v3418
        %v3428 = vunpack.c.l.bf16 %v3419
        %v3429 = vunpack.c.h.bf16 %v3419
        %v3430 = vunpack.c.l.bf16 %v3420
        %v3431 = vunpack.c.h.bf16 %v3420
        %v3432 = vunpack.c.l.bf16 %v3421
        %v3433 = vunpack.c.h.bf16 %v3421
        %v3434 = vunpack.c.l.bf16 %v3422
        %v3435 = vunpack.c.h.bf16 %v3422
        %v3436 = vunpack.c.l.bf16 %v3423
        %v3437 = vunpack.c.h.bf16 %v3423
        %v3438 = vunpack.c.l.bf16 %v3424
        %v3439 = vunpack.c.h.bf16 %v3424
        %v3440 = vunpack.c.l.bf16 %v3425
        %v3441 = vunpack.c.h.bf16 %v3425
        %3442 = vadd.xlane.f32.xlu0 %v3426
        %v3443 = vpop.xlane.xlu0 %3442
        %3444 = vadd.xlane.f32.xlu0 %v3427
        %v3445 = vpop.xlane.xlu0 %3444
        %3446 = vadd.xlane.f32.xlu0 %v3428
        %v3447 = vpop.xlane.xlu0 %3446
        %3448 = vadd.xlane.f32.xlu0 %v3429
        %v3449 = vpop.xlane.xlu0 %3448
        %3450 = vadd.xlane.f32.xlu0 %v3430
        %v3451 = vpop.xlane.xlu0 %3450
        %3452 = vadd.xlane.f32.xlu0 %v3431
        %v3453 = vpop.xlane.xlu0 %3452
        %3454 = vadd.xlane.f32.xlu0 %v3432
        %v3455 = vpop.xlane.xlu0 %3454
        %3456 = vadd.xlane.f32.xlu0 %v3433
        %v3457 = vpop.xlane.xlu0 %3456
        %3458 = vadd.xlane.f32.xlu0 %v3434
        %v3459 = vpop.xlane.xlu0 %3458
        %3460 = vadd.xlane.f32.xlu0 %v3435
        %v3461 = vpop.xlane.xlu0 %3460
        %3462 = vadd.xlane.f32.xlu0 %v3436
        %v3463 = vpop.xlane.xlu0 %3462
        %3464 = vadd.xlane.f32.xlu0 %v3437
        %v3465 = vpop.xlane.xlu0 %3464
        %3466 = vadd.xlane.f32.xlu0 %v3438
        %v3467 = vpop.xlane.xlu0 %3466
        %3468 = vadd.xlane.f32.xlu0 %v3439
        %v3469 = vpop.xlane.xlu0 %3468
        %3470 = vadd.xlane.f32.xlu0 %v3440
        %v3471 = vpop.xlane.xlu0 %3470
        %3472 = vadd.xlane.f32.xlu0 %v3441
        %v3473 = vpop.xlane.xlu0 %3472
        %v3490 = vunpack.c.l.b16 %v3008
        %v3491 = vunpack.c.l.b16 %v3013
        %v3492 = vunpack.c.l.b16 %v3018
        %v3493 = vunpack.c.l.b16 %v3023
        %v3494 = vunpack.c.l.b16 %v3028
        %v3495 = vunpack.c.l.b16 %v3033
        %v3496 = vunpack.c.l.b16 %v3038
        %v3497 = vunpack.c.l.b16 %v3043
        %v3498 = vunpack.c.l.b16 %v3048
        %v3499 = vunpack.c.l.b16 %v3053
        %v3500 = vunpack.c.l.b16 %v3058
        %v3501 = vunpack.c.l.b16 %v3063
        %v3502 = vunpack.c.l.b16 %v3068
        %v3503 = vunpack.c.l.b16 %v3073
        %v3504 = vunpack.c.l.b16 %v3078
        %v3505 = vunpack.c.l.b16 %v3083
        %v3506 = vpack.c.b16 %v3491, %v3490
        %v3507 = vpack.c.b16 %v3493, %v3492
        %v3508 = vpack.c.b16 %v3495, %v3494
        %v3509 = vpack.c.b16 %v3497, %v3496
        %v3510 = vpack.c.b16 %v3499, %v3498
        %v3511 = vpack.c.b16 %v3501, %v3500
        %v3512 = vpack.c.b16 %v3503, %v3502
        %v3513 = vpack.c.b16 %v3505, %v3504
        %3522 = vmatpush.bf16.msra.mxu0 %v3513
        %3523 = vmatpush.bf16.msra.mxu0 %v3512
        %3524 = vmatpush.bf16.msra.mxu0 %v3511
        %3525 = vmatpush.bf16.msra.mxu0 %v3510
        %3526 = vmatpush.bf16.msra.mxu0 %v3509
        %3527 = vmatpush.bf16.msra.mxu0 %v3508
        %3528 = vmatpush.bf16.msra.mxu0 %v3507
        %3529 = vmatpush.bf16.msra.mxu0 %v3506
        %3530 = vmatmul.bf16.gmra.mxu0 %v3418
        %v3531 = vpop.f32.mrf.mxu0
        %v3532 = vadd.f32 0.0, %v3531
        %v3533 = vpop.f32.mrf.mxu0
        %v3534 = vadd.f32 0.0, %v3533
        %3535 = vmatmul.bf16.gmra.mxu0 %v3419
        %v3536 = vpop.f32.mrf.mxu0
        %v3537 = vadd.f32 0.0, %v3536
        %v3538 = vpop.f32.mrf.mxu0
        %v3539 = vadd.f32 0.0, %v3538
        %3540 = vmatmul.bf16.gmra.mxu0 %v3420
        %v3541 = vpop.f32.mrf.mxu0
        %v3542 = vadd.f32 0.0, %v3541
        %v3543 = vpop.f32.mrf.mxu0
        %v3544 = vadd.f32 0.0, %v3543
        %3545 = vmatmul.bf16.gmra.mxu0 %v3421
        %v3546 = vpop.f32.mrf.mxu0
        %v3547 = vadd.f32 0.0, %v3546
        %v3548 = vpop.f32.mrf.mxu0
        %v3549 = vadd.f32 0.0, %v3548
        %3550 = vmatmul.bf16.gmra.mxu0 %v3422
        %v3551 = vpop.f32.mrf.mxu0
        %v3552 = vadd.f32 0.0, %v3551
        %v3553 = vpop.f32.mrf.mxu0
        %v3554 = vadd.f32 0.0, %v3553
        %3555 = vmatmul.bf16.gmra.mxu0 %v3423
        %v3556 = vpop.f32.mrf.mxu0
        %v3557 = vadd.f32 0.0, %v3556
        %v3558 = vpop.f32.mrf.mxu0
        %v3559 = vadd.f32 0.0, %v3558
        %3560 = vmatmul.bf16.gmra.mxu0 %v3424
        %v3561 = vpop.f32.mrf.mxu0
        %v3562 = vadd.f32 0.0, %v3561
        %v3563 = vpop.f32.mrf.mxu0
        %v3564 = vadd.f32 0.0, %v3563
        %3565 = vmatmul.bf16.gmra.mxu0 %v3425
        %v3566 = vpop.f32.mrf.mxu0
        %v3567 = vadd.f32 0.0, %v3566
        %v3568 = vpop.f32.mrf.mxu0
        %v3569 = vadd.f32 0.0, %v3568
        %3570 = vdwg.mxu0
        %v3571 = vrcp.pop %v3443
        %v3572 = vrcp.pop %v3445
        %v3573 = vrcp.pop %v3447
        %v3574 = vrcp.pop %v3449
        %v3575 = vrcp.pop %v3451
        %v3576 = vrcp.pop %v3453
        %v3577 = vrcp.pop %v3455
        %v3578 = vrcp.pop %v3457
        %v3579 = vrcp.pop %v3459
        %v3580 = vrcp.pop %v3461
        %v3581 = vrcp.pop %v3463
        %v3582 = vrcp.pop %v3465
        %v3583 = vrcp.pop %v3467
        %v3584 = vrcp.pop %v3469
        %v3585 = vrcp.pop %v3471
        %v3586 = vrcp.pop %v3473
        %v3587 = vmul.f32 %v3532, %v3571
        %v3588 = vmul.f32 %v3534, %v3572
        %v3589 = vmul.f32 %v3537, %v3573
        %v3590 = vmul.f32 %v3539, %v3574
        %v3591 = vmul.f32 %v3542, %v3575
        %v3592 = vmul.f32 %v3544, %v3576
        %v3593 = vmul.f32 %v3547, %v3577
        %v3594 = vmul.f32 %v3549, %v3578
        %v3595 = vmul.f32 %v3552, %v3579
        %v3596 = vmul.f32 %v3554, %v3580
        %v3597 = vmul.f32 %v3557, %v3581
        %v3598 = vmul.f32 %v3559, %v3582
        %v3599 = vmul.f32 %v3562, %v3583
        %v3600 = vmul.f32 %v3564, %v3584
        %v3601 = vmul.f32 %v3567, %v3585
        %v3602 = vmul.f32 %v3569, %v3586
        %3603 = vrot.lane.b32.xlu0 %v3152, 64
        %v3604 = vpop.permute.xlu0 %3603
        %3605 = vrot.lane.b32.xlu0 %v3153, 64
        %v3606 = vpop.permute.xlu0 %3605
        %3607 = vrot.lane.b32.xlu0 %v3154, 64
        %v3608 = vpop.permute.xlu0 %3607
        %3609 = vrot.lane.b32.xlu0 %v3155, 64
        %v3610 = vpop.permute.xlu0 %3609
        %3611 = vrot.lane.b32.xlu0 %v3156, 64
        %v3612 = vpop.permute.xlu0 %3611
        %3613 = vrot.lane.b32.xlu0 %v3157, 64
        %v3614 = vpop.permute.xlu0 %3613
        %3615 = vrot.lane.b32.xlu0 %v3158, 64
        %v3616 = vpop.permute.xlu0 %3615
        %3617 = vrot.lane.b32.xlu0 %v3159, 64
        %v3618 = vpop.permute.xlu0 %3617
        %3619 = vrot.lane.b32.xlu0 %v3192, 64
        %v3620 = vpop.permute.xlu0 %3619
        %3621 = vrot.lane.b32.xlu0 %v3193, 64
        %v3622 = vpop.permute.xlu0 %3621
        %3623 = vrot.lane.b32.xlu0 %v3194, 64
        %v3624 = vpop.permute.xlu0 %3623
        %3625 = vrot.lane.b32.xlu0 %v3195, 64
        %v3626 = vpop.permute.xlu0 %3625
        %3627 = vrot.lane.b32.xlu0 %v3196, 64
        %v3628 = vpop.permute.xlu0 %3627
        %3629 = vrot.lane.b32.xlu0 %v3197, 64
        %v3630 = vpop.permute.xlu0 %3629
        %3631 = vrot.lane.b32.xlu0 %v3198, 64
        %v3632 = vpop.permute.xlu0 %3631
        %3633 = vrot.lane.b32.xlu0 %v3199, 64
        %v3634 = vpop.permute.xlu0 %3633
        %v3636 = vsel %vm3200, %v3604, 0
        %v3639 = vsel %vm3200, %v3606, 0
        %v3642 = vsel %vm3200, %v3608, 0
        %v3645 = vsel %vm3200, %v3610, 0
        %v3648 = vsel %vm3200, %v3612, 0
        %v3651 = vsel %vm3200, %v3614, 0
        %v3654 = vsel %vm3200, %v3616, 0
        %v3657 = vsel %vm3200, %v3618, 0
        %v3660 = vsel %vm3200, %v3620, 0
        %v3663 = vsel %vm3200, %v3622, 0
        %v3666 = vsel %vm3200, %v3624, 0
        %v3669 = vsel %vm3200, %v3626, 0
        %v3672 = vsel %vm3200, %v3628, 0
        %v3675 = vsel %vm3200, %v3630, 0
        %v3678 = vsel %vm3200, %v3632, 0
        %v3681 = vsel %vm3200, %v3634, 0
        %3683 = vmatpush.bf16.xpose.msra.mxu0 %v3681
        %3684 = vmatpush.bf16.xpose.msra.mxu0 %v3678
        %3685 = vmatpush.bf16.xpose.msra.mxu0 %v3675
        %3686 = vmatpush.bf16.xpose.msra.mxu0 %v3672
        %3687 = vmatpush.bf16.xpose.msra.mxu0 %v3669
        %3688 = vmatpush.bf16.xpose.msra.mxu0 %v3666
        %3689 = vmatpush.bf16.xpose.msra.mxu0 %v3663
        %3690 = vmatpush.bf16.xpose.msra.mxu0 %v3660
        %3691 = vmatmul.bf16.gmra.mxu0 %v3636
        %v3692 = vpop.f32.mrf.mxu0
        %v3693 = vadd.f32 0.0, %v3692
        %v3694 = vpop.f32.mrf.mxu0
        %v3695 = vadd.f32 0.0, %v3694
        %3696 = vmatmul.bf16.gmra.mxu0 %v3639
        %v3697 = vpop.f32.mrf.mxu0
        %v3698 = vadd.f32 0.0, %v3697
        %v3699 = vpop.f32.mrf.mxu0
        %v3700 = vadd.f32 0.0, %v3699
        %3701 = vmatmul.bf16.gmra.mxu0 %v3642
        %v3702 = vpop.f32.mrf.mxu0
        %v3703 = vadd.f32 0.0, %v3702
        %v3704 = vpop.f32.mrf.mxu0
        %v3705 = vadd.f32 0.0, %v3704
        %3706 = vmatmul.bf16.gmra.mxu0 %v3645
        %v3707 = vpop.f32.mrf.mxu0
        %v3708 = vadd.f32 0.0, %v3707
        %v3709 = vpop.f32.mrf.mxu0
        %v3710 = vadd.f32 0.0, %v3709
        %3711 = vmatmul.bf16.gmra.mxu0 %v3648
        %v3712 = vpop.f32.mrf.mxu0
        %v3713 = vadd.f32 0.0, %v3712
        %v3714 = vpop.f32.mrf.mxu0
        %v3715 = vadd.f32 0.0, %v3714
        %3716 = vmatmul.bf16.gmra.mxu0 %v3651
        %v3717 = vpop.f32.mrf.mxu0
        %v3718 = vadd.f32 0.0, %v3717
        %v3719 = vpop.f32.mrf.mxu0
        %v3720 = vadd.f32 0.0, %v3719
        %3721 = vmatmul.bf16.gmra.mxu0 %v3654
        %v3722 = vpop.f32.mrf.mxu0
        %v3723 = vadd.f32 0.0, %v3722
        %v3724 = vpop.f32.mrf.mxu0
        %v3725 = vadd.f32 0.0, %v3724
        %3726 = vmatmul.bf16.gmra.mxu0 %v3657
        %v3727 = vpop.f32.mrf.mxu0
        %v3728 = vadd.f32 0.0, %v3727
        %v3729 = vpop.f32.mrf.mxu0
        %v3730 = vadd.f32 0.0, %v3729
        %3731 = vdwg.mxu0
        %v3732 = vsel %vm3104, %v3693, -1e+30
        %v3733 = vsel %vm3105, %v3695, -1e+30
        %v3734 = vsel %vm3106, %v3698, -1e+30
        %v3735 = vsel %vm3107, %v3700, -1e+30
        %v3736 = vsel %vm3108, %v3703, -1e+30
        %v3737 = vsel %vm3109, %v3705, -1e+30
        %v3738 = vsel %vm3110, %v3708, -1e+30
        %v3739 = vsel %vm3111, %v3710, -1e+30
        %v3740 = vsel %vm3112, %v3713, -1e+30
        %v3741 = vsel %vm3113, %v3715, -1e+30
        %v3742 = vsel %vm3114, %v3718, -1e+30
        %v3743 = vsel %vm3115, %v3720, -1e+30
        %v3744 = vsel %vm3116, %v3723, -1e+30
        %v3745 = vsel %vm3117, %v3725, -1e+30
        %v3746 = vsel %vm3118, %v3728, -1e+30
        %v3747 = vsel %vm3119, %v3730, -1e+30
        %3748 = vmax.xlane.f32.xlu0 %v3732
        %v3749 = vpop.xlane.xlu0 %3748
        %3750 = vmax.xlane.f32.xlu0 %v3733
        %v3751 = vpop.xlane.xlu0 %3750
        %3752 = vmax.xlane.f32.xlu0 %v3734
        %v3753 = vpop.xlane.xlu0 %3752
        %3754 = vmax.xlane.f32.xlu0 %v3735
        %v3755 = vpop.xlane.xlu0 %3754
        %3756 = vmax.xlane.f32.xlu0 %v3736
        %v3757 = vpop.xlane.xlu0 %3756
        %3758 = vmax.xlane.f32.xlu0 %v3737
        %v3759 = vpop.xlane.xlu0 %3758
        %3760 = vmax.xlane.f32.xlu0 %v3738
        %v3761 = vpop.xlane.xlu0 %3760
        %3762 = vmax.xlane.f32.xlu0 %v3739
        %v3763 = vpop.xlane.xlu0 %3762
        %3764 = vmax.xlane.f32.xlu0 %v3740
        %v3765 = vpop.xlane.xlu0 %3764
        %3766 = vmax.xlane.f32.xlu0 %v3741
        %v3767 = vpop.xlane.xlu0 %3766
        %3768 = vmax.xlane.f32.xlu0 %v3742
        %v3769 = vpop.xlane.xlu0 %3768
        %3770 = vmax.xlane.f32.xlu0 %v3743
        %v3771 = vpop.xlane.xlu0 %3770
        %3772 = vmax.xlane.f32.xlu0 %v3744
        %v3773 = vpop.xlane.xlu0 %3772
        %3774 = vmax.xlane.f32.xlu0 %v3745
        %v3775 = vpop.xlane.xlu0 %3774
        %3776 = vmax.xlane.f32.xlu0 %v3746
        %v3777 = vpop.xlane.xlu0 %3776
        %3778 = vmax.xlane.f32.xlu0 %v3747
        %v3779 = vpop.xlane.xlu0 %3778
        %v3780 = vsub.f32 %v3732, %v3749
        %v3781 = vsub.f32 %v3733, %v3751
        %v3782 = vsub.f32 %v3734, %v3753
        %v3783 = vsub.f32 %v3735, %v3755
        %v3784 = vsub.f32 %v3736, %v3757
        %v3785 = vsub.f32 %v3737, %v3759
        %v3786 = vsub.f32 %v3738, %v3761
        %v3787 = vsub.f32 %v3739, %v3763
        %v3788 = vsub.f32 %v3740, %v3765
        %v3789 = vsub.f32 %v3741, %v3767
        %v3790 = vsub.f32 %v3742, %v3769
        %v3791 = vsub.f32 %v3743, %v3771
        %v3792 = vsub.f32 %v3744, %v3773
        %v3793 = vsub.f32 %v3745, %v3775
        %v3794 = vsub.f32 %v3746, %v3777
        %v3795 = vsub.f32 %v3747, %v3779
        %v3796 = vpack.c.bf16 %v3781, %v3780
        %v3797 = vpack.c.bf16 %v3783, %v3782
        %v3798 = vpack.c.bf16 %v3785, %v3784
        %v3799 = vpack.c.bf16 %v3787, %v3786
        %v3800 = vpack.c.bf16 %v3789, %v3788
        %v3801 = vpack.c.bf16 %v3791, %v3790
        %v3802 = vpack.c.bf16 %v3793, %v3792
        %v3803 = vpack.c.bf16 %v3795, %v3794
        %v3804 = vunpack.c.l.bf16 %v3796
        %v3805 = vunpack.c.h.bf16 %v3796
        %v3806 = vunpack.c.l.bf16 %v3797
        %v3807 = vunpack.c.h.bf16 %v3797
        %v3808 = vunpack.c.l.bf16 %v3798
        %v3809 = vunpack.c.h.bf16 %v3798
        %v3810 = vunpack.c.l.bf16 %v3799
        %v3811 = vunpack.c.h.bf16 %v3799
        %v3812 = vunpack.c.l.bf16 %v3800
        %v3813 = vunpack.c.h.bf16 %v3800
        %v3814 = vunpack.c.l.bf16 %v3801
        %v3815 = vunpack.c.h.bf16 %v3801
        %v3816 = vunpack.c.l.bf16 %v3802
        %v3817 = vunpack.c.h.bf16 %v3802
        %v3818 = vunpack.c.l.bf16 %v3803
        %v3819 = vunpack.c.h.bf16 %v3803
        %v3820 = vmul.f32 %v3804, 1.442695
        %v3821 = vpow.pop %v3820
        %v3822 = vmul.f32 %v3805, 1.442695
        %v3823 = vpow.pop %v3822
        %v3824 = vmul.f32 %v3806, 1.442695
        %v3825 = vpow.pop %v3824
        %v3826 = vmul.f32 %v3807, 1.442695
        %v3827 = vpow.pop %v3826
        %v3828 = vmul.f32 %v3808, 1.442695
        %v3829 = vpow.pop %v3828
        %v3830 = vmul.f32 %v3809, 1.442695
        %v3831 = vpow.pop %v3830
        %v3832 = vmul.f32 %v3810, 1.442695
        %v3833 = vpow.pop %v3832
        %v3834 = vmul.f32 %v3811, 1.442695
        %v3835 = vpow.pop %v3834
        %v3836 = vmul.f32 %v3812, 1.442695
        %v3837 = vpow.pop %v3836
        %v3838 = vmul.f32 %v3813, 1.442695
        %v3839 = vpow.pop %v3838
        %v3840 = vmul.f32 %v3814, 1.442695
        %v3841 = vpow.pop %v3840
        %v3842 = vmul.f32 %v3815, 1.442695
        %v3843 = vpow.pop %v3842
        %v3844 = vmul.f32 %v3816, 1.442695
        %v3845 = vpow.pop %v3844
        %v3846 = vmul.f32 %v3817, 1.442695
        %v3847 = vpow.pop %v3846
        %v3848 = vmul.f32 %v3818, 1.442695
        %v3849 = vpow.pop %v3848
        %v3850 = vmul.f32 %v3819, 1.442695
        %v3851 = vpow.pop %v3850
        %v3852 = vpack.c.bf16 %v3823, %v3821
        %v3853 = vpack.c.bf16 %v3827, %v3825
        %v3854 = vpack.c.bf16 %v3831, %v3829
        %v3855 = vpack.c.bf16 %v3835, %v3833
        %v3856 = vpack.c.bf16 %v3839, %v3837
        %v3857 = vpack.c.bf16 %v3843, %v3841
        %v3858 = vpack.c.bf16 %v3847, %v3845
        %v3859 = vpack.c.bf16 %v3851, %v3849
        %v3860 = vunpack.c.l.bf16 %v3852
        %v3861 = vunpack.c.h.bf16 %v3852
        %v3862 = vunpack.c.l.bf16 %v3853
        %v3863 = vunpack.c.h.bf16 %v3853
        %v3864 = vunpack.c.l.bf16 %v3854
        %v3865 = vunpack.c.h.bf16 %v3854
        %v3866 = vunpack.c.l.bf16 %v3855
        %v3867 = vunpack.c.h.bf16 %v3855
        %v3868 = vunpack.c.l.bf16 %v3856
        %v3869 = vunpack.c.h.bf16 %v3856
        %v3870 = vunpack.c.l.bf16 %v3857
        %v3871 = vunpack.c.h.bf16 %v3857
        %v3872 = vunpack.c.l.bf16 %v3858
        %v3873 = vunpack.c.h.bf16 %v3858
        %v3874 = vunpack.c.l.bf16 %v3859
        %v3875 = vunpack.c.h.bf16 %v3859
        %3876 = vadd.xlane.f32.xlu0 %v3860
        %v3877 = vpop.xlane.xlu0 %3876
        %3878 = vadd.xlane.f32.xlu0 %v3861
        %v3879 = vpop.xlane.xlu0 %3878
        %3880 = vadd.xlane.f32.xlu0 %v3862
        %v3881 = vpop.xlane.xlu0 %3880
        %3882 = vadd.xlane.f32.xlu0 %v3863
        %v3883 = vpop.xlane.xlu0 %3882
        %3884 = vadd.xlane.f32.xlu0 %v3864
        %v3885 = vpop.xlane.xlu0 %3884
        %3886 = vadd.xlane.f32.xlu0 %v3865
        %v3887 = vpop.xlane.xlu0 %3886
        %3888 = vadd.xlane.f32.xlu0 %v3866
        %v3889 = vpop.xlane.xlu0 %3888
        %3890 = vadd.xlane.f32.xlu0 %v3867
        %v3891 = vpop.xlane.xlu0 %3890
        %3892 = vadd.xlane.f32.xlu0 %v3868
        %v3893 = vpop.xlane.xlu0 %3892
        %3894 = vadd.xlane.f32.xlu0 %v3869
        %v3895 = vpop.xlane.xlu0 %3894
        %3896 = vadd.xlane.f32.xlu0 %v3870
        %v3897 = vpop.xlane.xlu0 %3896
        %3898 = vadd.xlane.f32.xlu0 %v3871
        %v3899 = vpop.xlane.xlu0 %3898
        %3900 = vadd.xlane.f32.xlu0 %v3872
        %v3901 = vpop.xlane.xlu0 %3900
        %3902 = vadd.xlane.f32.xlu0 %v3873
        %v3903 = vpop.xlane.xlu0 %3902
        %3904 = vadd.xlane.f32.xlu0 %v3874
        %v3905 = vpop.xlane.xlu0 %3904
        %3906 = vadd.xlane.f32.xlu0 %v3875
        %v3907 = vpop.xlane.xlu0 %3906
        %3908 = vrot.lane.b32.xlu0 %v3506, 64
        %v3909 = vpop.permute.xlu0 %3908
        %3910 = vrot.lane.b32.xlu0 %v3507, 64
        %v3911 = vpop.permute.xlu0 %3910
        %3912 = vrot.lane.b32.xlu0 %v3508, 64
        %v3913 = vpop.permute.xlu0 %3912
        %3914 = vrot.lane.b32.xlu0 %v3509, 64
        %v3915 = vpop.permute.xlu0 %3914
        %3916 = vrot.lane.b32.xlu0 %v3510, 64
        %v3917 = vpop.permute.xlu0 %3916
        %3918 = vrot.lane.b32.xlu0 %v3511, 64
        %v3919 = vpop.permute.xlu0 %3918
        %3920 = vrot.lane.b32.xlu0 %v3512, 64
        %v3921 = vpop.permute.xlu0 %3920
        %3922 = vrot.lane.b32.xlu0 %v3513, 64
        %v3923 = vpop.permute.xlu0 %3922
        %3932 = vmatpush.bf16.msra.mxu0 %v3923
        %3933 = vmatpush.bf16.msra.mxu0 %v3921
        %3934 = vmatpush.bf16.msra.mxu0 %v3919
        %3935 = vmatpush.bf16.msra.mxu0 %v3917
        %3936 = vmatpush.bf16.msra.mxu0 %v3915
        %3937 = vmatpush.bf16.msra.mxu0 %v3913
        %3938 = vmatpush.bf16.msra.mxu0 %v3911
        %3939 = vmatpush.bf16.msra.mxu0 %v3909
        %3940 = vmatmul.bf16.gmra.mxu0 %v3852
        %v3941 = vpop.f32.mrf.mxu0
        %v3942 = vadd.f32 0.0, %v3941
        %v3943 = vpop.f32.mrf.mxu0
        %v3944 = vadd.f32 0.0, %v3943
        %3945 = vmatmul.bf16.gmra.mxu0 %v3853
        %v3946 = vpop.f32.mrf.mxu0
        %v3947 = vadd.f32 0.0, %v3946
        %v3948 = vpop.f32.mrf.mxu0
        %v3949 = vadd.f32 0.0, %v3948
        %3950 = vmatmul.bf16.gmra.mxu0 %v3854
        %v3951 = vpop.f32.mrf.mxu0
        %v3952 = vadd.f32 0.0, %v3951
        %v3953 = vpop.f32.mrf.mxu0
        %v3954 = vadd.f32 0.0, %v3953
        %3955 = vmatmul.bf16.gmra.mxu0 %v3855
        %v3956 = vpop.f32.mrf.mxu0
        %v3957 = vadd.f32 0.0, %v3956
        %v3958 = vpop.f32.mrf.mxu0
        %v3959 = vadd.f32 0.0, %v3958
        %3960 = vmatmul.bf16.gmra.mxu0 %v3856
        %v3961 = vpop.f32.mrf.mxu0
        %v3962 = vadd.f32 0.0, %v3961
        %v3963 = vpop.f32.mrf.mxu0
        %v3964 = vadd.f32 0.0, %v3963
        %3965 = vmatmul.bf16.gmra.mxu0 %v3857
        %v3966 = vpop.f32.mrf.mxu0
        %v3967 = vadd.f32 0.0, %v3966
        %v3968 = vpop.f32.mrf.mxu0
        %v3969 = vadd.f32 0.0, %v3968
        %3970 = vmatmul.bf16.gmra.mxu0 %v3858
        %v3971 = vpop.f32.mrf.mxu0
        %v3972 = vadd.f32 0.0, %v3971
        %v3973 = vpop.f32.mrf.mxu0
        %v3974 = vadd.f32 0.0, %v3973
        %3975 = vmatmul.bf16.gmra.mxu0 %v3859
        %v3976 = vpop.f32.mrf.mxu0
        %v3977 = vadd.f32 0.0, %v3976
        %v3978 = vpop.f32.mrf.mxu0
        %v3979 = vadd.f32 0.0, %v3978
        %3980 = vdwg.mxu0
        %v3981 = vrcp.pop %v3877
        %v3982 = vrcp.pop %v3879
        %v3983 = vrcp.pop %v3881
        %v3984 = vrcp.pop %v3883
        %v3985 = vrcp.pop %v3885
        %v3986 = vrcp.pop %v3887
        %v3987 = vrcp.pop %v3889
        %v3988 = vrcp.pop %v3891
        %v3989 = vrcp.pop %v3893
        %v3990 = vrcp.pop %v3895
        %v3991 = vrcp.pop %v3897
        %v3992 = vrcp.pop %v3899
        %v3993 = vrcp.pop %v3901
        %v3994 = vrcp.pop %v3903
        %v3995 = vrcp.pop %v3905
        %v3996 = vrcp.pop %v3907
        %v3997 = vmul.f32 %v3942, %v3981
        %v3998 = vmul.f32 %v3944, %v3982
        %v3999 = vmul.f32 %v3947, %v3983
        %v4000 = vmul.f32 %v3949, %v3984
        %v4001 = vmul.f32 %v3952, %v3985
        %v4002 = vmul.f32 %v3954, %v3986
        %v4003 = vmul.f32 %v3957, %v3987
        %v4004 = vmul.f32 %v3959, %v3988
        %v4005 = vmul.f32 %v3962, %v3989
        %v4006 = vmul.f32 %v3964, %v3990
        %v4007 = vmul.f32 %v3967, %v3991
        %v4008 = vmul.f32 %v3969, %v3992
        %v4009 = vmul.f32 %v3972, %v3993
        %v4010 = vmul.f32 %v3974, %v3994
        %v4011 = vmul.f32 %v3977, %v3995
        %v4012 = vmul.f32 %v3979, %v3996
        %v4013 = vunpack.c.h.b16 %v3005
        %v4014 = vunpack.c.h.b16 %v3010
        %v4015 = vunpack.c.h.b16 %v3015
        %v4016 = vunpack.c.h.b16 %v3020
        %v4017 = vunpack.c.h.b16 %v3025
        %v4018 = vunpack.c.h.b16 %v3030
        %v4019 = vunpack.c.h.b16 %v3035
        %v4020 = vunpack.c.h.b16 %v3040
        %v4021 = vunpack.c.h.b16 %v3045
        %v4022 = vunpack.c.h.b16 %v3050
        %v4023 = vunpack.c.h.b16 %v3055
        %v4024 = vunpack.c.h.b16 %v3060
        %v4025 = vunpack.c.h.b16 %v3065
        %v4026 = vunpack.c.h.b16 %v3070
        %v4027 = vunpack.c.h.b16 %v3075
        %v4028 = vunpack.c.h.b16 %v3080
        %v4029 = vpack.c.b16 %v4014, %v4013
        %v4030 = vpack.c.b16 %v4016, %v4015
        %v4031 = vpack.c.b16 %v4018, %v4017
        %v4032 = vpack.c.b16 %v4020, %v4019
        %v4033 = vpack.c.b16 %v4022, %v4021
        %v4034 = vpack.c.b16 %v4024, %v4023
        %v4035 = vpack.c.b16 %v4026, %v4025
        %v4036 = vpack.c.b16 %v4028, %v4027
        %v4053 = vunpack.c.l.b16 %v3007
        %v4054 = vunpack.c.l.b16 %v3012
        %v4055 = vunpack.c.l.b16 %v3017
        %v4056 = vunpack.c.l.b16 %v3022
        %v4057 = vunpack.c.l.b16 %v3027
        %v4058 = vunpack.c.l.b16 %v3032
        %v4059 = vunpack.c.l.b16 %v3037
        %v4060 = vunpack.c.l.b16 %v3042
        %v4061 = vunpack.c.l.b16 %v3047
        %v4062 = vunpack.c.l.b16 %v3052
        %v4063 = vunpack.c.l.b16 %v3057
        %v4064 = vunpack.c.l.b16 %v3062
        %v4065 = vunpack.c.l.b16 %v3067
        %v4066 = vunpack.c.l.b16 %v3072
        %v4067 = vunpack.c.l.b16 %v3077
        %v4068 = vunpack.c.l.b16 %v3082
        %v4069 = vpack.c.b16 %v4054, %v4053
        %v4070 = vpack.c.b16 %v4056, %v4055
        %v4071 = vpack.c.b16 %v4058, %v4057
        %v4072 = vpack.c.b16 %v4060, %v4059
        %v4073 = vpack.c.b16 %v4062, %v4061
        %v4074 = vpack.c.b16 %v4064, %v4063
        %v4075 = vpack.c.b16 %v4066, %v4065
        %v4076 = vpack.c.b16 %v4068, %v4067
        %v4078 = vsel %vm3200, %v4029, 0
        %v4081 = vsel %vm3200, %v4030, 0
        %v4084 = vsel %vm3200, %v4031, 0
        %v4087 = vsel %vm3200, %v4032, 0
        %v4090 = vsel %vm3200, %v4033, 0
        %v4093 = vsel %vm3200, %v4034, 0
        %v4096 = vsel %vm3200, %v4035, 0
        %v4099 = vsel %vm3200, %v4036, 0
        %v4102 = vsel %vm3200, %v4069, 0
        %v4105 = vsel %vm3200, %v4070, 0
        %v4108 = vsel %vm3200, %v4071, 0
        %v4111 = vsel %vm3200, %v4072, 0
        %v4114 = vsel %vm3200, %v4073, 0
        %v4117 = vsel %vm3200, %v4074, 0
        %v4120 = vsel %vm3200, %v4075, 0
        %v4123 = vsel %vm3200, %v4076, 0
        %4125 = vmatpush.bf16.xpose.msra.mxu0 %v4123
        %4126 = vmatpush.bf16.xpose.msra.mxu0 %v4120
        %4127 = vmatpush.bf16.xpose.msra.mxu0 %v4117
        %4128 = vmatpush.bf16.xpose.msra.mxu0 %v4114
        %4129 = vmatpush.bf16.xpose.msra.mxu0 %v4111
        %4130 = vmatpush.bf16.xpose.msra.mxu0 %v4108
        %4131 = vmatpush.bf16.xpose.msra.mxu0 %v4105
        %4132 = vmatpush.bf16.xpose.msra.mxu0 %v4102
        %4133 = vmatmul.bf16.gmra.mxu0 %v4078
        %v4134 = vpop.f32.mrf.mxu0
        %v4135 = vadd.f32 0.0, %v4134
        %v4136 = vpop.f32.mrf.mxu0
        %v4137 = vadd.f32 0.0, %v4136
        %4138 = vmatmul.bf16.gmra.mxu0 %v4081
        %v4139 = vpop.f32.mrf.mxu0
        %v4140 = vadd.f32 0.0, %v4139
        %v4141 = vpop.f32.mrf.mxu0
        %v4142 = vadd.f32 0.0, %v4141
        %4143 = vmatmul.bf16.gmra.mxu0 %v4084
        %v4144 = vpop.f32.mrf.mxu0
        %v4145 = vadd.f32 0.0, %v4144
        %v4146 = vpop.f32.mrf.mxu0
        %v4147 = vadd.f32 0.0, %v4146
        %4148 = vmatmul.bf16.gmra.mxu0 %v4087
        %v4149 = vpop.f32.mrf.mxu0
        %v4150 = vadd.f32 0.0, %v4149
        %v4151 = vpop.f32.mrf.mxu0
        %v4152 = vadd.f32 0.0, %v4151
        %4153 = vmatmul.bf16.gmra.mxu0 %v4090
        %v4154 = vpop.f32.mrf.mxu0
        %v4155 = vadd.f32 0.0, %v4154
        %v4156 = vpop.f32.mrf.mxu0
        %v4157 = vadd.f32 0.0, %v4156
        %4158 = vmatmul.bf16.gmra.mxu0 %v4093
        %v4159 = vpop.f32.mrf.mxu0
        %v4160 = vadd.f32 0.0, %v4159
        %v4161 = vpop.f32.mrf.mxu0
        %v4162 = vadd.f32 0.0, %v4161
        %4163 = vmatmul.bf16.gmra.mxu0 %v4096
        %v4164 = vpop.f32.mrf.mxu0
        %v4165 = vadd.f32 0.0, %v4164
        %v4166 = vpop.f32.mrf.mxu0
        %v4167 = vadd.f32 0.0, %v4166
        %4168 = vmatmul.bf16.gmra.mxu0 %v4099
        %v4169 = vpop.f32.mrf.mxu0
        %v4170 = vadd.f32 0.0, %v4169
        %v4171 = vpop.f32.mrf.mxu0
        %v4172 = vadd.f32 0.0, %v4171
        %4173 = vdwg.mxu0
        %v4174 = vsel %vm3104, %v4135, -1e+30
        %v4175 = vsel %vm3105, %v4137, -1e+30
        %v4176 = vsel %vm3106, %v4140, -1e+30
        %v4177 = vsel %vm3107, %v4142, -1e+30
        %v4178 = vsel %vm3108, %v4145, -1e+30
        %v4179 = vsel %vm3109, %v4147, -1e+30
        %v4180 = vsel %vm3110, %v4150, -1e+30
        %v4181 = vsel %vm3111, %v4152, -1e+30
        %v4182 = vsel %vm3112, %v4155, -1e+30
        %v4183 = vsel %vm3113, %v4157, -1e+30
        %v4184 = vsel %vm3114, %v4160, -1e+30
        %v4185 = vsel %vm3115, %v4162, -1e+30
        %v4186 = vsel %vm3116, %v4165, -1e+30
        %v4187 = vsel %vm3117, %v4167, -1e+30
        %v4188 = vsel %vm3118, %v4170, -1e+30
        %v4189 = vsel %vm3119, %v4172, -1e+30
        %4190 = vmax.xlane.f32.xlu0 %v4174
        %v4191 = vpop.xlane.xlu0 %4190
        %4192 = vmax.xlane.f32.xlu0 %v4175
        %v4193 = vpop.xlane.xlu0 %4192
        %4194 = vmax.xlane.f32.xlu0 %v4176
        %v4195 = vpop.xlane.xlu0 %4194
        %4196 = vmax.xlane.f32.xlu0 %v4177
        %v4197 = vpop.xlane.xlu0 %4196
        %4198 = vmax.xlane.f32.xlu0 %v4178
        %v4199 = vpop.xlane.xlu0 %4198
        %4200 = vmax.xlane.f32.xlu0 %v4179
        %v4201 = vpop.xlane.xlu0 %4200
        %4202 = vmax.xlane.f32.xlu0 %v4180
        %v4203 = vpop.xlane.xlu0 %4202
        %4204 = vmax.xlane.f32.xlu0 %v4181
        %v4205 = vpop.xlane.xlu0 %4204
        %4206 = vmax.xlane.f32.xlu0 %v4182
        %v4207 = vpop.xlane.xlu0 %4206
        %4208 = vmax.xlane.f32.xlu0 %v4183
        %v4209 = vpop.xlane.xlu0 %4208
        %4210 = vmax.xlane.f32.xlu0 %v4184
        %v4211 = vpop.xlane.xlu0 %4210
        %4212 = vmax.xlane.f32.xlu0 %v4185
        %v4213 = vpop.xlane.xlu0 %4212
        %4214 = vmax.xlane.f32.xlu0 %v4186
        %v4215 = vpop.xlane.xlu0 %4214
        %4216 = vmax.xlane.f32.xlu0 %v4187
        %v4217 = vpop.xlane.xlu0 %4216
        %4218 = vmax.xlane.f32.xlu0 %v4188
        %v4219 = vpop.xlane.xlu0 %4218
        %4220 = vmax.xlane.f32.xlu0 %v4189
        %v4221 = vpop.xlane.xlu0 %4220
        %v4222 = vsub.f32 %v4174, %v4191
        %v4223 = vsub.f32 %v4175, %v4193
        %v4224 = vsub.f32 %v4176, %v4195
        %v4225 = vsub.f32 %v4177, %v4197
        %v4226 = vsub.f32 %v4178, %v4199
        %v4227 = vsub.f32 %v4179, %v4201
        %v4228 = vsub.f32 %v4180, %v4203
        %v4229 = vsub.f32 %v4181, %v4205
        %v4230 = vsub.f32 %v4182, %v4207
        %v4231 = vsub.f32 %v4183, %v4209
        %v4232 = vsub.f32 %v4184, %v4211
        %v4233 = vsub.f32 %v4185, %v4213
        %v4234 = vsub.f32 %v4186, %v4215
        %v4235 = vsub.f32 %v4187, %v4217
        %v4236 = vsub.f32 %v4188, %v4219
        %v4237 = vsub.f32 %v4189, %v4221
        %v4238 = vpack.c.bf16 %v4223, %v4222
        %v4239 = vpack.c.bf16 %v4225, %v4224
        %v4240 = vpack.c.bf16 %v4227, %v4226
        %v4241 = vpack.c.bf16 %v4229, %v4228
        %v4242 = vpack.c.bf16 %v4231, %v4230
        %v4243 = vpack.c.bf16 %v4233, %v4232
        %v4244 = vpack.c.bf16 %v4235, %v4234
        %v4245 = vpack.c.bf16 %v4237, %v4236
        %v4246 = vunpack.c.l.bf16 %v4238
        %v4247 = vunpack.c.h.bf16 %v4238
        %v4248 = vunpack.c.l.bf16 %v4239
        %v4249 = vunpack.c.h.bf16 %v4239
        %v4250 = vunpack.c.l.bf16 %v4240
        %v4251 = vunpack.c.h.bf16 %v4240
        %v4252 = vunpack.c.l.bf16 %v4241
        %v4253 = vunpack.c.h.bf16 %v4241
        %v4254 = vunpack.c.l.bf16 %v4242
        %v4255 = vunpack.c.h.bf16 %v4242
        %v4256 = vunpack.c.l.bf16 %v4243
        %v4257 = vunpack.c.h.bf16 %v4243
        %v4258 = vunpack.c.l.bf16 %v4244
        %v4259 = vunpack.c.h.bf16 %v4244
        %v4260 = vunpack.c.l.bf16 %v4245
        %v4261 = vunpack.c.h.bf16 %v4245
        %v4262 = vmul.f32 %v4246, 1.442695
        %v4263 = vpow.pop %v4262
        %v4264 = vmul.f32 %v4247, 1.442695
        %v4265 = vpow.pop %v4264
        %v4266 = vmul.f32 %v4248, 1.442695
        %v4267 = vpow.pop %v4266
        %v4268 = vmul.f32 %v4249, 1.442695
        %v4269 = vpow.pop %v4268
        %v4270 = vmul.f32 %v4250, 1.442695
        %v4271 = vpow.pop %v4270
        %v4272 = vmul.f32 %v4251, 1.442695
        %v4273 = vpow.pop %v4272
        %v4274 = vmul.f32 %v4252, 1.442695
        %v4275 = vpow.pop %v4274
        %v4276 = vmul.f32 %v4253, 1.442695
        %v4277 = vpow.pop %v4276
        %v4278 = vmul.f32 %v4254, 1.442695
        %v4279 = vpow.pop %v4278
        %v4280 = vmul.f32 %v4255, 1.442695
        %v4281 = vpow.pop %v4280
        %v4282 = vmul.f32 %v4256, 1.442695
        %v4283 = vpow.pop %v4282
        %v4284 = vmul.f32 %v4257, 1.442695
        %v4285 = vpow.pop %v4284
        %v4286 = vmul.f32 %v4258, 1.442695
        %v4287 = vpow.pop %v4286
        %v4288 = vmul.f32 %v4259, 1.442695
        %v4289 = vpow.pop %v4288
        %v4290 = vmul.f32 %v4260, 1.442695
        %v4291 = vpow.pop %v4290
        %v4292 = vmul.f32 %v4261, 1.442695
        %v4293 = vpow.pop %v4292
        %v4294 = vpack.c.bf16 %v4265, %v4263
        %v4295 = vpack.c.bf16 %v4269, %v4267
        %v4296 = vpack.c.bf16 %v4273, %v4271
        %v4297 = vpack.c.bf16 %v4277, %v4275
        %v4298 = vpack.c.bf16 %v4281, %v4279
        %v4299 = vpack.c.bf16 %v4285, %v4283
        %v4300 = vpack.c.bf16 %v4289, %v4287
        %v4301 = vpack.c.bf16 %v4293, %v4291
        %v4302 = vunpack.c.l.bf16 %v4294
        %v4303 = vunpack.c.h.bf16 %v4294
        %v4304 = vunpack.c.l.bf16 %v4295
        %v4305 = vunpack.c.h.bf16 %v4295
        %v4306 = vunpack.c.l.bf16 %v4296
        %v4307 = vunpack.c.h.bf16 %v4296
        %v4308 = vunpack.c.l.bf16 %v4297
        %v4309 = vunpack.c.h.bf16 %v4297
        %v4310 = vunpack.c.l.bf16 %v4298
        %v4311 = vunpack.c.h.bf16 %v4298
        %v4312 = vunpack.c.l.bf16 %v4299
        %v4313 = vunpack.c.h.bf16 %v4299
        %v4314 = vunpack.c.l.bf16 %v4300
        %v4315 = vunpack.c.h.bf16 %v4300
        %v4316 = vunpack.c.l.bf16 %v4301
        %v4317 = vunpack.c.h.bf16 %v4301
        %4318 = vadd.xlane.f32.xlu0 %v4302
        %v4319 = vpop.xlane.xlu0 %4318
        %4320 = vadd.xlane.f32.xlu0 %v4303
        %v4321 = vpop.xlane.xlu0 %4320
        %4322 = vadd.xlane.f32.xlu0 %v4304
        %v4323 = vpop.xlane.xlu0 %4322
        %4324 = vadd.xlane.f32.xlu0 %v4305
        %v4325 = vpop.xlane.xlu0 %4324
        %4326 = vadd.xlane.f32.xlu0 %v4306
        %v4327 = vpop.xlane.xlu0 %4326
        %4328 = vadd.xlane.f32.xlu0 %v4307
        %v4329 = vpop.xlane.xlu0 %4328
        %4330 = vadd.xlane.f32.xlu0 %v4308
        %v4331 = vpop.xlane.xlu0 %4330
        %4332 = vadd.xlane.f32.xlu0 %v4309
        %v4333 = vpop.xlane.xlu0 %4332
        %4334 = vadd.xlane.f32.xlu0 %v4310
        %v4335 = vpop.xlane.xlu0 %4334
        %4336 = vadd.xlane.f32.xlu0 %v4311
        %v4337 = vpop.xlane.xlu0 %4336
        %4338 = vadd.xlane.f32.xlu0 %v4312
        %v4339 = vpop.xlane.xlu0 %4338
        %4340 = vadd.xlane.f32.xlu0 %v4313
        %v4341 = vpop.xlane.xlu0 %4340
        %4342 = vadd.xlane.f32.xlu0 %v4314
        %v4343 = vpop.xlane.xlu0 %4342
        %4344 = vadd.xlane.f32.xlu0 %v4315
        %v4345 = vpop.xlane.xlu0 %4344
        %4346 = vadd.xlane.f32.xlu0 %v4316
        %v4347 = vpop.xlane.xlu0 %4346
        %4348 = vadd.xlane.f32.xlu0 %v4317
        %v4349 = vpop.xlane.xlu0 %4348
        %v4350 = vunpack.c.h.b16 %v3008
        %v4351 = vunpack.c.h.b16 %v3013
        %v4352 = vunpack.c.h.b16 %v3018
        %v4353 = vunpack.c.h.b16 %v3023
        %v4354 = vunpack.c.h.b16 %v3028
        %v4355 = vunpack.c.h.b16 %v3033
        %v4356 = vunpack.c.h.b16 %v3038
        %v4357 = vunpack.c.h.b16 %v3043
        %v4358 = vunpack.c.h.b16 %v3048
        %v4359 = vunpack.c.h.b16 %v3053
        %v4360 = vunpack.c.h.b16 %v3058
        %v4361 = vunpack.c.h.b16 %v3063
        %v4362 = vunpack.c.h.b16 %v3068
        %v4363 = vunpack.c.h.b16 %v3073
        %v4364 = vunpack.c.h.b16 %v3078
        %v4365 = vunpack.c.h.b16 %v3083
        %v4366 = vpack.c.b16 %v4351, %v4350
        %v4367 = vpack.c.b16 %v4353, %v4352
        %v4368 = vpack.c.b16 %v4355, %v4354
        %v4369 = vpack.c.b16 %v4357, %v4356
        %v4370 = vpack.c.b16 %v4359, %v4358
        %v4371 = vpack.c.b16 %v4361, %v4360
        %v4372 = vpack.c.b16 %v4363, %v4362
        %v4373 = vpack.c.b16 %v4365, %v4364
        %4382 = vmatpush.bf16.msra.mxu0 %v4373
        %4383 = vmatpush.bf16.msra.mxu0 %v4372
        %4384 = vmatpush.bf16.msra.mxu0 %v4371
        %4385 = vmatpush.bf16.msra.mxu0 %v4370
        %4386 = vmatpush.bf16.msra.mxu0 %v4369
        %4387 = vmatpush.bf16.msra.mxu0 %v4368
        %4388 = vmatpush.bf16.msra.mxu0 %v4367
        %4389 = vmatpush.bf16.msra.mxu0 %v4366
        %4390 = vmatmul.bf16.gmra.mxu0 %v4294
        %v4391 = vpop.f32.mrf.mxu0
        %v4392 = vadd.f32 0.0, %v4391
        %v4393 = vpop.f32.mrf.mxu0
        %v4394 = vadd.f32 0.0, %v4393
        %4395 = vmatmul.bf16.gmra.mxu0 %v4295
        %v4396 = vpop.f32.mrf.mxu0
        %v4397 = vadd.f32 0.0, %v4396
        %v4398 = vpop.f32.mrf.mxu0
        %v4399 = vadd.f32 0.0, %v4398
        %4400 = vmatmul.bf16.gmra.mxu0 %v4296
        %v4401 = vpop.f32.mrf.mxu0
        %v4402 = vadd.f32 0.0, %v4401
        %v4403 = vpop.f32.mrf.mxu0
        %v4404 = vadd.f32 0.0, %v4403
        %4405 = vmatmul.bf16.gmra.mxu0 %v4297
        %v4406 = vpop.f32.mrf.mxu0
        %v4407 = vadd.f32 0.0, %v4406
        %v4408 = vpop.f32.mrf.mxu0
        %v4409 = vadd.f32 0.0, %v4408
        %4410 = vmatmul.bf16.gmra.mxu0 %v4298
        %v4411 = vpop.f32.mrf.mxu0
        %v4412 = vadd.f32 0.0, %v4411
        %v4413 = vpop.f32.mrf.mxu0
        %v4414 = vadd.f32 0.0, %v4413
        %4415 = vmatmul.bf16.gmra.mxu0 %v4299
        %v4416 = vpop.f32.mrf.mxu0
        %v4417 = vadd.f32 0.0, %v4416
        %v4418 = vpop.f32.mrf.mxu0
        %v4419 = vadd.f32 0.0, %v4418
        %4420 = vmatmul.bf16.gmra.mxu0 %v4300
        %v4421 = vpop.f32.mrf.mxu0
        %v4422 = vadd.f32 0.0, %v4421
        %v4423 = vpop.f32.mrf.mxu0
        %v4424 = vadd.f32 0.0, %v4423
        %4425 = vmatmul.bf16.gmra.mxu0 %v4301
        %v4426 = vpop.f32.mrf.mxu0
        %v4427 = vadd.f32 0.0, %v4426
        %v4428 = vpop.f32.mrf.mxu0
        %v4429 = vadd.f32 0.0, %v4428
        %4430 = vdwg.mxu0
        %v4431 = vrcp.pop %v4319
        %v4432 = vrcp.pop %v4321
        %v4433 = vrcp.pop %v4323
        %v4434 = vrcp.pop %v4325
        %v4435 = vrcp.pop %v4327
        %v4436 = vrcp.pop %v4329
        %v4437 = vrcp.pop %v4331
        %v4438 = vrcp.pop %v4333
        %v4439 = vrcp.pop %v4335
        %v4440 = vrcp.pop %v4337
        %v4441 = vrcp.pop %v4339
        %v4442 = vrcp.pop %v4341
        %v4443 = vrcp.pop %v4343
        %v4444 = vrcp.pop %v4345
        %v4445 = vrcp.pop %v4347
        %v4446 = vrcp.pop %v4349
        %v4447 = vmul.f32 %v4392, %v4431
        %v4448 = vmul.f32 %v4394, %v4432
        %v4449 = vmul.f32 %v4397, %v4433
        %v4450 = vmul.f32 %v4399, %v4434
        %v4451 = vmul.f32 %v4402, %v4435
        %v4452 = vmul.f32 %v4404, %v4436
        %v4453 = vmul.f32 %v4407, %v4437
        %v4454 = vmul.f32 %v4409, %v4438
        %v4455 = vmul.f32 %v4412, %v4439
        %v4456 = vmul.f32 %v4414, %v4440
        %v4457 = vmul.f32 %v4417, %v4441
        %v4458 = vmul.f32 %v4419, %v4442
        %v4459 = vmul.f32 %v4422, %v4443
        %v4460 = vmul.f32 %v4424, %v4444
        %v4461 = vmul.f32 %v4427, %v4445
        %v4462 = vmul.f32 %v4429, %v4446
        %4463 = vrot.lane.b32.xlu0 %v4029, 64
        %v4464 = vpop.permute.xlu0 %4463
        %4465 = vrot.lane.b32.xlu0 %v4030, 64
        %v4466 = vpop.permute.xlu0 %4465
        %4467 = vrot.lane.b32.xlu0 %v4031, 64
        %v4468 = vpop.permute.xlu0 %4467
        %4469 = vrot.lane.b32.xlu0 %v4032, 64
        %v4470 = vpop.permute.xlu0 %4469
        %4471 = vrot.lane.b32.xlu0 %v4033, 64
        %v4472 = vpop.permute.xlu0 %4471
        %4473 = vrot.lane.b32.xlu0 %v4034, 64
        %v4474 = vpop.permute.xlu0 %4473
        %4475 = vrot.lane.b32.xlu0 %v4035, 64
        %v4476 = vpop.permute.xlu0 %4475
        %4477 = vrot.lane.b32.xlu0 %v4036, 64
        %v4478 = vpop.permute.xlu0 %4477
        %4479 = vrot.lane.b32.xlu0 %v4069, 64
        %v4480 = vpop.permute.xlu0 %4479
        %4481 = vrot.lane.b32.xlu0 %v4070, 64
        %v4482 = vpop.permute.xlu0 %4481
        %4483 = vrot.lane.b32.xlu0 %v4071, 64
        %v4484 = vpop.permute.xlu0 %4483
        %4485 = vrot.lane.b32.xlu0 %v4072, 64
        %v4486 = vpop.permute.xlu0 %4485
        %4487 = vrot.lane.b32.xlu0 %v4073, 64
        %v4488 = vpop.permute.xlu0 %4487
        %4489 = vrot.lane.b32.xlu0 %v4074, 64
        %v4490 = vpop.permute.xlu0 %4489
        %4491 = vrot.lane.b32.xlu0 %v4075, 64
        %v4492 = vpop.permute.xlu0 %4491
        %4493 = vrot.lane.b32.xlu0 %v4076, 64
        %v4494 = vpop.permute.xlu0 %4493
        %v4496 = vsel %vm3200, %v4464, 0
        %v4499 = vsel %vm3200, %v4466, 0
        %v4502 = vsel %vm3200, %v4468, 0
        %v4505 = vsel %vm3200, %v4470, 0
        %v4508 = vsel %vm3200, %v4472, 0
        %v4511 = vsel %vm3200, %v4474, 0
        %v4514 = vsel %vm3200, %v4476, 0
        %v4517 = vsel %vm3200, %v4478, 0
        %v4520 = vsel %vm3200, %v4480, 0
        %v4523 = vsel %vm3200, %v4482, 0
        %v4526 = vsel %vm3200, %v4484, 0
        %v4529 = vsel %vm3200, %v4486, 0
        %v4532 = vsel %vm3200, %v4488, 0
        %v4535 = vsel %vm3200, %v4490, 0
        %v4538 = vsel %vm3200, %v4492, 0
        %v4541 = vsel %vm3200, %v4494, 0
        %4543 = vmatpush.bf16.xpose.msra.mxu0 %v4541
        %4544 = vmatpush.bf16.xpose.msra.mxu0 %v4538
        %4545 = vmatpush.bf16.xpose.msra.mxu0 %v4535
        %4546 = vmatpush.bf16.xpose.msra.mxu0 %v4532
        %4547 = vmatpush.bf16.xpose.msra.mxu0 %v4529
        %4548 = vmatpush.bf16.xpose.msra.mxu0 %v4526
        %4549 = vmatpush.bf16.xpose.msra.mxu0 %v4523
        %4550 = vmatpush.bf16.xpose.msra.mxu0 %v4520
        %4551 = vmatmul.bf16.gmra.mxu0 %v4496
        %v4552 = vpop.f32.mrf.mxu0
        %v4553 = vadd.f32 0.0, %v4552
        %v4554 = vpop.f32.mrf.mxu0
        %v4555 = vadd.f32 0.0, %v4554
        %4556 = vmatmul.bf16.gmra.mxu0 %v4499
        %v4557 = vpop.f32.mrf.mxu0
        %v4558 = vadd.f32 0.0, %v4557
        %v4559 = vpop.f32.mrf.mxu0
        %v4560 = vadd.f32 0.0, %v4559
        %4561 = vmatmul.bf16.gmra.mxu0 %v4502
        %v4562 = vpop.f32.mrf.mxu0
        %v4563 = vadd.f32 0.0, %v4562
        %v4564 = vpop.f32.mrf.mxu0
        %v4565 = vadd.f32 0.0, %v4564
        %4566 = vmatmul.bf16.gmra.mxu0 %v4505
        %v4567 = vpop.f32.mrf.mxu0
        %v4568 = vadd.f32 0.0, %v4567
        %v4569 = vpop.f32.mrf.mxu0
        %v4570 = vadd.f32 0.0, %v4569
        %4571 = vmatmul.bf16.gmra.mxu0 %v4508
        %v4572 = vpop.f32.mrf.mxu0
        %v4573 = vadd.f32 0.0, %v4572
        %v4574 = vpop.f32.mrf.mxu0
        %v4575 = vadd.f32 0.0, %v4574
        %4576 = vmatmul.bf16.gmra.mxu0 %v4511
        %v4577 = vpop.f32.mrf.mxu0
        %v4578 = vadd.f32 0.0, %v4577
        %v4579 = vpop.f32.mrf.mxu0
        %v4580 = vadd.f32 0.0, %v4579
        %4581 = vmatmul.bf16.gmra.mxu0 %v4514
        %v4582 = vpop.f32.mrf.mxu0
        %v4583 = vadd.f32 0.0, %v4582
        %v4584 = vpop.f32.mrf.mxu0
        %v4585 = vadd.f32 0.0, %v4584
        %4586 = vmatmul.bf16.gmra.mxu0 %v4517
        %v4587 = vpop.f32.mrf.mxu0
        %v4588 = vadd.f32 0.0, %v4587
        %v4589 = vpop.f32.mrf.mxu0
        %v4590 = vadd.f32 0.0, %v4589
        %4591 = vdwg.mxu0
        %v4592 = vsel %vm3104, %v4553, -1e+30
        %v4593 = vsel %vm3105, %v4555, -1e+30
        %v4594 = vsel %vm3106, %v4558, -1e+30
        %v4595 = vsel %vm3107, %v4560, -1e+30
        %v4596 = vsel %vm3108, %v4563, -1e+30
        %v4597 = vsel %vm3109, %v4565, -1e+30
        %v4598 = vsel %vm3110, %v4568, -1e+30
        %v4599 = vsel %vm3111, %v4570, -1e+30
        %v4600 = vsel %vm3112, %v4573, -1e+30
        %v4601 = vsel %vm3113, %v4575, -1e+30
        %v4602 = vsel %vm3114, %v4578, -1e+30
        %v4603 = vsel %vm3115, %v4580, -1e+30
        %v4604 = vsel %vm3116, %v4583, -1e+30
        %v4605 = vsel %vm3117, %v4585, -1e+30
        %v4606 = vsel %vm3118, %v4588, -1e+30
        %v4607 = vsel %vm3119, %v4590, -1e+30
        %4608 = vmax.xlane.f32.xlu0 %v4592
        %v4609 = vpop.xlane.xlu0 %4608
        %4610 = vmax.xlane.f32.xlu0 %v4593
        %v4611 = vpop.xlane.xlu0 %4610
        %4612 = vmax.xlane.f32.xlu0 %v4594
        %v4613 = vpop.xlane.xlu0 %4612
        %4614 = vmax.xlane.f32.xlu0 %v4595
        %v4615 = vpop.xlane.xlu0 %4614
        %4616 = vmax.xlane.f32.xlu0 %v4596
        %v4617 = vpop.xlane.xlu0 %4616
        %4618 = vmax.xlane.f32.xlu0 %v4597
        %v4619 = vpop.xlane.xlu0 %4618
        %4620 = vmax.xlane.f32.xlu0 %v4598
        %v4621 = vpop.xlane.xlu0 %4620
        %4622 = vmax.xlane.f32.xlu0 %v4599
        %v4623 = vpop.xlane.xlu0 %4622
        %4624 = vmax.xlane.f32.xlu0 %v4600
        %v4625 = vpop.xlane.xlu0 %4624
        %4626 = vmax.xlane.f32.xlu0 %v4601
        %v4627 = vpop.xlane.xlu0 %4626
        %4628 = vmax.xlane.f32.xlu0 %v4602
        %v4629 = vpop.xlane.xlu0 %4628
        %4630 = vmax.xlane.f32.xlu0 %v4603
        %v4631 = vpop.xlane.xlu0 %4630
        %4632 = vmax.xlane.f32.xlu0 %v4604
        %v4633 = vpop.xlane.xlu0 %4632
        %4634 = vmax.xlane.f32.xlu0 %v4605
        %v4635 = vpop.xlane.xlu0 %4634
        %4636 = vmax.xlane.f32.xlu0 %v4606
        %v4637 = vpop.xlane.xlu0 %4636
        %4638 = vmax.xlane.f32.xlu0 %v4607
        %v4639 = vpop.xlane.xlu0 %4638
        %v4640 = vsub.f32 %v4592, %v4609
        %v4641 = vsub.f32 %v4593, %v4611
        %v4642 = vsub.f32 %v4594, %v4613
        %v4643 = vsub.f32 %v4595, %v4615
        %v4644 = vsub.f32 %v4596, %v4617
        %v4645 = vsub.f32 %v4597, %v4619
        %v4646 = vsub.f32 %v4598, %v4621
        %v4647 = vsub.f32 %v4599, %v4623
        %v4648 = vsub.f32 %v4600, %v4625
        %v4649 = vsub.f32 %v4601, %v4627
        %v4650 = vsub.f32 %v4602, %v4629
        %v4651 = vsub.f32 %v4603, %v4631
        %v4652 = vsub.f32 %v4604, %v4633
        %v4653 = vsub.f32 %v4605, %v4635
        %v4654 = vsub.f32 %v4606, %v4637
        %v4655 = vsub.f32 %v4607, %v4639
        %v4656 = vpack.c.bf16 %v4641, %v4640
        %v4657 = vpack.c.bf16 %v4643, %v4642
        %v4658 = vpack.c.bf16 %v4645, %v4644
        %v4659 = vpack.c.bf16 %v4647, %v4646
        %v4660 = vpack.c.bf16 %v4649, %v4648
        %v4661 = vpack.c.bf16 %v4651, %v4650
        %v4662 = vpack.c.bf16 %v4653, %v4652
        %v4663 = vpack.c.bf16 %v4655, %v4654
        %v4664 = vunpack.c.l.bf16 %v4656
        %v4665 = vunpack.c.h.bf16 %v4656
        %v4666 = vunpack.c.l.bf16 %v4657
        %v4667 = vunpack.c.h.bf16 %v4657
        %v4668 = vunpack.c.l.bf16 %v4658
        %v4669 = vunpack.c.h.bf16 %v4658
        %v4670 = vunpack.c.l.bf16 %v4659
        %v4671 = vunpack.c.h.bf16 %v4659
        %v4672 = vunpack.c.l.bf16 %v4660
        %v4673 = vunpack.c.h.bf16 %v4660
        %v4674 = vunpack.c.l.bf16 %v4661
        %v4675 = vunpack.c.h.bf16 %v4661
        %v4676 = vunpack.c.l.bf16 %v4662
        %v4677 = vunpack.c.h.bf16 %v4662
        %v4678 = vunpack.c.l.bf16 %v4663
        %v4679 = vunpack.c.h.bf16 %v4663
        %v4680 = vmul.f32 %v4664, 1.442695
        %v4681 = vpow.pop %v4680
        %v4682 = vmul.f32 %v4665, 1.442695
        %v4683 = vpow.pop %v4682
        %v4684 = vmul.f32 %v4666, 1.442695
        %v4685 = vpow.pop %v4684
        %v4686 = vmul.f32 %v4667, 1.442695
        %v4687 = vpow.pop %v4686
        %v4688 = vmul.f32 %v4668, 1.442695
        %v4689 = vpow.pop %v4688
        %v4690 = vmul.f32 %v4669, 1.442695
        %v4691 = vpow.pop %v4690
        %v4692 = vmul.f32 %v4670, 1.442695
        %v4693 = vpow.pop %v4692
        %v4694 = vmul.f32 %v4671, 1.442695
        %v4695 = vpow.pop %v4694
        %v4696 = vmul.f32 %v4672, 1.442695
        %v4697 = vpow.pop %v4696
        %v4698 = vmul.f32 %v4673, 1.442695
        %v4699 = vpow.pop %v4698
        %v4700 = vmul.f32 %v4674, 1.442695
        %v4701 = vpow.pop %v4700
        %v4702 = vmul.f32 %v4675, 1.442695
        %v4703 = vpow.pop %v4702
        %v4704 = vmul.f32 %v4676, 1.442695
        %v4705 = vpow.pop %v4704
        %v4706 = vmul.f32 %v4677, 1.442695
        %v4707 = vpow.pop %v4706
        %v4708 = vmul.f32 %v4678, 1.442695
        %v4709 = vpow.pop %v4708
        %v4710 = vmul.f32 %v4679, 1.442695
        %v4711 = vpow.pop %v4710
        %v4712 = vpack.c.bf16 %v4683, %v4681
        %v4713 = vpack.c.bf16 %v4687, %v4685
        %v4714 = vpack.c.bf16 %v4691, %v4689
        %v4715 = vpack.c.bf16 %v4695, %v4693
        %v4716 = vpack.c.bf16 %v4699, %v4697
        %v4717 = vpack.c.bf16 %v4703, %v4701
        %v4718 = vpack.c.bf16 %v4707, %v4705
        %v4719 = vpack.c.bf16 %v4711, %v4709
        %v4720 = vunpack.c.l.bf16 %v4712
        %v4721 = vunpack.c.h.bf16 %v4712
        %v4722 = vunpack.c.l.bf16 %v4713
        %v4723 = vunpack.c.h.bf16 %v4713
        %v4724 = vunpack.c.l.bf16 %v4714
        %v4725 = vunpack.c.h.bf16 %v4714
        %v4726 = vunpack.c.l.bf16 %v4715
        %v4727 = vunpack.c.h.bf16 %v4715
        %v4728 = vunpack.c.l.bf16 %v4716
        %v4729 = vunpack.c.h.bf16 %v4716
        %v4730 = vunpack.c.l.bf16 %v4717
        %v4731 = vunpack.c.h.bf16 %v4717
        %v4732 = vunpack.c.l.bf16 %v4718
        %v4733 = vunpack.c.h.bf16 %v4718
        %v4734 = vunpack.c.l.bf16 %v4719
        %v4735 = vunpack.c.h.bf16 %v4719
        %4736 = vadd.xlane.f32.xlu0 %v4720
        %v4737 = vpop.xlane.xlu0 %4736
        %4738 = vadd.xlane.f32.xlu0 %v4721
        %v4739 = vpop.xlane.xlu0 %4738
        %4740 = vadd.xlane.f32.xlu0 %v4722
        %v4741 = vpop.xlane.xlu0 %4740
        %4742 = vadd.xlane.f32.xlu0 %v4723
        %v4743 = vpop.xlane.xlu0 %4742
        %4744 = vadd.xlane.f32.xlu0 %v4724
        %v4745 = vpop.xlane.xlu0 %4744
        %4746 = vadd.xlane.f32.xlu0 %v4725
        %v4747 = vpop.xlane.xlu0 %4746
        %4748 = vadd.xlane.f32.xlu0 %v4726
        %v4749 = vpop.xlane.xlu0 %4748
        %4750 = vadd.xlane.f32.xlu0 %v4727
        %v4751 = vpop.xlane.xlu0 %4750
        %4752 = vadd.xlane.f32.xlu0 %v4728
        %v4753 = vpop.xlane.xlu0 %4752
        %4754 = vadd.xlane.f32.xlu0 %v4729
        %v4755 = vpop.xlane.xlu0 %4754
        %4756 = vadd.xlane.f32.xlu0 %v4730
        %v4757 = vpop.xlane.xlu0 %4756
        %4758 = vadd.xlane.f32.xlu0 %v4731
        %v4759 = vpop.xlane.xlu0 %4758
        %4760 = vadd.xlane.f32.xlu0 %v4732
        %v4761 = vpop.xlane.xlu0 %4760
        %4762 = vadd.xlane.f32.xlu0 %v4733
        %v4763 = vpop.xlane.xlu0 %4762
        %4764 = vadd.xlane.f32.xlu0 %v4734
        %v4765 = vpop.xlane.xlu0 %4764
        %4766 = vadd.xlane.f32.xlu0 %v4735
        %v4767 = vpop.xlane.xlu0 %4766
        %4768 = vrot.lane.b32.xlu0 %v4366, 64
        %v4769 = vpop.permute.xlu0 %4768
        %4770 = vrot.lane.b32.xlu0 %v4367, 64
        %v4771 = vpop.permute.xlu0 %4770
        %4772 = vrot.lane.b32.xlu0 %v4368, 64
        %v4773 = vpop.permute.xlu0 %4772
        %4774 = vrot.lane.b32.xlu0 %v4369, 64
        %v4775 = vpop.permute.xlu0 %4774
        %4776 = vrot.lane.b32.xlu0 %v4370, 64
        %v4777 = vpop.permute.xlu0 %4776
        %4778 = vrot.lane.b32.xlu0 %v4371, 64
        %v4779 = vpop.permute.xlu0 %4778
        %4780 = vrot.lane.b32.xlu0 %v4372, 64
        %v4781 = vpop.permute.xlu0 %4780
        %4782 = vrot.lane.b32.xlu0 %v4373, 64
        %v4783 = vpop.permute.xlu0 %4782
        %4792 = vmatpush.bf16.msra.mxu0 %v4783
        %4793 = vmatpush.bf16.msra.mxu0 %v4781
        %4794 = vmatpush.bf16.msra.mxu0 %v4779
        %4795 = vmatpush.bf16.msra.mxu0 %v4777
        %4796 = vmatpush.bf16.msra.mxu0 %v4775
        %4797 = vmatpush.bf16.msra.mxu0 %v4773
        %4798 = vmatpush.bf16.msra.mxu0 %v4771
        %4799 = vmatpush.bf16.msra.mxu0 %v4769
        %4800 = vmatmul.bf16.gmra.mxu0 %v4712
        %v4801 = vpop.f32.mrf.mxu0
        %v4802 = vadd.f32 0.0, %v4801
        %v4803 = vpop.f32.mrf.mxu0
        %v4804 = vadd.f32 0.0, %v4803
        %4805 = vmatmul.bf16.gmra.mxu0 %v4713
        %v4806 = vpop.f32.mrf.mxu0
        %v4807 = vadd.f32 0.0, %v4806
        %v4808 = vpop.f32.mrf.mxu0
        %v4809 = vadd.f32 0.0, %v4808
        %4810 = vmatmul.bf16.gmra.mxu0 %v4714
        %v4811 = vpop.f32.mrf.mxu0
        %v4812 = vadd.f32 0.0, %v4811
        %v4813 = vpop.f32.mrf.mxu0
        %v4814 = vadd.f32 0.0, %v4813
        %4815 = vmatmul.bf16.gmra.mxu0 %v4715
        %v4816 = vpop.f32.mrf.mxu0
        %v4817 = vadd.f32 0.0, %v4816
        %v4818 = vpop.f32.mrf.mxu0
        %v4819 = vadd.f32 0.0, %v4818
        %4820 = vmatmul.bf16.gmra.mxu0 %v4716
        %v4821 = vpop.f32.mrf.mxu0
        %v4822 = vadd.f32 0.0, %v4821
        %v4823 = vpop.f32.mrf.mxu0
        %v4824 = vadd.f32 0.0, %v4823
        %4825 = vmatmul.bf16.gmra.mxu0 %v4717
        %v4826 = vpop.f32.mrf.mxu0
        %v4827 = vadd.f32 0.0, %v4826
        %v4828 = vpop.f32.mrf.mxu0
        %v4829 = vadd.f32 0.0, %v4828
        %4830 = vmatmul.bf16.gmra.mxu0 %v4718
        %v4831 = vpop.f32.mrf.mxu0
        %v4832 = vadd.f32 0.0, %v4831
        %v4833 = vpop.f32.mrf.mxu0
        %v4834 = vadd.f32 0.0, %v4833
        %4835 = vmatmul.bf16.gmra.mxu0 %v4719
        %v4836 = vpop.f32.mrf.mxu0
        %v4837 = vadd.f32 0.0, %v4836
        %v4838 = vpop.f32.mrf.mxu0
        %v4839 = vadd.f32 0.0, %v4838
        %4840 = vdwg.mxu0
        %v4841 = vrcp.pop %v4737
        %v4842 = vrcp.pop %v4739
        %v4843 = vrcp.pop %v4741
        %v4844 = vrcp.pop %v4743
        %v4845 = vrcp.pop %v4745
        %v4846 = vrcp.pop %v4747
        %v4847 = vrcp.pop %v4749
        %v4848 = vrcp.pop %v4751
        %v4849 = vrcp.pop %v4753
        %v4850 = vrcp.pop %v4755
        %v4851 = vrcp.pop %v4757
        %v4852 = vrcp.pop %v4759
        %v4853 = vrcp.pop %v4761
        %v4854 = vrcp.pop %v4763
        %v4855 = vrcp.pop %v4765
        %v4856 = vrcp.pop %v4767
        %v4857 = vmul.f32 %v4802, %v4841
        %v4858 = vmul.f32 %v4804, %v4842
        %v4859 = vmul.f32 %v4807, %v4843
        %v4860 = vmul.f32 %v4809, %v4844
        %v4861 = vmul.f32 %v4812, %v4845
        %v4862 = vmul.f32 %v4814, %v4846
        %v4863 = vmul.f32 %v4817, %v4847
        %v4864 = vmul.f32 %v4819, %v4848
        %v4865 = vmul.f32 %v4822, %v4849
        %v4866 = vmul.f32 %v4824, %v4850
        %v4867 = vmul.f32 %v4827, %v4851
        %v4868 = vmul.f32 %v4829, %v4852
        %v4869 = vmul.f32 %v4832, %v4853
        %v4870 = vmul.f32 %v4834, %v4854
        %v4871 = vmul.f32 %v4837, %v4855
        %v4872 = vmul.f32 %v4839, %v4856
        %v4873 = vunpack.c.l.b16 %v3006
        %v4874 = vunpack.c.l.b16 %v3011
        %v4875 = vunpack.c.l.b16 %v3016
        %v4876 = vunpack.c.l.b16 %v3021
        %v4877 = vunpack.c.l.b16 %v3026
        %v4878 = vunpack.c.l.b16 %v3031
        %v4879 = vunpack.c.l.b16 %v3036
        %v4880 = vunpack.c.l.b16 %v3041
        %v4881 = vunpack.c.l.b16 %v3046
        %v4882 = vunpack.c.l.b16 %v3051
        %v4883 = vunpack.c.l.b16 %v3056
        %v4884 = vunpack.c.l.b16 %v3061
        %v4885 = vunpack.c.l.b16 %v3066
        %v4886 = vunpack.c.l.b16 %v3071
        %v4887 = vunpack.c.l.b16 %v3076
        %v4888 = vunpack.c.l.b16 %v3081
        %v4889 = vpack.c.b16 %v4874, %v4873
        %v4890 = vpack.c.b16 %v4876, %v4875
        %v4891 = vpack.c.b16 %v4878, %v4877
        %v4892 = vpack.c.b16 %v4880, %v4879
        %v4893 = vpack.c.b16 %v4882, %v4881
        %v4894 = vpack.c.b16 %v4884, %v4883
        %v4895 = vpack.c.b16 %v4886, %v4885
        %v4896 = vpack.c.b16 %v4888, %v4887
        %v4897 = vunpack.c.h.b16 %v3007
        %v4898 = vunpack.c.h.b16 %v3012
        %v4899 = vunpack.c.h.b16 %v3017
        %v4900 = vunpack.c.h.b16 %v3022
        %v4901 = vunpack.c.h.b16 %v3027
        %v4902 = vunpack.c.h.b16 %v3032
        %v4903 = vunpack.c.h.b16 %v3037
        %v4904 = vunpack.c.h.b16 %v3042
        %v4905 = vunpack.c.h.b16 %v3047
        %v4906 = vunpack.c.h.b16 %v3052
        %v4907 = vunpack.c.h.b16 %v3057
        %v4908 = vunpack.c.h.b16 %v3062
        %v4909 = vunpack.c.h.b16 %v3067
        %v4910 = vunpack.c.h.b16 %v3072
        %v4911 = vunpack.c.h.b16 %v3077
        %v4912 = vunpack.c.h.b16 %v3082
        %v4913 = vpack.c.b16 %v4898, %v4897
        %v4914 = vpack.c.b16 %v4900, %v4899
        %v4915 = vpack.c.b16 %v4902, %v4901
        %v4916 = vpack.c.b16 %v4904, %v4903
        %v4917 = vpack.c.b16 %v4906, %v4905
        %v4918 = vpack.c.b16 %v4908, %v4907
        %v4919 = vpack.c.b16 %v4910, %v4909
        %v4920 = vpack.c.b16 %v4912, %v4911
        %v4922 = vsel %vm3200, %v4889, 0
        %v4925 = vsel %vm3200, %v4890, 0
        %v4928 = vsel %vm3200, %v4891, 0
        %v4931 = vsel %vm3200, %v4892, 0
        %v4934 = vsel %vm3200, %v4893, 0
        %v4937 = vsel %vm3200, %v4894, 0
        %v4940 = vsel %vm3200, %v4895, 0
        %v4943 = vsel %vm3200, %v4896, 0
        %v4946 = vsel %vm3200, %v4913, 0
        %v4949 = vsel %vm3200, %v4914, 0
        %v4952 = vsel %vm3200, %v4915, 0
        %v4955 = vsel %vm3200, %v4916, 0
        %v4958 = vsel %vm3200, %v4917, 0
        %v4961 = vsel %vm3200, %v4918, 0
        %v4964 = vsel %vm3200, %v4919, 0
        %v4967 = vsel %vm3200, %v4920, 0
        %4969 = vmatpush.bf16.xpose.msra.mxu0 %v4967
        %4970 = vmatpush.bf16.xpose.msra.mxu0 %v4964
        %4971 = vmatpush.bf16.xpose.msra.mxu0 %v4961
        %4972 = vmatpush.bf16.xpose.msra.mxu0 %v4958
        %4973 = vmatpush.bf16.xpose.msra.mxu0 %v4955
        %4974 = vmatpush.bf16.xpose.msra.mxu0 %v4952
        %4975 = vmatpush.bf16.xpose.msra.mxu0 %v4949
        %4976 = vmatpush.bf16.xpose.msra.mxu0 %v4946
        %4977 = vmatmul.bf16.gmra.mxu0 %v4922
        %v4978 = vpop.f32.mrf.mxu0
        %v4979 = vadd.f32 0.0, %v4978
        %v4980 = vpop.f32.mrf.mxu0
        %v4981 = vadd.f32 0.0, %v4980
        %4982 = vmatmul.bf16.gmra.mxu0 %v4925
        %v4983 = vpop.f32.mrf.mxu0
        %v4984 = vadd.f32 0.0, %v4983
        %v4985 = vpop.f32.mrf.mxu0
        %v4986 = vadd.f32 0.0, %v4985
        %4987 = vmatmul.bf16.gmra.mxu0 %v4928
        %v4988 = vpop.f32.mrf.mxu0
        %v4989 = vadd.f32 0.0, %v4988
        %v4990 = vpop.f32.mrf.mxu0
        %v4991 = vadd.f32 0.0, %v4990
        %4992 = vmatmul.bf16.gmra.mxu0 %v4931
        %v4993 = vpop.f32.mrf.mxu0
        %v4994 = vadd.f32 0.0, %v4993
        %v4995 = vpop.f32.mrf.mxu0
        %v4996 = vadd.f32 0.0, %v4995
        %4997 = vmatmul.bf16.gmra.mxu0 %v4934
        %v4998 = vpop.f32.mrf.mxu0
        %v4999 = vadd.f32 0.0, %v4998
        %v5000 = vpop.f32.mrf.mxu0
        %v5001 = vadd.f32 0.0, %v5000
        %5002 = vmatmul.bf16.gmra.mxu0 %v4937
        %v5003 = vpop.f32.mrf.mxu0
        %v5004 = vadd.f32 0.0, %v5003
        %v5005 = vpop.f32.mrf.mxu0
        %v5006 = vadd.f32 0.0, %v5005
        %5007 = vmatmul.bf16.gmra.mxu0 %v4940
        %v5008 = vpop.f32.mrf.mxu0
        %v5009 = vadd.f32 0.0, %v5008
        %v5010 = vpop.f32.mrf.mxu0
        %v5011 = vadd.f32 0.0, %v5010
        %5012 = vmatmul.bf16.gmra.mxu0 %v4943
        %v5013 = vpop.f32.mrf.mxu0
        %v5014 = vadd.f32 0.0, %v5013
        %v5015 = vpop.f32.mrf.mxu0
        %v5016 = vadd.f32 0.0, %v5015
        %5017 = vdwg.mxu0
        %v5018 = vsel %vm3104, %v4979, -1e+30
        %v5019 = vsel %vm3105, %v4981, -1e+30
        %v5020 = vsel %vm3106, %v4984, -1e+30
        %v5021 = vsel %vm3107, %v4986, -1e+30
        %v5022 = vsel %vm3108, %v4989, -1e+30
        %v5023 = vsel %vm3109, %v4991, -1e+30
        %v5024 = vsel %vm3110, %v4994, -1e+30
        %v5025 = vsel %vm3111, %v4996, -1e+30
        %v5026 = vsel %vm3112, %v4999, -1e+30
        %v5027 = vsel %vm3113, %v5001, -1e+30
        %v5028 = vsel %vm3114, %v5004, -1e+30
        %v5029 = vsel %vm3115, %v5006, -1e+30
        %v5030 = vsel %vm3116, %v5009, -1e+30
        %v5031 = vsel %vm3117, %v5011, -1e+30
        %v5032 = vsel %vm3118, %v5014, -1e+30
        %v5033 = vsel %vm3119, %v5016, -1e+30
        %5034 = vmax.xlane.f32.xlu0 %v5018
        %v5035 = vpop.xlane.xlu0 %5034
        %5036 = vmax.xlane.f32.xlu0 %v5019
        %v5037 = vpop.xlane.xlu0 %5036
        %5038 = vmax.xlane.f32.xlu0 %v5020
        %v5039 = vpop.xlane.xlu0 %5038
        %5040 = vmax.xlane.f32.xlu0 %v5021
        %v5041 = vpop.xlane.xlu0 %5040
        %5042 = vmax.xlane.f32.xlu0 %v5022
        %v5043 = vpop.xlane.xlu0 %5042
        %5044 = vmax.xlane.f32.xlu0 %v5023
        %v5045 = vpop.xlane.xlu0 %5044
        %5046 = vmax.xlane.f32.xlu0 %v5024
        %v5047 = vpop.xlane.xlu0 %5046
        %5048 = vmax.xlane.f32.xlu0 %v5025
        %v5049 = vpop.xlane.xlu0 %5048
        %5050 = vmax.xlane.f32.xlu0 %v5026
        %v5051 = vpop.xlane.xlu0 %5050
        %5052 = vmax.xlane.f32.xlu0 %v5027
        %v5053 = vpop.xlane.xlu0 %5052
        %5054 = vmax.xlane.f32.xlu0 %v5028
        %v5055 = vpop.xlane.xlu0 %5054
        %5056 = vmax.xlane.f32.xlu0 %v5029
        %v5057 = vpop.xlane.xlu0 %5056
        %5058 = vmax.xlane.f32.xlu0 %v5030
        %v5059 = vpop.xlane.xlu0 %5058
        %5060 = vmax.xlane.f32.xlu0 %v5031
        %v5061 = vpop.xlane.xlu0 %5060
        %5062 = vmax.xlane.f32.xlu0 %v5032
        %v5063 = vpop.xlane.xlu0 %5062
        %5064 = vmax.xlane.f32.xlu0 %v5033
        %v5065 = vpop.xlane.xlu0 %5064
        %v5066 = vsub.f32 %v5018, %v5035
        %v5067 = vsub.f32 %v5019, %v5037
        %v5068 = vsub.f32 %v5020, %v5039
        %v5069 = vsub.f32 %v5021, %v5041
        %v5070 = vsub.f32 %v5022, %v5043
        %v5071 = vsub.f32 %v5023, %v5045
        %v5072 = vsub.f32 %v5024, %v5047
        %v5073 = vsub.f32 %v5025, %v5049
        %v5074 = vsub.f32 %v5026, %v5051
        %v5075 = vsub.f32 %v5027, %v5053
        %v5076 = vsub.f32 %v5028, %v5055
        %v5077 = vsub.f32 %v5029, %v5057
        %v5078 = vsub.f32 %v5030, %v5059
        %v5079 = vsub.f32 %v5031, %v5061
        %v5080 = vsub.f32 %v5032, %v5063
        %v5081 = vsub.f32 %v5033, %v5065
        %v5082 = vpack.c.bf16 %v5067, %v5066
        %v5083 = vpack.c.bf16 %v5069, %v5068
        %v5084 = vpack.c.bf16 %v5071, %v5070
        %v5085 = vpack.c.bf16 %v5073, %v5072
        %v5086 = vpack.c.bf16 %v5075, %v5074
        %v5087 = vpack.c.bf16 %v5077, %v5076
        %v5088 = vpack.c.bf16 %v5079, %v5078
        %v5089 = vpack.c.bf16 %v5081, %v5080
        %v5090 = vunpack.c.l.bf16 %v5082
        %v5091 = vunpack.c.h.bf16 %v5082
        %v5092 = vunpack.c.l.bf16 %v5083
        %v5093 = vunpack.c.h.bf16 %v5083
        %v5094 = vunpack.c.l.bf16 %v5084
        %v5095 = vunpack.c.h.bf16 %v5084
        %v5096 = vunpack.c.l.bf16 %v5085
        %v5097 = vunpack.c.h.bf16 %v5085
        %v5098 = vunpack.c.l.bf16 %v5086
        %v5099 = vunpack.c.h.bf16 %v5086
        %v5100 = vunpack.c.l.bf16 %v5087
        %v5101 = vunpack.c.h.bf16 %v5087
        %v5102 = vunpack.c.l.bf16 %v5088
        %v5103 = vunpack.c.h.bf16 %v5088
        %v5104 = vunpack.c.l.bf16 %v5089
        %v5105 = vunpack.c.h.bf16 %v5089
        %v5106 = vmul.f32 %v5090, 1.442695
        %v5107 = vpow.pop %v5106
        %v5108 = vmul.f32 %v5091, 1.442695
        %v5109 = vpow.pop %v5108
        %v5110 = vmul.f32 %v5092, 1.442695
        %v5111 = vpow.pop %v5110
        %v5112 = vmul.f32 %v5093, 1.442695
        %v5113 = vpow.pop %v5112
        %v5114 = vmul.f32 %v5094, 1.442695
        %v5115 = vpow.pop %v5114
        %v5116 = vmul.f32 %v5095, 1.442695
        %v5117 = vpow.pop %v5116
        %v5118 = vmul.f32 %v5096, 1.442695
        %v5119 = vpow.pop %v5118
        %v5120 = vmul.f32 %v5097, 1.442695
        %v5121 = vpow.pop %v5120
        %v5122 = vmul.f32 %v5098, 1.442695
        %v5123 = vpow.pop %v5122
        %v5124 = vmul.f32 %v5099, 1.442695
        %v5125 = vpow.pop %v5124
        %v5126 = vmul.f32 %v5100, 1.442695
        %v5127 = vpow.pop %v5126
        %v5128 = vmul.f32 %v5101, 1.442695
        %v5129 = vpow.pop %v5128
        %v5130 = vmul.f32 %v5102, 1.442695
        %v5131 = vpow.pop %v5130
        %v5132 = vmul.f32 %v5103, 1.442695
        %v5133 = vpow.pop %v5132
        %v5134 = vmul.f32 %v5104, 1.442695
        %v5135 = vpow.pop %v5134
        %v5136 = vmul.f32 %v5105, 1.442695
        %v5137 = vpow.pop %v5136
        %v5138 = vpack.c.bf16 %v5109, %v5107
        %v5139 = vpack.c.bf16 %v5113, %v5111
        %v5140 = vpack.c.bf16 %v5117, %v5115
        %v5141 = vpack.c.bf16 %v5121, %v5119
        %v5142 = vpack.c.bf16 %v5125, %v5123
        %v5143 = vpack.c.bf16 %v5129, %v5127
        %v5144 = vpack.c.bf16 %v5133, %v5131
        %v5145 = vpack.c.bf16 %v5137, %v5135
        %v5146 = vunpack.c.l.bf16 %v5138
        %v5147 = vunpack.c.h.bf16 %v5138
        %v5148 = vunpack.c.l.bf16 %v5139
        %v5149 = vunpack.c.h.bf16 %v5139
        %v5150 = vunpack.c.l.bf16 %v5140
        %v5151 = vunpack.c.h.bf16 %v5140
        %v5152 = vunpack.c.l.bf16 %v5141
        %v5153 = vunpack.c.h.bf16 %v5141
        %v5154 = vunpack.c.l.bf16 %v5142
        %v5155 = vunpack.c.h.bf16 %v5142
        %v5156 = vunpack.c.l.bf16 %v5143
        %v5157 = vunpack.c.h.bf16 %v5143
        %v5158 = vunpack.c.l.bf16 %v5144
        %v5159 = vunpack.c.h.bf16 %v5144
        %v5160 = vunpack.c.l.bf16 %v5145
        %v5161 = vunpack.c.h.bf16 %v5145
        %5162 = vadd.xlane.f32.xlu0 %v5146
        %v5163 = vpop.xlane.xlu0 %5162
        %5164 = vadd.xlane.f32.xlu0 %v5147
        %v5165 = vpop.xlane.xlu0 %5164
        %5166 = vadd.xlane.f32.xlu0 %v5148
        %v5167 = vpop.xlane.xlu0 %5166
        %5168 = vadd.xlane.f32.xlu0 %v5149
        %v5169 = vpop.xlane.xlu0 %5168
        %5170 = vadd.xlane.f32.xlu0 %v5150
        %v5171 = vpop.xlane.xlu0 %5170
        %5172 = vadd.xlane.f32.xlu0 %v5151
        %v5173 = vpop.xlane.xlu0 %5172
        %5174 = vadd.xlane.f32.xlu0 %v5152
        %v5175 = vpop.xlane.xlu0 %5174
        %5176 = vadd.xlane.f32.xlu0 %v5153
        %v5177 = vpop.xlane.xlu0 %5176
        %5178 = vadd.xlane.f32.xlu0 %v5154
        %v5179 = vpop.xlane.xlu0 %5178
        %5180 = vadd.xlane.f32.xlu0 %v5155
        %v5181 = vpop.xlane.xlu0 %5180
        %5182 = vadd.xlane.f32.xlu0 %v5156
        %v5183 = vpop.xlane.xlu0 %5182
        %5184 = vadd.xlane.f32.xlu0 %v5157
        %v5185 = vpop.xlane.xlu0 %5184
        %5186 = vadd.xlane.f32.xlu0 %v5158
        %v5187 = vpop.xlane.xlu0 %5186
        %5188 = vadd.xlane.f32.xlu0 %v5159
        %v5189 = vpop.xlane.xlu0 %5188
        %5190 = vadd.xlane.f32.xlu0 %v5160
        %v5191 = vpop.xlane.xlu0 %5190
        %5192 = vadd.xlane.f32.xlu0 %v5161
        %v5193 = vpop.xlane.xlu0 %5192
        %v5210 = vunpack.c.l.b16 %v3009
        %v5211 = vunpack.c.l.b16 %v3014
        %v5212 = vunpack.c.l.b16 %v3019
        %v5213 = vunpack.c.l.b16 %v3024
        %v5214 = vunpack.c.l.b16 %v3029
        %v5215 = vunpack.c.l.b16 %v3034
        %v5216 = vunpack.c.l.b16 %v3039
        %v5217 = vunpack.c.l.b16 %v3044
        %v5218 = vunpack.c.l.b16 %v3049
        %v5219 = vunpack.c.l.b16 %v3054
        %v5220 = vunpack.c.l.b16 %v3059
        %v5221 = vunpack.c.l.b16 %v3064
        %v5222 = vunpack.c.l.b16 %v3069
        %v5223 = vunpack.c.l.b16 %v3074
        %v5224 = vunpack.c.l.b16 %v3079
        %v5225 = vunpack.c.l.b16 %v3084
        %v5226 = vpack.c.b16 %v5211, %v5210
        %v5227 = vpack.c.b16 %v5213, %v5212
        %v5228 = vpack.c.b16 %v5215, %v5214
        %v5229 = vpack.c.b16 %v5217, %v5216
        %v5230 = vpack.c.b16 %v5219, %v5218
        %v5231 = vpack.c.b16 %v5221, %v5220
        %v5232 = vpack.c.b16 %v5223, %v5222
        %v5233 = vpack.c.b16 %v5225, %v5224
        %5242 = vmatpush.bf16.msra.mxu0 %v5233
        %5243 = vmatpush.bf16.msra.mxu0 %v5232
        %5244 = vmatpush.bf16.msra.mxu0 %v5231
        %5245 = vmatpush.bf16.msra.mxu0 %v5230
        %5246 = vmatpush.bf16.msra.mxu0 %v5229
        %5247 = vmatpush.bf16.msra.mxu0 %v5228
        %5248 = vmatpush.bf16.msra.mxu0 %v5227
        %5249 = vmatpush.bf16.msra.mxu0 %v5226
        %5250 = vmatmul.bf16.gmra.mxu0 %v5138
        %v5251 = vpop.f32.mrf.mxu0
        %v5252 = vadd.f32 0.0, %v5251
        %v5253 = vpop.f32.mrf.mxu0
        %v5254 = vadd.f32 0.0, %v5253
        %5255 = vmatmul.bf16.gmra.mxu0 %v5139
        %v5256 = vpop.f32.mrf.mxu0
        %v5257 = vadd.f32 0.0, %v5256
        %v5258 = vpop.f32.mrf.mxu0
        %v5259 = vadd.f32 0.0, %v5258
        %5260 = vmatmul.bf16.gmra.mxu0 %v5140
        %v5261 = vpop.f32.mrf.mxu0
        %v5262 = vadd.f32 0.0, %v5261
        %v5263 = vpop.f32.mrf.mxu0
        %v5264 = vadd.f32 0.0, %v5263
        %5265 = vmatmul.bf16.gmra.mxu0 %v5141
        %v5266 = vpop.f32.mrf.mxu0
        %v5267 = vadd.f32 0.0, %v5266
        %v5268 = vpop.f32.mrf.mxu0
        %v5269 = vadd.f32 0.0, %v5268
        %5270 = vmatmul.bf16.gmra.mxu0 %v5142
        %v5271 = vpop.f32.mrf.mxu0
        %v5272 = vadd.f32 0.0, %v5271
        %v5273 = vpop.f32.mrf.mxu0
        %v5274 = vadd.f32 0.0, %v5273
        %5275 = vmatmul.bf16.gmra.mxu0 %v5143
        %v5276 = vpop.f32.mrf.mxu0
        %v5277 = vadd.f32 0.0, %v5276
        %v5278 = vpop.f32.mrf.mxu0
        %v5279 = vadd.f32 0.0, %v5278
        %5280 = vmatmul.bf16.gmra.mxu0 %v5144
        %v5281 = vpop.f32.mrf.mxu0
        %v5282 = vadd.f32 0.0, %v5281
        %v5283 = vpop.f32.mrf.mxu0
        %v5284 = vadd.f32 0.0, %v5283
        %5285 = vmatmul.bf16.gmra.mxu0 %v5145
        %v5286 = vpop.f32.mrf.mxu0
        %v5287 = vadd.f32 0.0, %v5286
        %v5288 = vpop.f32.mrf.mxu0
        %v5289 = vadd.f32 0.0, %v5288
        %5290 = vdwg.mxu0
        %v5291 = vrcp.pop %v5163
        %v5292 = vrcp.pop %v5165
        %v5293 = vrcp.pop %v5167
        %v5294 = vrcp.pop %v5169
        %v5295 = vrcp.pop %v5171
        %v5296 = vrcp.pop %v5173
        %v5297 = vrcp.pop %v5175
        %v5298 = vrcp.pop %v5177
        %v5299 = vrcp.pop %v5179
        %v5300 = vrcp.pop %v5181
        %v5301 = vrcp.pop %v5183
        %v5302 = vrcp.pop %v5185
        %v5303 = vrcp.pop %v5187
        %v5304 = vrcp.pop %v5189
        %v5305 = vrcp.pop %v5191
        %v5306 = vrcp.pop %v5193
        %v5307 = vmul.f32 %v5252, %v5291
        %v5308 = vmul.f32 %v5254, %v5292
        %v5309 = vmul.f32 %v5257, %v5293
        %v5310 = vmul.f32 %v5259, %v5294
        %v5311 = vmul.f32 %v5262, %v5295
        %v5312 = vmul.f32 %v5264, %v5296
        %v5313 = vmul.f32 %v5267, %v5297
        %v5314 = vmul.f32 %v5269, %v5298
        %v5315 = vmul.f32 %v5272, %v5299
        %v5316 = vmul.f32 %v5274, %v5300
        %v5317 = vmul.f32 %v5277, %v5301
        %v5318 = vmul.f32 %v5279, %v5302
        %v5319 = vmul.f32 %v5282, %v5303
        %v5320 = vmul.f32 %v5284, %v5304
        %v5321 = vmul.f32 %v5287, %v5305
        %v5322 = vmul.f32 %v5289, %v5306
        %5323 = vrot.lane.b32.xlu0 %v4889, 64
        %v5324 = vpop.permute.xlu0 %5323
        %5325 = vrot.lane.b32.xlu0 %v4890, 64
        %v5326 = vpop.permute.xlu0 %5325
        %5327 = vrot.lane.b32.xlu0 %v4891, 64
        %v5328 = vpop.permute.xlu0 %5327
        %5329 = vrot.lane.b32.xlu0 %v4892, 64
        %v5330 = vpop.permute.xlu0 %5329
        %5331 = vrot.lane.b32.xlu0 %v4893, 64
        %v5332 = vpop.permute.xlu0 %5331
        %5333 = vrot.lane.b32.xlu0 %v4894, 64
        %v5334 = vpop.permute.xlu0 %5333
        %5335 = vrot.lane.b32.xlu0 %v4895, 64
        %v5336 = vpop.permute.xlu0 %5335
        %5337 = vrot.lane.b32.xlu0 %v4896, 64
        %v5338 = vpop.permute.xlu0 %5337
        %5339 = vrot.lane.b32.xlu0 %v4913, 64
        %v5340 = vpop.permute.xlu0 %5339
        %5341 = vrot.lane.b32.xlu0 %v4914, 64
        %v5342 = vpop.permute.xlu0 %5341
        %5343 = vrot.lane.b32.xlu0 %v4915, 64
        %v5344 = vpop.permute.xlu0 %5343
        %5345 = vrot.lane.b32.xlu0 %v4916, 64
        %v5346 = vpop.permute.xlu0 %5345
        %5347 = vrot.lane.b32.xlu0 %v4917, 64
        %v5348 = vpop.permute.xlu0 %5347
        %5349 = vrot.lane.b32.xlu0 %v4918, 64
        %v5350 = vpop.permute.xlu0 %5349
        %5351 = vrot.lane.b32.xlu0 %v4919, 64
        %v5352 = vpop.permute.xlu0 %5351
        %5353 = vrot.lane.b32.xlu0 %v4920, 64
        %v5354 = vpop.permute.xlu0 %5353
        %v5356 = vsel %vm3200, %v5324, 0
        %v5359 = vsel %vm3200, %v5326, 0
        %v5362 = vsel %vm3200, %v5328, 0
        %v5365 = vsel %vm3200, %v5330, 0
        %v5368 = vsel %vm3200, %v5332, 0
        %v5371 = vsel %vm3200, %v5334, 0
        %v5374 = vsel %vm3200, %v5336, 0
        %v5377 = vsel %vm3200, %v5338, 0
        %v5380 = vsel %vm3200, %v5340, 0
        %v5383 = vsel %vm3200, %v5342, 0
        %v5386 = vsel %vm3200, %v5344, 0
        %v5389 = vsel %vm3200, %v5346, 0
        %v5392 = vsel %vm3200, %v5348, 0
        %v5395 = vsel %vm3200, %v5350, 0
        %v5398 = vsel %vm3200, %v5352, 0
        %v5401 = vsel %vm3200, %v5354, 0
        %5403 = vmatpush.bf16.xpose.msra.mxu0 %v5401
        %5404 = vmatpush.bf16.xpose.msra.mxu0 %v5398
        %5405 = vmatpush.bf16.xpose.msra.mxu0 %v5395
        %5406 = vmatpush.bf16.xpose.msra.mxu0 %v5392
        %5407 = vmatpush.bf16.xpose.msra.mxu0 %v5389
        %5408 = vmatpush.bf16.xpose.msra.mxu0 %v5386
        %5409 = vmatpush.bf16.xpose.msra.mxu0 %v5383
        %5410 = vmatpush.bf16.xpose.msra.mxu0 %v5380
        %5411 = vmatmul.bf16.gmra.mxu0 %v5356
        %v5412 = vpop.f32.mrf.mxu0
        %v5413 = vadd.f32 0.0, %v5412
        %v5414 = vpop.f32.mrf.mxu0
        %v5415 = vadd.f32 0.0, %v5414
        %5416 = vmatmul.bf16.gmra.mxu0 %v5359
        %v5417 = vpop.f32.mrf.mxu0
        %v5418 = vadd.f32 0.0, %v5417
        %v5419 = vpop.f32.mrf.mxu0
        %v5420 = vadd.f32 0.0, %v5419
        %5421 = vmatmul.bf16.gmra.mxu0 %v5362
        %v5422 = vpop.f32.mrf.mxu0
        %v5423 = vadd.f32 0.0, %v5422
        %v5424 = vpop.f32.mrf.mxu0
        %v5425 = vadd.f32 0.0, %v5424
        %5426 = vmatmul.bf16.gmra.mxu0 %v5365
        %v5427 = vpop.f32.mrf.mxu0
        %v5428 = vadd.f32 0.0, %v5427
        %v5429 = vpop.f32.mrf.mxu0
        %v5430 = vadd.f32 0.0, %v5429
        %5431 = vmatmul.bf16.gmra.mxu0 %v5368
        %v5432 = vpop.f32.mrf.mxu0
        %v5433 = vadd.f32 0.0, %v5432
        %v5434 = vpop.f32.mrf.mxu0
        %v5435 = vadd.f32 0.0, %v5434
        %5436 = vmatmul.bf16.gmra.mxu0 %v5371
        %v5437 = vpop.f32.mrf.mxu0
        %v5438 = vadd.f32 0.0, %v5437
        %v5439 = vpop.f32.mrf.mxu0
        %v5440 = vadd.f32 0.0, %v5439
        %5441 = vmatmul.bf16.gmra.mxu0 %v5374
        %v5442 = vpop.f32.mrf.mxu0
        %v5443 = vadd.f32 0.0, %v5442
        %v5444 = vpop.f32.mrf.mxu0
        %v5445 = vadd.f32 0.0, %v5444
        %5446 = vmatmul.bf16.gmra.mxu0 %v5377
        %v5447 = vpop.f32.mrf.mxu0
        %v5448 = vadd.f32 0.0, %v5447
        %v5449 = vpop.f32.mrf.mxu0
        %v5450 = vadd.f32 0.0, %v5449
        %5451 = vdwg.mxu0
        %v5452 = vsel %vm3104, %v5413, -1e+30
        %v5453 = vsel %vm3105, %v5415, -1e+30
        %v5454 = vsel %vm3106, %v5418, -1e+30
        %v5455 = vsel %vm3107, %v5420, -1e+30
        %v5456 = vsel %vm3108, %v5423, -1e+30
        %v5457 = vsel %vm3109, %v5425, -1e+30
        %v5458 = vsel %vm3110, %v5428, -1e+30
        %v5459 = vsel %vm3111, %v5430, -1e+30
        %v5460 = vsel %vm3112, %v5433, -1e+30
        %v5461 = vsel %vm3113, %v5435, -1e+30
        %v5462 = vsel %vm3114, %v5438, -1e+30
        %v5463 = vsel %vm3115, %v5440, -1e+30
        %v5464 = vsel %vm3116, %v5443, -1e+30
        %v5465 = vsel %vm3117, %v5445, -1e+30
        %v5466 = vsel %vm3118, %v5448, -1e+30
        %v5467 = vsel %vm3119, %v5450, -1e+30
        %5468 = vmax.xlane.f32.xlu0 %v5452
        %v5469 = vpop.xlane.xlu0 %5468
        %5470 = vmax.xlane.f32.xlu0 %v5453
        %v5471 = vpop.xlane.xlu0 %5470
        %5472 = vmax.xlane.f32.xlu0 %v5454
        %v5473 = vpop.xlane.xlu0 %5472
        %5474 = vmax.xlane.f32.xlu0 %v5455
        %v5475 = vpop.xlane.xlu0 %5474
        %5476 = vmax.xlane.f32.xlu0 %v5456
        %v5477 = vpop.xlane.xlu0 %5476
        %5478 = vmax.xlane.f32.xlu0 %v5457
        %v5479 = vpop.xlane.xlu0 %5478
        %5480 = vmax.xlane.f32.xlu0 %v5458
        %v5481 = vpop.xlane.xlu0 %5480
        %5482 = vmax.xlane.f32.xlu0 %v5459
        %v5483 = vpop.xlane.xlu0 %5482
        %5484 = vmax.xlane.f32.xlu0 %v5460
        %v5485 = vpop.xlane.xlu0 %5484
        %5486 = vmax.xlane.f32.xlu0 %v5461
        %v5487 = vpop.xlane.xlu0 %5486
        %5488 = vmax.xlane.f32.xlu0 %v5462
        %v5489 = vpop.xlane.xlu0 %5488
        %5490 = vmax.xlane.f32.xlu0 %v5463
        %v5491 = vpop.xlane.xlu0 %5490
        %5492 = vmax.xlane.f32.xlu0 %v5464
        %v5493 = vpop.xlane.xlu0 %5492
        %5494 = vmax.xlane.f32.xlu0 %v5465
        %v5495 = vpop.xlane.xlu0 %5494
        %5496 = vmax.xlane.f32.xlu0 %v5466
        %v5497 = vpop.xlane.xlu0 %5496
        %5498 = vmax.xlane.f32.xlu0 %v5467
        %v5499 = vpop.xlane.xlu0 %5498
        %v5500 = vsub.f32 %v5452, %v5469
        %v5501 = vsub.f32 %v5453, %v5471
        %v5502 = vsub.f32 %v5454, %v5473
        %v5503 = vsub.f32 %v5455, %v5475
        %v5504 = vsub.f32 %v5456, %v5477
        %v5505 = vsub.f32 %v5457, %v5479
        %v5506 = vsub.f32 %v5458, %v5481
        %v5507 = vsub.f32 %v5459, %v5483
        %v5508 = vsub.f32 %v5460, %v5485
        %v5509 = vsub.f32 %v5461, %v5487
        %v5510 = vsub.f32 %v5462, %v5489
        %v5511 = vsub.f32 %v5463, %v5491
        %v5512 = vsub.f32 %v5464, %v5493
        %v5513 = vsub.f32 %v5465, %v5495
        %v5514 = vsub.f32 %v5466, %v5497
        %v5515 = vsub.f32 %v5467, %v5499
        %v5516 = vpack.c.bf16 %v5501, %v5500
        %v5517 = vpack.c.bf16 %v5503, %v5502
        %v5518 = vpack.c.bf16 %v5505, %v5504
        %v5519 = vpack.c.bf16 %v5507, %v5506
        %v5520 = vpack.c.bf16 %v5509, %v5508
        %v5521 = vpack.c.bf16 %v5511, %v5510
        %v5522 = vpack.c.bf16 %v5513, %v5512
        %v5523 = vpack.c.bf16 %v5515, %v5514
        %v5524 = vunpack.c.l.bf16 %v5516
        %v5525 = vunpack.c.h.bf16 %v5516
        %v5526 = vunpack.c.l.bf16 %v5517
        %v5527 = vunpack.c.h.bf16 %v5517
        %v5528 = vunpack.c.l.bf16 %v5518
        %v5529 = vunpack.c.h.bf16 %v5518
        %v5530 = vunpack.c.l.bf16 %v5519
        %v5531 = vunpack.c.h.bf16 %v5519
        %v5532 = vunpack.c.l.bf16 %v5520
        %v5533 = vunpack.c.h.bf16 %v5520
        %v5534 = vunpack.c.l.bf16 %v5521
        %v5535 = vunpack.c.h.bf16 %v5521
        %v5536 = vunpack.c.l.bf16 %v5522
        %v5537 = vunpack.c.h.bf16 %v5522
        %v5538 = vunpack.c.l.bf16 %v5523
        %v5539 = vunpack.c.h.bf16 %v5523
        %v5540 = vmul.f32 %v5524, 1.442695
        %v5541 = vpow.pop %v5540
        %v5542 = vmul.f32 %v5525, 1.442695
        %v5543 = vpow.pop %v5542
        %v5544 = vmul.f32 %v5526, 1.442695
        %v5545 = vpow.pop %v5544
        %v5546 = vmul.f32 %v5527, 1.442695
        %v5547 = vpow.pop %v5546
        %v5548 = vmul.f32 %v5528, 1.442695
        %v5549 = vpow.pop %v5548
        %v5550 = vmul.f32 %v5529, 1.442695
        %v5551 = vpow.pop %v5550
        %v5552 = vmul.f32 %v5530, 1.442695
        %v5553 = vpow.pop %v5552
        %v5554 = vmul.f32 %v5531, 1.442695
        %v5555 = vpow.pop %v5554
        %v5556 = vmul.f32 %v5532, 1.442695
        %v5557 = vpow.pop %v5556
        %v5558 = vmul.f32 %v5533, 1.442695
        %v5559 = vpow.pop %v5558
        %v5560 = vmul.f32 %v5534, 1.442695
        %v5561 = vpow.pop %v5560
        %v5562 = vmul.f32 %v5535, 1.442695
        %v5563 = vpow.pop %v5562
        %v5564 = vmul.f32 %v5536, 1.442695
        %v5565 = vpow.pop %v5564
        %v5566 = vmul.f32 %v5537, 1.442695
        %v5567 = vpow.pop %v5566
        %v5568 = vmul.f32 %v5538, 1.442695
        %v5569 = vpow.pop %v5568
        %v5570 = vmul.f32 %v5539, 1.442695
        %v5571 = vpow.pop %v5570
        %v5572 = vpack.c.bf16 %v5543, %v5541
        %v5573 = vpack.c.bf16 %v5547, %v5545
        %v5574 = vpack.c.bf16 %v5551, %v5549
        %v5575 = vpack.c.bf16 %v5555, %v5553
        %v5576 = vpack.c.bf16 %v5559, %v5557
        %v5577 = vpack.c.bf16 %v5563, %v5561
        %v5578 = vpack.c.bf16 %v5567, %v5565
        %v5579 = vpack.c.bf16 %v5571, %v5569
        %v5580 = vunpack.c.l.bf16 %v5572
        %v5581 = vunpack.c.h.bf16 %v5572
        %v5582 = vunpack.c.l.bf16 %v5573
        %v5583 = vunpack.c.h.bf16 %v5573
        %v5584 = vunpack.c.l.bf16 %v5574
        %v5585 = vunpack.c.h.bf16 %v5574
        %v5586 = vunpack.c.l.bf16 %v5575
        %v5587 = vunpack.c.h.bf16 %v5575
        %v5588 = vunpack.c.l.bf16 %v5576
        %v5589 = vunpack.c.h.bf16 %v5576
        %v5590 = vunpack.c.l.bf16 %v5577
        %v5591 = vunpack.c.h.bf16 %v5577
        %v5592 = vunpack.c.l.bf16 %v5578
        %v5593 = vunpack.c.h.bf16 %v5578
        %v5594 = vunpack.c.l.bf16 %v5579
        %v5595 = vunpack.c.h.bf16 %v5579
        %5596 = vadd.xlane.f32.xlu0 %v5580
        %v5597 = vpop.xlane.xlu0 %5596
        %5598 = vadd.xlane.f32.xlu0 %v5581
        %v5599 = vpop.xlane.xlu0 %5598
        %5600 = vadd.xlane.f32.xlu0 %v5582
        %v5601 = vpop.xlane.xlu0 %5600
        %5602 = vadd.xlane.f32.xlu0 %v5583
        %v5603 = vpop.xlane.xlu0 %5602
        %5604 = vadd.xlane.f32.xlu0 %v5584
        %v5605 = vpop.xlane.xlu0 %5604
        %5606 = vadd.xlane.f32.xlu0 %v5585
        %v5607 = vpop.xlane.xlu0 %5606
        %5608 = vadd.xlane.f32.xlu0 %v5586
        %v5609 = vpop.xlane.xlu0 %5608
        %5610 = vadd.xlane.f32.xlu0 %v5587
        %v5611 = vpop.xlane.xlu0 %5610
        %5612 = vadd.xlane.f32.xlu0 %v5588
        %v5613 = vpop.xlane.xlu0 %5612
        %5614 = vadd.xlane.f32.xlu0 %v5589
        %v5615 = vpop.xlane.xlu0 %5614
        %5616 = vadd.xlane.f32.xlu0 %v5590
        %v5617 = vpop.xlane.xlu0 %5616
        %5618 = vadd.xlane.f32.xlu0 %v5591
        %v5619 = vpop.xlane.xlu0 %5618
        %5620 = vadd.xlane.f32.xlu0 %v5592
        %v5621 = vpop.xlane.xlu0 %5620
        %5622 = vadd.xlane.f32.xlu0 %v5593
        %v5623 = vpop.xlane.xlu0 %5622
        %5624 = vadd.xlane.f32.xlu0 %v5594
        %v5625 = vpop.xlane.xlu0 %5624
        %5626 = vadd.xlane.f32.xlu0 %v5595
        %v5627 = vpop.xlane.xlu0 %5626
        %5628 = vrot.lane.b32.xlu0 %v5226, 64
        %v5629 = vpop.permute.xlu0 %5628
        %5630 = vrot.lane.b32.xlu0 %v5227, 64
        %v5631 = vpop.permute.xlu0 %5630
        %5632 = vrot.lane.b32.xlu0 %v5228, 64
        %v5633 = vpop.permute.xlu0 %5632
        %5634 = vrot.lane.b32.xlu0 %v5229, 64
        %v5635 = vpop.permute.xlu0 %5634
        %5636 = vrot.lane.b32.xlu0 %v5230, 64
        %v5637 = vpop.permute.xlu0 %5636
        %5638 = vrot.lane.b32.xlu0 %v5231, 64
        %v5639 = vpop.permute.xlu0 %5638
        %5640 = vrot.lane.b32.xlu0 %v5232, 64
        %v5641 = vpop.permute.xlu0 %5640
        %5642 = vrot.lane.b32.xlu0 %v5233, 64
        %v5643 = vpop.permute.xlu0 %5642
        %5652 = vmatpush.bf16.msra.mxu0 %v5643
        %5653 = vmatpush.bf16.msra.mxu0 %v5641
        %5654 = vmatpush.bf16.msra.mxu0 %v5639
        %5655 = vmatpush.bf16.msra.mxu0 %v5637
        %5656 = vmatpush.bf16.msra.mxu0 %v5635
        %5657 = vmatpush.bf16.msra.mxu0 %v5633
        %5658 = vmatpush.bf16.msra.mxu0 %v5631
        %5659 = vmatpush.bf16.msra.mxu0 %v5629
        %5660 = vmatmul.bf16.gmra.mxu0 %v5572
        %v5661 = vpop.f32.mrf.mxu0
        %v5662 = vadd.f32 0.0, %v5661
        %v5663 = vpop.f32.mrf.mxu0
        %v5664 = vadd.f32 0.0, %v5663
        %5665 = vmatmul.bf16.gmra.mxu0 %v5573
        %v5666 = vpop.f32.mrf.mxu0
        %v5667 = vadd.f32 0.0, %v5666
        %v5668 = vpop.f32.mrf.mxu0
        %v5669 = vadd.f32 0.0, %v5668
        %5670 = vmatmul.bf16.gmra.mxu0 %v5574
        %v5671 = vpop.f32.mrf.mxu0
        %v5672 = vadd.f32 0.0, %v5671
        %v5673 = vpop.f32.mrf.mxu0
        %v5674 = vadd.f32 0.0, %v5673
        %5675 = vmatmul.bf16.gmra.mxu0 %v5575
        %v5676 = vpop.f32.mrf.mxu0
        %v5677 = vadd.f32 0.0, %v5676
        %v5678 = vpop.f32.mrf.mxu0
        %v5679 = vadd.f32 0.0, %v5678
        %5680 = vmatmul.bf16.gmra.mxu0 %v5576
        %v5681 = vpop.f32.mrf.mxu0
        %v5682 = vadd.f32 0.0, %v5681
        %v5683 = vpop.f32.mrf.mxu0
        %v5684 = vadd.f32 0.0, %v5683
        %5685 = vmatmul.bf16.gmra.mxu0 %v5577
        %v5686 = vpop.f32.mrf.mxu0
        %v5687 = vadd.f32 0.0, %v5686
        %v5688 = vpop.f32.mrf.mxu0
        %v5689 = vadd.f32 0.0, %v5688
        %5690 = vmatmul.bf16.gmra.mxu0 %v5578
        %v5691 = vpop.f32.mrf.mxu0
        %v5692 = vadd.f32 0.0, %v5691
        %v5693 = vpop.f32.mrf.mxu0
        %v5694 = vadd.f32 0.0, %v5693
        %5695 = vmatmul.bf16.gmra.mxu0 %v5579
        %v5696 = vpop.f32.mrf.mxu0
        %v5697 = vadd.f32 0.0, %v5696
        %v5698 = vpop.f32.mrf.mxu0
        %v5699 = vadd.f32 0.0, %v5698
        %5700 = vdwg.mxu0
        %v5701 = vrcp.pop %v5597
        %v5702 = vrcp.pop %v5599
        %v5703 = vrcp.pop %v5601
        %v5704 = vrcp.pop %v5603
        %v5705 = vrcp.pop %v5605
        %v5706 = vrcp.pop %v5607
        %v5707 = vrcp.pop %v5609
        %v5708 = vrcp.pop %v5611
        %v5709 = vrcp.pop %v5613
        %v5710 = vrcp.pop %v5615
        %v5711 = vrcp.pop %v5617
        %v5712 = vrcp.pop %v5619
        %v5713 = vrcp.pop %v5621
        %v5714 = vrcp.pop %v5623
        %v5715 = vrcp.pop %v5625
        %v5716 = vrcp.pop %v5627
        %v5717 = vmul.f32 %v5662, %v5701
        %v5718 = vmul.f32 %v5664, %v5702
        %v5719 = vmul.f32 %v5667, %v5703
        %v5720 = vmul.f32 %v5669, %v5704
        %v5721 = vmul.f32 %v5672, %v5705
        %v5722 = vmul.f32 %v5674, %v5706
        %v5723 = vmul.f32 %v5677, %v5707
        %v5724 = vmul.f32 %v5679, %v5708
        %v5725 = vmul.f32 %v5682, %v5709
        %v5726 = vmul.f32 %v5684, %v5710
        %v5727 = vmul.f32 %v5687, %v5711
        %v5728 = vmul.f32 %v5689, %v5712
        %v5729 = vmul.f32 %v5692, %v5713
        %v5730 = vmul.f32 %v5694, %v5714
        %v5731 = vmul.f32 %v5697, %v5715
        %v5732 = vmul.f32 %v5699, %v5716
        %5749 = vrot.lane.b32.xlu0 %v3997, 64
        %v5750 = vpop.permute.xlu0 %5749
        %5751 = vrot.lane.b32.xlu0 %v3998, 64
        %v5752 = vpop.permute.xlu0 %5751
        %5753 = vrot.lane.b32.xlu0 %v3999, 64
        %v5754 = vpop.permute.xlu0 %5753
        %5755 = vrot.lane.b32.xlu0 %v4000, 64
        %v5756 = vpop.permute.xlu0 %5755
        %5757 = vrot.lane.b32.xlu0 %v4001, 64
        %v5758 = vpop.permute.xlu0 %5757
        %5759 = vrot.lane.b32.xlu0 %v4002, 64
        %v5760 = vpop.permute.xlu0 %5759
        %5761 = vrot.lane.b32.xlu0 %v4003, 64
        %v5762 = vpop.permute.xlu0 %5761
        %5763 = vrot.lane.b32.xlu0 %v4004, 64
        %v5764 = vpop.permute.xlu0 %5763
        %5765 = vrot.lane.b32.xlu0 %v4005, 64
        %v5766 = vpop.permute.xlu0 %5765
        %5767 = vrot.lane.b32.xlu0 %v4006, 64
        %v5768 = vpop.permute.xlu0 %5767
        %5769 = vrot.lane.b32.xlu0 %v4007, 64
        %v5770 = vpop.permute.xlu0 %5769
        %5771 = vrot.lane.b32.xlu0 %v4008, 64
        %v5772 = vpop.permute.xlu0 %5771
        %5773 = vrot.lane.b32.xlu0 %v4009, 64
        %v5774 = vpop.permute.xlu0 %5773
        %5775 = vrot.lane.b32.xlu0 %v4010, 64
        %v5776 = vpop.permute.xlu0 %5775
        %5777 = vrot.lane.b32.xlu0 %v4011, 64
        %v5778 = vpop.permute.xlu0 %5777
        %5779 = vrot.lane.b32.xlu0 %v4012, 64
        %v5780 = vpop.permute.xlu0 %5779
        %5813 = vrot.lane.b32.xlu0 %v4857, 64
        %v5814 = vpop.permute.xlu0 %5813
        %5815 = vrot.lane.b32.xlu0 %v4858, 64
        %v5816 = vpop.permute.xlu0 %5815
        %5817 = vrot.lane.b32.xlu0 %v4859, 64
        %v5818 = vpop.permute.xlu0 %5817
        %5819 = vrot.lane.b32.xlu0 %v4860, 64
        %v5820 = vpop.permute.xlu0 %5819
        %5821 = vrot.lane.b32.xlu0 %v4861, 64
        %v5822 = vpop.permute.xlu0 %5821
        %5823 = vrot.lane.b32.xlu0 %v4862, 64
        %v5824 = vpop.permute.xlu0 %5823
        %5825 = vrot.lane.b32.xlu0 %v4863, 64
        %v5826 = vpop.permute.xlu0 %5825
        %5827 = vrot.lane.b32.xlu0 %v4864, 64
        %v5828 = vpop.permute.xlu0 %5827
        %5829 = vrot.lane.b32.xlu0 %v4865, 64
        %v5830 = vpop.permute.xlu0 %5829
        %5831 = vrot.lane.b32.xlu0 %v4866, 64
        %v5832 = vpop.permute.xlu0 %5831
        %5833 = vrot.lane.b32.xlu0 %v4867, 64
        %v5834 = vpop.permute.xlu0 %5833
        %5835 = vrot.lane.b32.xlu0 %v4868, 64
        %v5836 = vpop.permute.xlu0 %5835
        %5837 = vrot.lane.b32.xlu0 %v4869, 64
        %v5838 = vpop.permute.xlu0 %5837
        %5839 = vrot.lane.b32.xlu0 %v4870, 64
        %v5840 = vpop.permute.xlu0 %5839
        %5841 = vrot.lane.b32.xlu0 %v4871, 64
        %v5842 = vpop.permute.xlu0 %5841
        %5843 = vrot.lane.b32.xlu0 %v4872, 64
        %v5844 = vpop.permute.xlu0 %5843
        %5877 = vrot.lane.b32.xlu0 %v5717, 64
        %v5878 = vpop.permute.xlu0 %5877
        %5879 = vrot.lane.b32.xlu0 %v5718, 64
        %v5880 = vpop.permute.xlu0 %5879
        %5881 = vrot.lane.b32.xlu0 %v5719, 64
        %v5882 = vpop.permute.xlu0 %5881
        %5883 = vrot.lane.b32.xlu0 %v5720, 64
        %v5884 = vpop.permute.xlu0 %5883
        %5885 = vrot.lane.b32.xlu0 %v5721, 64
        %v5886 = vpop.permute.xlu0 %5885
        %5887 = vrot.lane.b32.xlu0 %v5722, 64
        %v5888 = vpop.permute.xlu0 %5887
        %5889 = vrot.lane.b32.xlu0 %v5723, 64
        %v5890 = vpop.permute.xlu0 %5889
        %5891 = vrot.lane.b32.xlu0 %v5724, 64
        %v5892 = vpop.permute.xlu0 %5891
        %5893 = vrot.lane.b32.xlu0 %v5725, 64
        %v5894 = vpop.permute.xlu0 %5893
        %5895 = vrot.lane.b32.xlu0 %v5726, 64
        %v5896 = vpop.permute.xlu0 %5895
        %5897 = vrot.lane.b32.xlu0 %v5727, 64
        %v5898 = vpop.permute.xlu0 %5897
        %5899 = vrot.lane.b32.xlu0 %v5728, 64
        %v5900 = vpop.permute.xlu0 %5899
        %5901 = vrot.lane.b32.xlu0 %v5729, 64
        %v5902 = vpop.permute.xlu0 %5901
        %5903 = vrot.lane.b32.xlu0 %v5730, 64
        %v5904 = vpop.permute.xlu0 %5903
        %5905 = vrot.lane.b32.xlu0 %v5731, 64
        %v5906 = vpop.permute.xlu0 %5905
        %5907 = vrot.lane.b32.xlu0 %v5732, 64
        %v5908 = vpop.permute.xlu0 %5907
        %v5925 = vsel %vm3200, %v3587, %v5750
        %v5926 = vsel %vm3200, %v3588, %v5752
        %v5927 = vsel %vm3200, %v3589, %v5754
        %v5928 = vsel %vm3200, %v3590, %v5756
        %v5929 = vsel %vm3200, %v3591, %v5758
        %v5930 = vsel %vm3200, %v3592, %v5760
        %v5931 = vsel %vm3200, %v3593, %v5762
        %v5932 = vsel %vm3200, %v3594, %v5764
        %v5933 = vsel %vm3200, %v3595, %v5766
        %v5934 = vsel %vm3200, %v3596, %v5768
        %v5935 = vsel %vm3200, %v3597, %v5770
        %v5936 = vsel %vm3200, %v3598, %v5772
        %v5937 = vsel %vm3200, %v3599, %v5774
        %v5938 = vsel %vm3200, %v3600, %v5776
        %v5939 = vsel %vm3200, %v3601, %v5778
        %v5940 = vsel %vm3200, %v3602, %v5780
        %v5941 = vsel %vm3200, %v4447, %v5814
        %v5942 = vsel %vm3200, %v4448, %v5816
        %v5943 = vsel %vm3200, %v4449, %v5818
        %v5944 = vsel %vm3200, %v4450, %v5820
        %v5945 = vsel %vm3200, %v4451, %v5822
        %v5946 = vsel %vm3200, %v4452, %v5824
        %v5947 = vsel %vm3200, %v4453, %v5826
        %v5948 = vsel %vm3200, %v4454, %v5828
        %v5949 = vsel %vm3200, %v4455, %v5830
        %v5950 = vsel %vm3200, %v4456, %v5832
        %v5951 = vsel %vm3200, %v4457, %v5834
        %v5952 = vsel %vm3200, %v4458, %v5836
        %v5953 = vsel %vm3200, %v4459, %v5838
        %v5954 = vsel %vm3200, %v4460, %v5840
        %v5955 = vsel %vm3200, %v4461, %v5842
        %v5956 = vsel %vm3200, %v4462, %v5844
        %v5957 = vsel %vm3200, %v5307, %v5878
        %v5958 = vsel %vm3200, %v5308, %v5880
        %v5959 = vsel %vm3200, %v5309, %v5882
        %v5960 = vsel %vm3200, %v5310, %v5884
        %v5961 = vsel %vm3200, %v5311, %v5886
        %v5962 = vsel %vm3200, %v5312, %v5888
        %v5963 = vsel %vm3200, %v5313, %v5890
        %v5964 = vsel %vm3200, %v5314, %v5892
        %v5965 = vsel %vm3200, %v5315, %v5894
        %v5966 = vsel %vm3200, %v5316, %v5896
        %v5967 = vsel %vm3200, %v5317, %v5898
        %v5968 = vsel %vm3200, %v5318, %v5900
        %v5969 = vsel %vm3200, %v5319, %v5902
        %v5970 = vsel %vm3200, %v5320, %v5904
        %v5971 = vsel %vm3200, %v5321, %v5906
        %v5972 = vsel %vm3200, %v5322, %v5908
        %v5973 = vpack.c.bf16 %v5926, %v5925
        %v5974 = vpack.c.bf16 %v5942, %v5941
        %v5975 = vpack.c.bf16 %v5958, %v5957
        %v5976 = vpack.c.bf16 %v5928, %v5927
        %v5977 = vpack.c.bf16 %v5944, %v5943
        %v5978 = vpack.c.bf16 %v5960, %v5959
        %v5979 = vpack.c.bf16 %v5930, %v5929
        %v5980 = vpack.c.bf16 %v5946, %v5945
        %v5981 = vpack.c.bf16 %v5962, %v5961
        %v5982 = vpack.c.bf16 %v5932, %v5931
        %v5983 = vpack.c.bf16 %v5948, %v5947
        %v5984 = vpack.c.bf16 %v5964, %v5963
        %v5985 = vpack.c.bf16 %v5934, %v5933
        %v5986 = vpack.c.bf16 %v5950, %v5949
        %v5987 = vpack.c.bf16 %v5966, %v5965
        %v5988 = vpack.c.bf16 %v5936, %v5935
        %v5989 = vpack.c.bf16 %v5952, %v5951
        %v5990 = vpack.c.bf16 %v5968, %v5967
        %v5991 = vpack.c.bf16 %v5938, %v5937
        %v5992 = vpack.c.bf16 %v5954, %v5953
        %v5993 = vpack.c.bf16 %v5970, %v5969
        %v5994 = vpack.c.bf16 %v5940, %v5939
        %v5995 = vpack.c.bf16 %v5956, %v5955
        %v5996 = vpack.c.bf16 %v5972, %v5971
        %v5997 = vld [vmem:[#allocation7] sm:$0xff]
        %v5998 = vld [vmem:[#allocation7 + $0x8] sm:$0xf]
        %v5999 = vld [vmem:[#allocation7 + $0xc] sm:$0xff]
        %v6000 = vld [vmem:[#allocation7 + $0x14] sm:$0xf]
        %v6001 = vld [vmem:[#allocation7 + $0x18] sm:$0xff]
        %v6002 = vld [vmem:[#allocation7 + $0x20] sm:$0xf]
        %v6003 = vld [vmem:[#allocation7 + $0x24] sm:$0xff]
        %v6004 = vld [vmem:[#allocation7 + $0x2c] sm:$0xf]
        %v6005 = vld [vmem:[#allocation7 + $0x30] sm:$0xff]
        %v6006 = vld [vmem:[#allocation7 + $0x38] sm:$0xf]
        %v6007 = vld [vmem:[#allocation7 + $0x3c] sm:$0xff]
        %v6008 = vld [vmem:[#allocation7 + $0x44] sm:$0xf]
        %v6009 = vld [vmem:[#allocation7 + $0x48] sm:$0xff]
        %v6010 = vld [vmem:[#allocation7 + $0x50] sm:$0xf]
        %v6011 = vld [vmem:[#allocation7 + $0x54] sm:$0xff]
        %v6012 = vld [vmem:[#allocation7 + $0x5c] sm:$0xf]
        %v6013 = vld [vmem:[#allocation7 + $0x60] sm:$0xff]
        %v6014 = vld [vmem:[#allocation7 + $0x68] sm:$0xf]
        %v6015 = vld [vmem:[#allocation7 + $0x6c] sm:$0xff]
        %v6016 = vld [vmem:[#allocation7 + $0x74] sm:$0xf]
        %v6017 = vld [vmem:[#allocation7 + $0x78] sm:$0xff]
        %v6018 = vld [vmem:[#allocation7 + $0x80] sm:$0xf]
        %v6019 = vld [vmem:[#allocation7 + $0x84] sm:$0xff]
        %v6020 = vld [vmem:[#allocation7 + $0x8c] sm:$0xf]
        %v6021 = vld [vmem:[#allocation7 + $0x90] sm:$0xff]
        %v6022 = vld [vmem:[#allocation7 + $0x98] sm:$0xf]
        %v6023 = vld [vmem:[#allocation7 + $0x9c] sm:$0xff]
        %v6024 = vld [vmem:[#allocation7 + $0xa4] sm:$0xf]
        %v6025 = vld [vmem:[#allocation7 + $0xa8] sm:$0xff]
        %v6026 = vld [vmem:[#allocation7 + $0xb0] sm:$0xf]
        %v6027 = vld [vmem:[#allocation7 + $0xb4] sm:$0xff]
        %v6028 = vld [vmem:[#allocation7 + $0xbc] sm:$0xf]
        %v6029 = vld [vmem:[#allocation7 + $0xc0] sm:$0xff]
        %v6030 = vld [vmem:[#allocation7 + $0xc8] sm:$0xf]
        %v6031 = vld [vmem:[#allocation7 + $0xcc] sm:$0xff]
        %v6032 = vld [vmem:[#allocation7 + $0xd4] sm:$0xf]
        %v6033 = vld [vmem:[#allocation7 + $0xd8] sm:$0xff]
        %v6034 = vld [vmem:[#allocation7 + $0xe0] sm:$0xf]
        %v6035 = vld [vmem:[#allocation7 + $0xe4] sm:$0xff]
        %v6036 = vld [vmem:[#allocation7 + $0xec] sm:$0xf]
        %v6037 = vld [vmem:[#allocation7 + $0xf0] sm:$0xff]
        %v6038 = vld [vmem:[#allocation7 + $0xf8] sm:$0xf]
        %v6039 = vld [vmem:[#allocation7 + $0xfc] sm:$0xff]
        %v6040 = vld [vmem:[#allocation7 + $0x104] sm:$0xf]
        %v6041 = vld [vmem:[#allocation7 + $0x108] sm:$0xff]
        %v6042 = vld [vmem:[#allocation7 + $0x110] sm:$0xf]
        %v6043 = vld [vmem:[#allocation7 + $0x114] sm:$0xff]
        %v6044 = vld [vmem:[#allocation7 + $0x11c] sm:$0xf]
        %v6045 = vld [vmem:[#allocation7 + $0x120] sm:$0xff]
        %v6046 = vld [vmem:[#allocation7 + $0x128] sm:$0xf]
        %v6047 = vld [vmem:[#allocation7 + $0x12c] sm:$0xff]
        %v6048 = vld [vmem:[#allocation7 + $0x134] sm:$0xf]
        %v6049 = vld [vmem:[#allocation7 + $0x138] sm:$0xff]
        %v6050 = vld [vmem:[#allocation7 + $0x140] sm:$0xf]
        %v6051 = vld [vmem:[#allocation7 + $0x144] sm:$0xff]
        %v6052 = vld [vmem:[#allocation7 + $0x14c] sm:$0xf]
        %v6053 = vld [vmem:[#allocation7 + $0x150] sm:$0xff]
        %v6054 = vld [vmem:[#allocation7 + $0x158] sm:$0xf]
        %v6055 = vld [vmem:[#allocation7 + $0x15c] sm:$0xff]
        %v6056 = vld [vmem:[#allocation7 + $0x164] sm:$0xf]
        %v6057 = vld [vmem:[#allocation7 + $0x168] sm:$0xff]
        %v6058 = vld [vmem:[#allocation7 + $0x170] sm:$0xf]
        %v6059 = vld [vmem:[#allocation7 + $0x174] sm:$0xff]
        %v6060 = vld [vmem:[#allocation7 + $0x17c] sm:$0xf]
        %v6061 = vld [vmem:[#allocation7 + $0x180] sm:$0xff]
        %v6062 = vld [vmem:[#allocation7 + $0x188] sm:$0xf]
        %v6063 = vld [vmem:[#allocation7 + $0x18c] sm:$0xff]
        %v6064 = vld [vmem:[#allocation7 + $0x194] sm:$0xf]
        %v6065 = vld [vmem:[#allocation7 + $0x198] sm:$0xff]
        %v6066 = vld [vmem:[#allocation7 + $0x1a0] sm:$0xf]
        %v6067 = vld [vmem:[#allocation7 + $0x1a4] sm:$0xff]
        %v6068 = vld [vmem:[#allocation7 + $0x1ac] sm:$0xf]
        %v6069 = vld [vmem:[#allocation7 + $0x1b0] sm:$0xff]
        %v6070 = vld [vmem:[#allocation7 + $0x1b8] sm:$0xf]
        %v6071 = vld [vmem:[#allocation7 + $0x1bc] sm:$0xff]
        %v6072 = vld [vmem:[#allocation7 + $0x1c4] sm:$0xf]
        %v6073 = vld [vmem:[#allocation7 + $0x1c8] sm:$0xff]
        %v6074 = vld [vmem:[#allocation7 + $0x1d0] sm:$0xf]
        %v6075 = vld [vmem:[#allocation7 + $0x1d4] sm:$0xff]
        %v6076 = vld [vmem:[#allocation7 + $0x1dc] sm:$0xf]
        %v6077 = vld [vmem:[#allocation7 + $0x1e0] sm:$0xff]
        %v6078 = vld [vmem:[#allocation7 + $0x1e8] sm:$0xf]
        %v6079 = vld [vmem:[#allocation7 + $0x1ec] sm:$0xff]
        %v6080 = vld [vmem:[#allocation7 + $0x1f4] sm:$0xf]
        %v6081 = vld [vmem:[#allocation7 + $0x1f8] sm:$0xff]
        %v6082 = vld [vmem:[#allocation7 + $0x200] sm:$0xf]
        %v6083 = vld [vmem:[#allocation7 + $0x204] sm:$0xff]
        %v6084 = vld [vmem:[#allocation7 + $0x20c] sm:$0xf]
        %v6085 = vld [vmem:[#allocation7 + $0x210] sm:$0xff]
        %v6086 = vld [vmem:[#allocation7 + $0x218] sm:$0xf]
        %v6087 = vld [vmem:[#allocation7 + $0x21c] sm:$0xff]
        %v6088 = vld [vmem:[#allocation7 + $0x224] sm:$0xf]
        %v6089 = vld [vmem:[#allocation7 + $0x228] sm:$0xff]
        %v6090 = vld [vmem:[#allocation7 + $0x230] sm:$0xf]
        %v6091 = vld [vmem:[#allocation7 + $0x234] sm:$0xff]
        %v6092 = vld [vmem:[#allocation7 + $0x23c] sm:$0xf]
        %v6093 = vld [vmem:[#allocation8] sm:$0x7]
        %v6095 = vperm.slane %v6093, 0
        %v6096 = vperm.slane %v6093, 1
        %v6097 = vperm.slane %v6093, 2
        %v6197 = vunpack.c.l.b16 %v5997
        %v6198 = vunpack.c.h.b16 %v5997
        %v6199 = vunpack.c.l.b16 %v5998
        %v6200 = vunpack.c.l.b16 %v5999
        %v6201 = vunpack.c.h.b16 %v5999
        %v6202 = vunpack.c.l.b16 %v6000
        %v6203 = vunpack.c.l.b16 %v6001
        %v6204 = vunpack.c.h.b16 %v6001
        %v6205 = vunpack.c.l.b16 %v6002
        %v6206 = vunpack.c.l.b16 %v6003
        %v6207 = vunpack.c.h.b16 %v6003
        %v6208 = vunpack.c.l.b16 %v6004
        %v6209 = vunpack.c.l.b16 %v6005
        %v6210 = vunpack.c.h.b16 %v6005
        %v6211 = vunpack.c.l.b16 %v6006
        %v6212 = vunpack.c.l.b16 %v6007
        %v6213 = vunpack.c.h.b16 %v6007
        %v6214 = vunpack.c.l.b16 %v6008
        %v6215 = vunpack.c.l.b16 %v6009
        %v6216 = vunpack.c.h.b16 %v6009
        %v6217 = vunpack.c.l.b16 %v6010
        %v6218 = vunpack.c.l.b16 %v6011
        %v6219 = vunpack.c.h.b16 %v6011
        %v6220 = vunpack.c.l.b16 %v6012
        %v6221 = vunpack.c.l.b16 %v6013
        %v6222 = vunpack.c.h.b16 %v6013
        %v6223 = vunpack.c.l.b16 %v6014
        %v6224 = vunpack.c.l.b16 %v6015
        %v6225 = vunpack.c.h.b16 %v6015
        %v6226 = vunpack.c.l.b16 %v6016
        %v6227 = vunpack.c.l.b16 %v6017
        %v6228 = vunpack.c.h.b16 %v6017
        %v6229 = vunpack.c.l.b16 %v6018
        %v6230 = vunpack.c.l.b16 %v6019
        %v6231 = vunpack.c.h.b16 %v6019
        %v6232 = vunpack.c.l.b16 %v6020
        %v6233 = vunpack.c.l.b16 %v6021
        %v6234 = vunpack.c.h.b16 %v6021
        %v6235 = vunpack.c.l.b16 %v6022
        %v6236 = vunpack.c.l.b16 %v6023
        %v6237 = vunpack.c.h.b16 %v6023
        %v6238 = vunpack.c.l.b16 %v6024
        %v6239 = vunpack.c.l.b16 %v6025
        %v6240 = vunpack.c.h.b16 %v6025
        %v6241 = vunpack.c.l.b16 %v6026
        %v6242 = vunpack.c.l.b16 %v6027
        %v6243 = vunpack.c.h.b16 %v6027
        %v6244 = vunpack.c.l.b16 %v6028
        %v6245 = vunpack.c.l.b16 %v6029
        %v6246 = vunpack.c.h.b16 %v6029
        %v6247 = vunpack.c.l.b16 %v6030
        %v6248 = vunpack.c.l.b16 %v6031
        %v6249 = vunpack.c.h.b16 %v6031
        %v6250 = vunpack.c.l.b16 %v6032
        %v6251 = vunpack.c.l.b16 %v6033
        %v6252 = vunpack.c.h.b16 %v6033
        %v6253 = vunpack.c.l.b16 %v6034
        %v6254 = vunpack.c.l.b16 %v6035
        %v6255 = vunpack.c.h.b16 %v6035
        %v6256 = vunpack.c.l.b16 %v6036
        %v6257 = vunpack.c.l.b16 %v6037
        %v6258 = vunpack.c.h.b16 %v6037
        %v6259 = vunpack.c.l.b16 %v6038
        %v6260 = vunpack.c.l.b16 %v6039
        %v6261 = vunpack.c.h.b16 %v6039
        %v6262 = vunpack.c.l.b16 %v6040
        %v6263 = vunpack.c.l.b16 %v6041
        %v6264 = vunpack.c.h.b16 %v6041
        %v6265 = vunpack.c.l.b16 %v6042
        %v6266 = vunpack.c.l.b16 %v6043
        %v6267 = vunpack.c.h.b16 %v6043
        %v6268 = vunpack.c.l.b16 %v6044
        %v6269 = vunpack.c.l.b16 %v6045
        %v6270 = vunpack.c.h.b16 %v6045
        %v6271 = vunpack.c.l.b16 %v6046
        %v6272 = vunpack.c.l.b16 %v6047
        %v6273 = vunpack.c.h.b16 %v6047
        %v6274 = vunpack.c.l.b16 %v6048
        %v6275 = vunpack.c.l.b16 %v6049
        %v6276 = vunpack.c.h.b16 %v6049
        %v6277 = vunpack.c.l.b16 %v6050
        %v6278 = vunpack.c.l.b16 %v6051
        %v6279 = vunpack.c.h.b16 %v6051
        %v6280 = vunpack.c.l.b16 %v6052
        %v6281 = vunpack.c.l.b16 %v6053
        %v6282 = vunpack.c.h.b16 %v6053
        %v6283 = vunpack.c.l.b16 %v6054
        %v6284 = vunpack.c.l.b16 %v6055
        %v6285 = vunpack.c.h.b16 %v6055
        %v6286 = vunpack.c.l.b16 %v6056
        %v6287 = vunpack.c.l.b16 %v6057
        %v6288 = vunpack.c.h.b16 %v6057
        %v6289 = vunpack.c.l.b16 %v6058
        %v6290 = vunpack.c.l.b16 %v6059
        %v6291 = vunpack.c.h.b16 %v6059
        %v6292 = vunpack.c.l.b16 %v6060
        %v6293 = vunpack.c.l.b16 %v6061
        %v6294 = vunpack.c.h.b16 %v6061
        %v6295 = vunpack.c.l.b16 %v6062
        %v6296 = vunpack.c.l.b16 %v6063
        %v6297 = vunpack.c.h.b16 %v6063
        %v6298 = vunpack.c.l.b16 %v6064
        %v6299 = vunpack.c.l.b16 %v6065
        %v6300 = vunpack.c.h.b16 %v6065
        %v6301 = vunpack.c.l.b16 %v6066
        %v6302 = vunpack.c.l.b16 %v6067
        %v6303 = vunpack.c.h.b16 %v6067
        %v6304 = vunpack.c.l.b16 %v6068
        %v6305 = vunpack.c.l.b16 %v6069
        %v6306 = vunpack.c.h.b16 %v6069
        %v6307 = vunpack.c.l.b16 %v6070
        %v6308 = vunpack.c.l.b16 %v6071
        %v6309 = vunpack.c.h.b16 %v6071
        %v6310 = vunpack.c.l.b16 %v6072
        %v6311 = vunpack.c.l.b16 %v6073
        %v6312 = vunpack.c.h.b16 %v6073
        %v6313 = vunpack.c.l.b16 %v6074
        %v6314 = vunpack.c.l.b16 %v6075
        %v6315 = vunpack.c.h.b16 %v6075
        %v6316 = vunpack.c.l.b16 %v6076
        %v6317 = vunpack.c.l.b16 %v6077
        %v6318 = vunpack.c.h.b16 %v6077
        %v6319 = vunpack.c.l.b16 %v6078
        %v6320 = vunpack.c.l.b16 %v6079
        %v6321 = vunpack.c.h.b16 %v6079
        %v6322 = vunpack.c.l.b16 %v6080
        %v6323 = vunpack.c.l.b16 %v6081
        %v6324 = vunpack.c.h.b16 %v6081
        %v6325 = vunpack.c.l.b16 %v6082
        %v6326 = vunpack.c.l.b16 %v6083
        %v6327 = vunpack.c.h.b16 %v6083
        %v6328 = vunpack.c.l.b16 %v6084
        %v6329 = vunpack.c.l.b16 %v6085
        %v6330 = vunpack.c.h.b16 %v6085
        %v6331 = vunpack.c.l.b16 %v6086
        %v6332 = vunpack.c.l.b16 %v6087
        %v6333 = vunpack.c.h.b16 %v6087
        %v6334 = vunpack.c.l.b16 %v6088
        %v6335 = vunpack.c.l.b16 %v6089
        %v6336 = vunpack.c.h.b16 %v6089
        %v6337 = vunpack.c.l.b16 %v6090
        %v6338 = vunpack.c.l.b16 %v6091
        %v6339 = vunpack.c.h.b16 %v6091
        %v6340 = vunpack.c.l.b16 %v6092
        %v6341 = vpack.c.b16 %v6200, %v6197
        %v6342 = vpack.c.b16 %v6201, %v6198
        %v6343 = vpack.c.b16 %v6202, %v6199
        %v6344 = vpack.c.b16 %v6206, %v6203
        %v6345 = vpack.c.b16 %v6207, %v6204
        %v6346 = vpack.c.b16 %v6208, %v6205
        %v6347 = vpack.c.b16 %v6212, %v6209
        %v6348 = vpack.c.b16 %v6213, %v6210
        %v6349 = vpack.c.b16 %v6214, %v6211
        %v6350 = vpack.c.b16 %v6218, %v6215
        %v6351 = vpack.c.b16 %v6219, %v6216
        %v6352 = vpack.c.b16 %v6220, %v6217
        %v6353 = vpack.c.b16 %v6224, %v6221
        %v6354 = vpack.c.b16 %v6225, %v6222
        %v6355 = vpack.c.b16 %v6226, %v6223
        %v6356 = vpack.c.b16 %v6230, %v6227
        %v6357 = vpack.c.b16 %v6231, %v6228
        %v6358 = vpack.c.b16 %v6232, %v6229
        %v6359 = vpack.c.b16 %v6236, %v6233
        %v6360 = vpack.c.b16 %v6237, %v6234
        %v6361 = vpack.c.b16 %v6238, %v6235
        %v6362 = vpack.c.b16 %v6242, %v6239
        %v6363 = vpack.c.b16 %v6243, %v6240
        %v6364 = vpack.c.b16 %v6244, %v6241
        %v6365 = vpack.c.b16 %v6248, %v6245
        %v6366 = vpack.c.b16 %v6249, %v6246
        %v6367 = vpack.c.b16 %v6250, %v6247
        %v6368 = vpack.c.b16 %v6254, %v6251
        %v6369 = vpack.c.b16 %v6255, %v6252
        %v6370 = vpack.c.b16 %v6256, %v6253
        %v6371 = vpack.c.b16 %v6260, %v6257
        %v6372 = vpack.c.b16 %v6261, %v6258
        %v6373 = vpack.c.b16 %v6262, %v6259
        %v6374 = vpack.c.b16 %v6266, %v6263
        %v6375 = vpack.c.b16 %v6267, %v6264
        %v6376 = vpack.c.b16 %v6268, %v6265
        %v6377 = vpack.c.b16 %v6272, %v6269
        %v6378 = vpack.c.b16 %v6273, %v6270
        %v6379 = vpack.c.b16 %v6274, %v6271
        %v6380 = vpack.c.b16 %v6278, %v6275
        %v6381 = vpack.c.b16 %v6279, %v6276
        %v6382 = vpack.c.b16 %v6280, %v6277
        %v6383 = vpack.c.b16 %v6284, %v6281
        %v6384 = vpack.c.b16 %v6285, %v6282
        %v6385 = vpack.c.b16 %v6286, %v6283
        %v6386 = vpack.c.b16 %v6290, %v6287
        %v6387 = vpack.c.b16 %v6291, %v6288
        %v6388 = vpack.c.b16 %v6292, %v6289
        %v6389 = vpack.c.b16 %v6296, %v6293
        %v6390 = vpack.c.b16 %v6297, %v6294
        %v6391 = vpack.c.b16 %v6298, %v6295
        %v6392 = vpack.c.b16 %v6302, %v6299
        %v6393 = vpack.c.b16 %v6303, %v6300
        %v6394 = vpack.c.b16 %v6304, %v6301
        %v6395 = vpack.c.b16 %v6308, %v6305
        %v6396 = vpack.c.b16 %v6309, %v6306
        %v6397 = vpack.c.b16 %v6310, %v6307
        %v6398 = vpack.c.b16 %v6314, %v6311
        %v6399 = vpack.c.b16 %v6315, %v6312
        %v6400 = vpack.c.b16 %v6316, %v6313
        %v6401 = vpack.c.b16 %v6320, %v6317
        %v6402 = vpack.c.b16 %v6321, %v6318
        %v6403 = vpack.c.b16 %v6322, %v6319
        %v6404 = vpack.c.b16 %v6326, %v6323
        %v6405 = vpack.c.b16 %v6327, %v6324
        %v6406 = vpack.c.b16 %v6328, %v6325
        %v6407 = vpack.c.b16 %v6332, %v6329
        %v6408 = vpack.c.b16 %v6333, %v6330
        %v6409 = vpack.c.b16 %v6334, %v6331
        %v6410 = vpack.c.b16 %v6338, %v6335
        %v6411 = vpack.c.b16 %v6339, %v6336
        %v6412 = vpack.c.b16 %v6340, %v6337
        %6485 = vmatpush.bf16.msra.mxu0 %v6362
        %6486 = vmatpush.bf16.msra.mxu0 %v6359
        %6487 = vmatpush.bf16.msra.mxu0 %v6356
        %6488 = vmatpush.bf16.msra.mxu0 %v6353
        %6489 = vmatpush.bf16.msra.mxu0 %v6350
        %6490 = vmatpush.bf16.msra.mxu0 %v6347
        %6491 = vmatpush.bf16.msra.mxu0 %v6344
        %6492 = vmatpush.bf16.msra.mxu0 %v6341
        %6493 = vmatmul.bf16.gmra.mxu0 %v5973
        %v6494 = vpop.f32.mrf.mxu0
        %v6495 = vadd.f32 %v6095, %v6494
        %v6496 = vpop.f32.mrf.mxu0
        %v6497 = vadd.f32 %v6095, %v6496
        %6498 = vmatmul.bf16.gmra.mxu0 %v5976
        %v6499 = vpop.f32.mrf.mxu0
        %v6500 = vadd.f32 %v6095, %v6499
        %v6501 = vpop.f32.mrf.mxu0
        %v6502 = vadd.f32 %v6095, %v6501
        %6503 = vmatmul.bf16.gmra.mxu0 %v5979
        %v6504 = vpop.f32.mrf.mxu0
        %v6505 = vadd.f32 %v6095, %v6504
        %v6506 = vpop.f32.mrf.mxu0
        %v6507 = vadd.f32 %v6095, %v6506
        %6508 = vmatmul.bf16.gmra.mxu0 %v5982
        %v6509 = vpop.f32.mrf.mxu0
        %v6510 = vadd.f32 %v6095, %v6509
        %v6511 = vpop.f32.mrf.mxu0
        %v6512 = vadd.f32 %v6095, %v6511
        %6513 = vmatmul.bf16.gmra.mxu0 %v5985
        %v6514 = vpop.f32.mrf.mxu0
        %v6515 = vadd.f32 %v6095, %v6514
        %v6516 = vpop.f32.mrf.mxu0
        %v6517 = vadd.f32 %v6095, %v6516
        %6518 = vmatmul.bf16.gmra.mxu0 %v5988
        %v6519 = vpop.f32.mrf.mxu0
        %v6520 = vadd.f32 %v6095, %v6519
        %v6521 = vpop.f32.mrf.mxu0
        %v6522 = vadd.f32 %v6095, %v6521
        %6523 = vmatmul.bf16.gmra.mxu0 %v5991
        %v6524 = vpop.f32.mrf.mxu0
        %v6525 = vadd.f32 %v6095, %v6524
        %v6526 = vpop.f32.mrf.mxu0
        %v6527 = vadd.f32 %v6095, %v6526
        %6528 = vmatmul.bf16.gmra.mxu0 %v5994
        %v6529 = vpop.f32.mrf.mxu0
        %v6530 = vadd.f32 %v6095, %v6529
        %v6531 = vpop.f32.mrf.mxu0
        %v6532 = vadd.f32 %v6095, %v6531
        %6533 = vdwg.mxu0
        %6534 = vmatpush.bf16.msra.mxu0 %v6386
        %6535 = vmatpush.bf16.msra.mxu0 %v6383
        %6536 = vmatpush.bf16.msra.mxu0 %v6380
        %6537 = vmatpush.bf16.msra.mxu0 %v6377
        %6538 = vmatpush.bf16.msra.mxu0 %v6374
        %6539 = vmatpush.bf16.msra.mxu0 %v6371
        %6540 = vmatpush.bf16.msra.mxu0 %v6368
        %6541 = vmatpush.bf16.msra.mxu0 %v6365
        %6542 = vmatmul.bf16.gmra.mxu0 %v5974
        %v6543 = vpop.f32.mrf.mxu0
        %v6544 = vadd.f32 %v6495, %v6543
        %v6545 = vpop.f32.mrf.mxu0
        %v6546 = vadd.f32 %v6497, %v6545
        %6547 = vmatmul.bf16.gmra.mxu0 %v5977
        %v6548 = vpop.f32.mrf.mxu0
        %v6549 = vadd.f32 %v6500, %v6548
        %v6550 = vpop.f32.mrf.mxu0
        %v6551 = vadd.f32 %v6502, %v6550
        %6552 = vmatmul.bf16.gmra.mxu0 %v5980
        %v6553 = vpop.f32.mrf.mxu0
        %v6554 = vadd.f32 %v6505, %v6553
        %v6555 = vpop.f32.mrf.mxu0
        %v6556 = vadd.f32 %v6507, %v6555
        %6557 = vmatmul.bf16.gmra.mxu0 %v5983
        %v6558 = vpop.f32.mrf.mxu0
        %v6559 = vadd.f32 %v6510, %v6558
        %v6560 = vpop.f32.mrf.mxu0
        %v6561 = vadd.f32 %v6512, %v6560
        %6562 = vmatmul.bf16.gmra.mxu0 %v5986
        %v6563 = vpop.f32.mrf.mxu0
        %v6564 = vadd.f32 %v6515, %v6563
        %v6565 = vpop.f32.mrf.mxu0
        %v6566 = vadd.f32 %v6517, %v6565
        %6567 = vmatmul.bf16.gmra.mxu0 %v5989
        %v6568 = vpop.f32.mrf.mxu0
        %v6569 = vadd.f32 %v6520, %v6568
        %v6570 = vpop.f32.mrf.mxu0
        %v6571 = vadd.f32 %v6522, %v6570
        %6572 = vmatmul.bf16.gmra.mxu0 %v5992
        %v6573 = vpop.f32.mrf.mxu0
        %v6574 = vadd.f32 %v6525, %v6573
        %v6575 = vpop.f32.mrf.mxu0
        %v6576 = vadd.f32 %v6527, %v6575
        %6577 = vmatmul.bf16.gmra.mxu0 %v5995
        %v6578 = vpop.f32.mrf.mxu0
        %v6579 = vadd.f32 %v6530, %v6578
        %v6580 = vpop.f32.mrf.mxu0
        %v6581 = vadd.f32 %v6532, %v6580
        %6582 = vdwg.mxu0
        %6583 = vmatpush.bf16.msra.mxu0 %v6410
        %6584 = vmatpush.bf16.msra.mxu0 %v6407
        %6585 = vmatpush.bf16.msra.mxu0 %v6404
        %6586 = vmatpush.bf16.msra.mxu0 %v6401
        %6587 = vmatpush.bf16.msra.mxu0 %v6398
        %6588 = vmatpush.bf16.msra.mxu0 %v6395
        %6589 = vmatpush.bf16.msra.mxu0 %v6392
        %6590 = vmatpush.bf16.msra.mxu0 %v6389
        %6591 = vmatmul.bf16.gmra.mxu0 %v5975
        %v6592 = vpop.f32.mrf.mxu0
        %v6593 = vadd.f32 %v6544, %v6592
        %v6594 = vpop.f32.mrf.mxu0
        %v6595 = vadd.f32 %v6546, %v6594
        %6596 = vmatmul.bf16.gmra.mxu0 %v5978
        %v6597 = vpop.f32.mrf.mxu0
        %v6598 = vadd.f32 %v6549, %v6597
        %v6599 = vpop.f32.mrf.mxu0
        %v6600 = vadd.f32 %v6551, %v6599
        %6601 = vmatmul.bf16.gmra.mxu0 %v5981
        %v6602 = vpop.f32.mrf.mxu0
        %v6603 = vadd.f32 %v6554, %v6602
        %v6604 = vpop.f32.mrf.mxu0
        %v6605 = vadd.f32 %v6556, %v6604
        %6606 = vmatmul.bf16.gmra.mxu0 %v5984
        %v6607 = vpop.f32.mrf.mxu0
        %v6608 = vadd.f32 %v6559, %v6607
        %v6609 = vpop.f32.mrf.mxu0
        %v6610 = vadd.f32 %v6561, %v6609
        %6611 = vmatmul.bf16.gmra.mxu0 %v5987
        %v6612 = vpop.f32.mrf.mxu0
        %v6613 = vadd.f32 %v6564, %v6612
        %v6614 = vpop.f32.mrf.mxu0
        %v6615 = vadd.f32 %v6566, %v6614
        %6616 = vmatmul.bf16.gmra.mxu0 %v5990
        %v6617 = vpop.f32.mrf.mxu0
        %v6618 = vadd.f32 %v6569, %v6617
        %v6619 = vpop.f32.mrf.mxu0
        %v6620 = vadd.f32 %v6571, %v6619
        %6621 = vmatmul.bf16.gmra.mxu0 %v5993
        %v6622 = vpop.f32.mrf.mxu0
        %v6623 = vadd.f32 %v6574, %v6622
        %v6624 = vpop.f32.mrf.mxu0
        %v6625 = vadd.f32 %v6576, %v6624
        %6626 = vmatmul.bf16.gmra.mxu0 %v5996
        %v6627 = vpop.f32.mrf.mxu0
        %v6628 = vadd.f32 %v6579, %v6627
        %v6629 = vpop.f32.mrf.mxu0
        %v6630 = vadd.f32 %v6581, %v6629
        %6631 = vdwg.mxu0
        %6632 = vmatpush.bf16.msra.mxu0 %v6363
        %6633 = vmatpush.bf16.msra.mxu0 %v6360
        %6634 = vmatpush.bf16.msra.mxu0 %v6357
        %6635 = vmatpush.bf16.msra.mxu0 %v6354
        %6636 = vmatpush.bf16.msra.mxu0 %v6351
        %6637 = vmatpush.bf16.msra.mxu0 %v6348
        %6638 = vmatpush.bf16.msra.mxu0 %v6345
        %6639 = vmatpush.bf16.msra.mxu0 %v6342
        %6640 = vmatmul.bf16.gmra.mxu0 %v5973
        %v6641 = vpop.f32.mrf.mxu0
        %v6642 = vadd.f32 %v6096, %v6641
        %v6643 = vpop.f32.mrf.mxu0
        %v6644 = vadd.f32 %v6096, %v6643
        %6645 = vmatmul.bf16.gmra.mxu0 %v5976
        %v6646 = vpop.f32.mrf.mxu0
        %v6647 = vadd.f32 %v6096, %v6646
        %v6648 = vpop.f32.mrf.mxu0
        %v6649 = vadd.f32 %v6096, %v6648
        %6650 = vmatmul.bf16.gmra.mxu0 %v5979
        %v6651 = vpop.f32.mrf.mxu0
        %v6652 = vadd.f32 %v6096, %v6651
        %v6653 = vpop.f32.mrf.mxu0
        %v6654 = vadd.f32 %v6096, %v6653
        %6655 = vmatmul.bf16.gmra.mxu0 %v5982
        %v6656 = vpop.f32.mrf.mxu0
        %v6657 = vadd.f32 %v6096, %v6656
        %v6658 = vpop.f32.mrf.mxu0
        %v6659 = vadd.f32 %v6096, %v6658
        %6660 = vmatmul.bf16.gmra.mxu0 %v5985
        %v6661 = vpop.f32.mrf.mxu0
        %v6662 = vadd.f32 %v6096, %v6661
        %v6663 = vpop.f32.mrf.mxu0
        %v6664 = vadd.f32 %v6096, %v6663
        %6665 = vmatmul.bf16.gmra.mxu0 %v5988
        %v6666 = vpop.f32.mrf.mxu0
        %v6667 = vadd.f32 %v6096, %v6666
        %v6668 = vpop.f32.mrf.mxu0
        %v6669 = vadd.f32 %v6096, %v6668
        %6670 = vmatmul.bf16.gmra.mxu0 %v5991
        %v6671 = vpop.f32.mrf.mxu0
        %v6672 = vadd.f32 %v6096, %v6671
        %v6673 = vpop.f32.mrf.mxu0
        %v6674 = vadd.f32 %v6096, %v6673
        %6675 = vmatmul.bf16.gmra.mxu0 %v5994
        %v6676 = vpop.f32.mrf.mxu0
        %v6677 = vadd.f32 %v6096, %v6676
        %v6678 = vpop.f32.mrf.mxu0
        %v6679 = vadd.f32 %v6096, %v6678
        %6680 = vdwg.mxu0
        %6681 = vmatpush.bf16.msra.mxu0 %v6387
        %6682 = vmatpush.bf16.msra.mxu0 %v6384
        %6683 = vmatpush.bf16.msra.mxu0 %v6381
        %6684 = vmatpush.bf16.msra.mxu0 %v6378
        %6685 = vmatpush.bf16.msra.mxu0 %v6375
        %6686 = vmatpush.bf16.msra.mxu0 %v6372
        %6687 = vmatpush.bf16.msra.mxu0 %v6369
        %6688 = vmatpush.bf16.msra.mxu0 %v6366
        %6689 = vmatmul.bf16.gmra.mxu0 %v5974
        %v6690 = vpop.f32.mrf.mxu0
        %v6691 = vadd.f32 %v6642, %v6690
        %v6692 = vpop.f32.mrf.mxu0
        %v6693 = vadd.f32 %v6644, %v6692
        %6694 = vmatmul.bf16.gmra.mxu0 %v5977
        %v6695 = vpop.f32.mrf.mxu0
        %v6696 = vadd.f32 %v6647, %v6695
        %v6697 = vpop.f32.mrf.mxu0
        %v6698 = vadd.f32 %v6649, %v6697
        %6699 = vmatmul.bf16.gmra.mxu0 %v5980
        %v6700 = vpop.f32.mrf.mxu0
        %v6701 = vadd.f32 %v6652, %v6700
        %v6702 = vpop.f32.mrf.mxu0
        %v6703 = vadd.f32 %v6654, %v6702
        %6704 = vmatmul.bf16.gmra.mxu0 %v5983
        %v6705 = vpop.f32.mrf.mxu0
        %v6706 = vadd.f32 %v6657, %v6705
        %v6707 = vpop.f32.mrf.mxu0
        %v6708 = vadd.f32 %v6659, %v6707
        %6709 = vmatmul.bf16.gmra.mxu0 %v5986
        %v6710 = vpop.f32.mrf.mxu0
        %v6711 = vadd.f32 %v6662, %v6710
        %v6712 = vpop.f32.mrf.mxu0
        %v6713 = vadd.f32 %v6664, %v6712
        %6714 = vmatmul.bf16.gmra.mxu0 %v5989
        %v6715 = vpop.f32.mrf.mxu0
        %v6716 = vadd.f32 %v6667, %v6715
        %v6717 = vpop.f32.mrf.mxu0
        %v6718 = vadd.f32 %v6669, %v6717
        %6719 = vmatmul.bf16.gmra.mxu0 %v5992
        %v6720 = vpop.f32.mrf.mxu0
        %v6721 = vadd.f32 %v6672, %v6720
        %v6722 = vpop.f32.mrf.mxu0
        %v6723 = vadd.f32 %v6674, %v6722
        %6724 = vmatmul.bf16.gmra.mxu0 %v5995
        %v6725 = vpop.f32.mrf.mxu0
        %v6726 = vadd.f32 %v6677, %v6725
        %v6727 = vpop.f32.mrf.mxu0
        %v6728 = vadd.f32 %v6679, %v6727
        %6729 = vdwg.mxu0
        %6730 = vmatpush.bf16.msra.mxu0 %v6411
        %6731 = vmatpush.bf16.msra.mxu0 %v6408
        %6732 = vmatpush.bf16.msra.mxu0 %v6405
        %6733 = vmatpush.bf16.msra.mxu0 %v6402
        %6734 = vmatpush.bf16.msra.mxu0 %v6399
        %6735 = vmatpush.bf16.msra.mxu0 %v6396
        %6736 = vmatpush.bf16.msra.mxu0 %v6393
        %6737 = vmatpush.bf16.msra.mxu0 %v6390
        %6738 = vmatmul.bf16.gmra.mxu0 %v5975
        %v6739 = vpop.f32.mrf.mxu0
        %v6740 = vadd.f32 %v6691, %v6739
        %v6741 = vpop.f32.mrf.mxu0
        %v6742 = vadd.f32 %v6693, %v6741
        %6743 = vmatmul.bf16.gmra.mxu0 %v5978
        %v6744 = vpop.f32.mrf.mxu0
        %v6745 = vadd.f32 %v6696, %v6744
        %v6746 = vpop.f32.mrf.mxu0
        %v6747 = vadd.f32 %v6698, %v6746
        %6748 = vmatmul.bf16.gmra.mxu0 %v5981
        %v6749 = vpop.f32.mrf.mxu0
        %v6750 = vadd.f32 %v6701, %v6749
        %v6751 = vpop.f32.mrf.mxu0
        %v6752 = vadd.f32 %v6703, %v6751
        %6753 = vmatmul.bf16.gmra.mxu0 %v5984
        %v6754 = vpop.f32.mrf.mxu0
        %v6755 = vadd.f32 %v6706, %v6754
        %v6756 = vpop.f32.mrf.mxu0
        %v6757 = vadd.f32 %v6708, %v6756
        %6758 = vmatmul.bf16.gmra.mxu0 %v5987
        %v6759 = vpop.f32.mrf.mxu0
        %v6760 = vadd.f32 %v6711, %v6759
        %v6761 = vpop.f32.mrf.mxu0
        %v6762 = vadd.f32 %v6713, %v6761
        %6763 = vmatmul.bf16.gmra.mxu0 %v5990
        %v6764 = vpop.f32.mrf.mxu0
        %v6765 = vadd.f32 %v6716, %v6764
        %v6766 = vpop.f32.mrf.mxu0
        %v6767 = vadd.f32 %v6718, %v6766
        %6768 = vmatmul.bf16.gmra.mxu0 %v5993
        %v6769 = vpop.f32.mrf.mxu0
        %v6770 = vadd.f32 %v6721, %v6769
        %v6771 = vpop.f32.mrf.mxu0
        %v6772 = vadd.f32 %v6723, %v6771
        %6773 = vmatmul.bf16.gmra.mxu0 %v5996
        %v6774 = vpop.f32.mrf.mxu0
        %v6775 = vadd.f32 %v6726, %v6774
        %v6776 = vpop.f32.mrf.mxu0
        %v6777 = vadd.f32 %v6728, %v6776
        %6778 = vdwg.mxu0
        %6779 = vmatpush.bf16.msra.mxu0 %v6364
        %6780 = vmatpush.bf16.msra.mxu0 %v6361
        %6781 = vmatpush.bf16.msra.mxu0 %v6358
        %6782 = vmatpush.bf16.msra.mxu0 %v6355
        %6783 = vmatpush.bf16.msra.mxu0 %v6352
        %6784 = vmatpush.bf16.msra.mxu0 %v6349
        %6785 = vmatpush.bf16.msra.mxu0 %v6346
        %6786 = vmatpush.bf16.msra.mxu0 %v6343
        %6787 = vmatmul.bf16.gmra.mxu0 %v5973
        %v6788 = vpop.f32.mrf.mxu0
        %v6789 = vadd.f32 %v6097, %v6788
        %v6790 = vpop.f32.mrf.mxu0
        %v6791 = vadd.f32 %v6097, %v6790
        %6792 = vmatmul.bf16.gmra.mxu0 %v5976
        %v6793 = vpop.f32.mrf.mxu0
        %v6794 = vadd.f32 %v6097, %v6793
        %v6795 = vpop.f32.mrf.mxu0
        %v6796 = vadd.f32 %v6097, %v6795
        %6797 = vmatmul.bf16.gmra.mxu0 %v5979
        %v6798 = vpop.f32.mrf.mxu0
        %v6799 = vadd.f32 %v6097, %v6798
        %v6800 = vpop.f32.mrf.mxu0
        %v6801 = vadd.f32 %v6097, %v6800
        %6802 = vmatmul.bf16.gmra.mxu0 %v5982
        %v6803 = vpop.f32.mrf.mxu0
        %v6804 = vadd.f32 %v6097, %v6803
        %v6805 = vpop.f32.mrf.mxu0
        %v6806 = vadd.f32 %v6097, %v6805
        %6807 = vmatmul.bf16.gmra.mxu0 %v5985
        %v6808 = vpop.f32.mrf.mxu0
        %v6809 = vadd.f32 %v6097, %v6808
        %v6810 = vpop.f32.mrf.mxu0
        %v6811 = vadd.f32 %v6097, %v6810
        %6812 = vmatmul.bf16.gmra.mxu0 %v5988
        %v6813 = vpop.f32.mrf.mxu0
        %v6814 = vadd.f32 %v6097, %v6813
        %v6815 = vpop.f32.mrf.mxu0
        %v6816 = vadd.f32 %v6097, %v6815
        %6817 = vmatmul.bf16.gmra.mxu0 %v5991
        %v6818 = vpop.f32.mrf.mxu0
        %v6819 = vadd.f32 %v6097, %v6818
        %v6820 = vpop.f32.mrf.mxu0
        %v6821 = vadd.f32 %v6097, %v6820
        %6822 = vmatmul.bf16.gmra.mxu0 %v5994
        %v6823 = vpop.f32.mrf.mxu0
        %v6824 = vadd.f32 %v6097, %v6823
        %v6825 = vpop.f32.mrf.mxu0
        %v6826 = vadd.f32 %v6097, %v6825
        %6827 = vdwg.mxu0
        %6828 = vmatpush.bf16.msra.mxu0 %v6388
        %6829 = vmatpush.bf16.msra.mxu0 %v6385
        %6830 = vmatpush.bf16.msra.mxu0 %v6382
        %6831 = vmatpush.bf16.msra.mxu0 %v6379
        %6832 = vmatpush.bf16.msra.mxu0 %v6376
        %6833 = vmatpush.bf16.msra.mxu0 %v6373
        %6834 = vmatpush.bf16.msra.mxu0 %v6370
        %6835 = vmatpush.bf16.msra.mxu0 %v6367
        %6836 = vmatmul.bf16.gmra.mxu0 %v5974
        %v6837 = vpop.f32.mrf.mxu0
        %v6838 = vadd.f32 %v6789, %v6837
        %v6839 = vpop.f32.mrf.mxu0
        %v6840 = vadd.f32 %v6791, %v6839
        %6841 = vmatmul.bf16.gmra.mxu0 %v5977
        %v6842 = vpop.f32.mrf.mxu0
        %v6843 = vadd.f32 %v6794, %v6842
        %v6844 = vpop.f32.mrf.mxu0
        %v6845 = vadd.f32 %v6796, %v6844
        %6846 = vmatmul.bf16.gmra.mxu0 %v5980
        %v6847 = vpop.f32.mrf.mxu0
        %v6848 = vadd.f32 %v6799, %v6847
        %v6849 = vpop.f32.mrf.mxu0
        %v6850 = vadd.f32 %v6801, %v6849
        %6851 = vmatmul.bf16.gmra.mxu0 %v5983
        %v6852 = vpop.f32.mrf.mxu0
        %v6853 = vadd.f32 %v6804, %v6852
        %v6854 = vpop.f32.mrf.mxu0
        %v6855 = vadd.f32 %v6806, %v6854
        %6856 = vmatmul.bf16.gmra.mxu0 %v5986
        %v6857 = vpop.f32.mrf.mxu0
        %v6858 = vadd.f32 %v6809, %v6857
        %v6859 = vpop.f32.mrf.mxu0
        %v6860 = vadd.f32 %v6811, %v6859
        %6861 = vmatmul.bf16.gmra.mxu0 %v5989
        %v6862 = vpop.f32.mrf.mxu0
        %v6863 = vadd.f32 %v6814, %v6862
        %v6864 = vpop.f32.mrf.mxu0
        %v6865 = vadd.f32 %v6816, %v6864
        %6866 = vmatmul.bf16.gmra.mxu0 %v5992
        %v6867 = vpop.f32.mrf.mxu0
        %v6868 = vadd.f32 %v6819, %v6867
        %v6869 = vpop.f32.mrf.mxu0
        %v6870 = vadd.f32 %v6821, %v6869
        %6871 = vmatmul.bf16.gmra.mxu0 %v5995
        %v6872 = vpop.f32.mrf.mxu0
        %v6873 = vadd.f32 %v6824, %v6872
        %v6874 = vpop.f32.mrf.mxu0
        %v6875 = vadd.f32 %v6826, %v6874
        %6876 = vdwg.mxu0
        %6877 = vmatpush.bf16.msra.mxu0 %v6412
        %6878 = vmatpush.bf16.msra.mxu0 %v6409
        %6879 = vmatpush.bf16.msra.mxu0 %v6406
        %6880 = vmatpush.bf16.msra.mxu0 %v6403
        %6881 = vmatpush.bf16.msra.mxu0 %v6400
        %6882 = vmatpush.bf16.msra.mxu0 %v6397
        %6883 = vmatpush.bf16.msra.mxu0 %v6394
        %6884 = vmatpush.bf16.msra.mxu0 %v6391
        %6885 = vmatmul.bf16.gmra.mxu0 %v5975
        %v6886 = vpop.f32.mrf.mxu0
        %v6887 = vadd.f32 %v6838, %v6886
        %v6888 = vpop.f32.mrf.mxu0
        %v6889 = vadd.f32 %v6840, %v6888
        %6890 = vmatmul.bf16.gmra.mxu0 %v5978
        %v6891 = vpop.f32.mrf.mxu0
        %v6892 = vadd.f32 %v6843, %v6891
        %v6893 = vpop.f32.mrf.mxu0
        %v6894 = vadd.f32 %v6845, %v6893
        %6895 = vmatmul.bf16.gmra.mxu0 %v5981
        %v6896 = vpop.f32.mrf.mxu0
        %v6897 = vadd.f32 %v6848, %v6896
        %v6898 = vpop.f32.mrf.mxu0
        %v6899 = vadd.f32 %v6850, %v6898
        %6900 = vmatmul.bf16.gmra.mxu0 %v5984
        %v6901 = vpop.f32.mrf.mxu0
        %v6902 = vadd.f32 %v6853, %v6901
        %v6903 = vpop.f32.mrf.mxu0
        %v6904 = vadd.f32 %v6855, %v6903
        %6905 = vmatmul.bf16.gmra.mxu0 %v5987
        %v6906 = vpop.f32.mrf.mxu0
        %v6907 = vadd.f32 %v6858, %v6906
        %v6908 = vpop.f32.mrf.mxu0
        %v6909 = vadd.f32 %v6860, %v6908
        %6910 = vmatmul.bf16.gmra.mxu0 %v5990
        %v6911 = vpop.f32.mrf.mxu0
        %v6912 = vadd.f32 %v6863, %v6911
        %v6913 = vpop.f32.mrf.mxu0
        %v6914 = vadd.f32 %v6865, %v6913
        %6915 = vmatmul.bf16.gmra.mxu0 %v5993
        %v6916 = vpop.f32.mrf.mxu0
        %v6917 = vadd.f32 %v6868, %v6916
        %v6918 = vpop.f32.mrf.mxu0
        %v6919 = vadd.f32 %v6870, %v6918
        %6920 = vmatmul.bf16.gmra.mxu0 %v5996
        %v6921 = vpop.f32.mrf.mxu0
        %v6922 = vadd.f32 %v6873, %v6921
        %v6923 = vpop.f32.mrf.mxu0
        %v6924 = vadd.f32 %v6875, %v6923
        %6925 = vdwg.mxu0
        %6926 = vst [vmem:[%s265] sm:$0xff] %v6593
        %6927 = vst [vmem:[%s265 + $0x8] sm:$0xff] %v6740
        %6928 = vst [vmem:[%s265 + $0x10] sm:$0xff] %v6887
        %6929 = vst [vmem:[%s265 + $0x18] sm:$0xff] %v6595
        %6930 = vst [vmem:[%s265 + $0x20] sm:$0xff] %v6742
        %6931 = vst [vmem:[%s265 + $0x28] sm:$0xff] %v6889
        %6932 = vst [vmem:[%s265 + $0x30] sm:$0xff] %v6598
        %6933 = vst [vmem:[%s265 + $0x38] sm:$0xff] %v6745
        %6934 = vst [vmem:[%s265 + $0x40] sm:$0xff] %v6892
        %6935 = vst [vmem:[%s265 + $0x48] sm:$0xff] %v6600
        %6936 = vst [vmem:[%s265 + $0x50] sm:$0xff] %v6747
        %6937 = vst [vmem:[%s265 + $0x58] sm:$0xff] %v6894
        %6938 = vst [vmem:[%s265 + $0x60] sm:$0xff] %v6603
        %6939 = vst [vmem:[%s265 + $0x68] sm:$0xff] %v6750
        %6940 = vst [vmem:[%s265 + $0x70] sm:$0xff] %v6897
        %6941 = vst [vmem:[%s265 + $0x78] sm:$0xff] %v6605
        %6942 = vst [vmem:[%s265 + $0x80] sm:$0xff] %v6752
        %6943 = vst [vmem:[%s265 + $0x88] sm:$0xff] %v6899
        %6944 = vst [vmem:[%s265 + $0x90] sm:$0xff] %v6608
        %6945 = vst [vmem:[%s265 + $0x98] sm:$0xff] %v6755
        %6946 = vst [vmem:[%s265 + $0xa0] sm:$0xff] %v6902
        %6947 = vst [vmem:[%s265 + $0xa8] sm:$0xff] %v6610
        %6948 = vst [vmem:[%s265 + $0xb0] sm:$0xff] %v6757
        %6949 = vst [vmem:[%s265 + $0xb8] sm:$0xff] %v6904
        %6950 = vst [vmem:[%s265 + $0xc0] sm:$0xff] %v6613
        %6951 = vst [vmem:[%s265 + $0xc8] sm:$0xff] %v6760
        %6952 = vst [vmem:[%s265 + $0xd0] sm:$0xff] %v6907
        %6953 = vst [vmem:[%s265 + $0xd8] sm:$0xff] %v6615
        %6954 = vst [vmem:[%s265 + $0xe0] sm:$0xff] %v6762
        %6955 = vst [vmem:[%s265 + $0xe8] sm:$0xff] %v6909
        %6956 = vst [vmem:[%s265 + $0xf0] sm:$0xff] %v6618
        %6957 = vst [vmem:[%s265 + $0xf8] sm:$0xff] %v6765
        %6958 = vst [vmem:[%s265 + $0x100] sm:$0xff] %v6912
        %6959 = vst [vmem:[%s265 + $0x108] sm:$0xff] %v6620
        %6960 = vst [vmem:[%s265 + $0x110] sm:$0xff] %v6767
        %6961 = vst [vmem:[%s265 + $0x118] sm:$0xff] %v6914
        %6962 = vst [vmem:[%s265 + $0x120] sm:$0xff] %v6623
        %6963 = vst [vmem:[%s265 + $0x128] sm:$0xff] %v6770
        %6964 = vst [vmem:[%s265 + $0x130] sm:$0xff] %v6917
        %6965 = vst [vmem:[%s265 + $0x138] sm:$0xff] %v6625
        %6966 = vst [vmem:[%s265 + $0x140] sm:$0xff] %v6772
        %6967 = vst [vmem:[%s265 + $0x148] sm:$0xff] %v6919
        %6968 = vst [vmem:[%s265 + $0x150] sm:$0xff] %v6628
        %6969 = vst [vmem:[%s265 + $0x158] sm:$0xff] %v6775
        %6970 = vst [vmem:[%s265 + $0x160] sm:$0xff] %v6922
        %6971 = vst [vmem:[%s265 + $0x168] sm:$0xff] %v6630
        %6972 = vst [vmem:[%s265 + $0x170] sm:$0xff] %v6777
        %6973 = vst [vmem:[%s265 + $0x178] sm:$0xff] %v6924
        %s6974 = sand.u32 %s120, 1
        %s6975 = scalar_lea.sflag [#allocation4], %s6974
        %s6976 = sand.u32 %s120, 1
        %s6977 = smul.addr %s6976, 384
        %s6978 = scalar_lea.vmem [#allocation10], %s6977
        // Predicated region
        $region53: #{tpu_custom_call.1} parent=35 // pred_check
          %p6979 = pneg %p130
        $region54: #{tpu_custom_call.1} parent=35 // pred_check_branch
          %6981 = sbr.rel (%p6979) target = $region56
        $region55: #{tpu_custom_call.1} parent=35 // pred_region
          %6983 = vsyncadd %s6975, 0
          %s6984 = smul.addr %s23, 48
          %s6985 = smul.addr %s6984, 8
          %s6986 = scalar_lea.hbm %s4, %s6985
          %s6987 = sshll.u32 %s6978, 4
          %s6988 = int_to_ptr.vmem [resolvable:$true] %s6987
          %s6989 = sshll.u32 %s6986, 4
          %s6990 = int_to_ptr.hbm [resolvable:$true] %s6989
          %6995 = dma.vmem_to_hbm [thread:$0]  %s6988, 6144, %s6990, %s6975, 384, 384, 24
        $region56: #{tpu_custom_call.1} parent=35 // pred_fallthru
          _
      $region36: #{tpu_custom_call.1} parent=5 // pred_fallthru
        _
      %p6996 = scmp.le.s32.totalorder 2, %s18
      // Predicated region
      $region57: #{tpu_custom_call.1} parent=5 // pred_check
        %p6997 = pneg %p6996
      $region58: #{tpu_custom_call.1} parent=5 // pred_check_branch
        %6999 = sbr.rel (%p6997) target = $region60
      $region59: #{tpu_custom_call.1} parent=5 // pred_region
        %s7000 = ssub.s32 %s18, 2
        // Predicated region
        $region61: #{tpu_custom_call.1} parent=59 // pred_check
          %p7001 = pneg %p136
        $region62: #{tpu_custom_call.1} parent=59 // pred_check_branch
          %7003 = sbr.rel (%p7001) target = $region64
        $region63: #{tpu_custom_call.1} parent=59 // pred_region
          %s7004 = sand.u32 %s121, 1
          %s7005 = scalar_lea.sflag [#allocation4], %s7004
          %s7006 = sand.u32 %s121, 1
          %s7007 = smul.addr %s7006, 384
          %s7008 = scalar_lea.vmem [#allocation10], %s7007
          %7010 = dma.done %s7005, 6144
        $region64: #{tpu_custom_call.1} parent=59 // pred_fallthru
          _
      $region60: #{tpu_custom_call.1} parent=5 // pred_fallthru
        _
    $region6: #{tpu_custom_call.1} parent=1 // loop_footer
      %s22 = sadd.s32 1, %s18
    $region7: #{tpu_custom_call.1} parent=1 // loop_footer_branch
      %17 = sbr.rel target = $region3
    $region8: #{tpu_custom_call.1} parent=1 // loop_exit
      _
    %7011 = vsyncpa [#allocation3], 1
    %s7012 = scalar_lea.sflag [#allocation3], 1
    %7013 = vsyncpa %s7012, 1
    %7014 = vsyncpa [#allocation6], 1
    %7015 = vsyncpa [#allocation9], 1
    %7016 = vsyncpa [#allocation4], 1
    %s7017 = scalar_lea.sflag [#allocation4], 1
    %7018 = vsyncpa %s7017, 1

</llo_original>
